<compile_context>
chip_gen: v7x
topology: tpu7x:2x2x1
jax: 0.10.0
libtpu: 0.0.40
codegen_flags: <defaults>
</compile_context>

<pallas_src>
import functools

import jax
import jax.numpy as jnp
from jax import lax
from jax.experimental import pallas as pl
from jax.experimental.pallas import tpu as pltpu

WIDTH = 500        # logical width of the PyTorch module
WIDTH_PAD = 512    # padded, (8,128)-aligned width used on-chip
BN_EPS = 1e-5


def _round_up(n, m):
    return ((n + m - 1) // m) * m


def _bn_relu_bf16(h, gamma, beta, inv_n, row_mask):
    """PyTorch BatchNorm1d (training-mode biased batch var) + ReLU, fused to one
    scale/shift and returning bf16 (the cast for the next MXU matmul is fused in).

    Padded feature columns (zero weights / gamma / beta) stay exactly 0. Padded batch
    rows are re-zeroed by row_mask so they never pollute the next layer's statistics.
    """
    s = jnp.sum(h, axis=0, keepdims=True)
    s2 = jnp.sum(h * h, axis=0, keepdims=True)
    mean = s * inv_n
    # Clamp: single-pass E[h^2] - mean^2 can round slightly negative in f32.
    var = jnp.maximum(s2 * inv_n - mean * mean, 0.0)
    scale = gamma * lax.rsqrt(var + BN_EPS)       # rsqrt -> EUP slot (free-ish)
    shift = beta - mean * scale
    out = jnp.maximum(h * scale + shift, 0.0)
    if row_mask is not None:
        out = out * row_mask                      # kill padded batch rows
    return out.astype(jnp.bfloat16)


def _make_kernel(n_real_rows, with_mask):
    inv_n = 1.0 / float(n_real_rows)              # real batch size, not padded

    def kernel(*refs):
        if with_mask:
            (x_ref, mask_ref,
             w1_ref, g1_ref, b1_ref,
             w2_ref, g2_ref, b2_ref,
             w3_ref, g3_ref, b3_ref,
             w4_ref, g4_ref, b4_ref,
             w5_ref, bias5_ref, o_ref) = refs
            row_mask = mask_ref[...]
        else:
            (x_ref,
             w1_ref, g1_ref, b1_ref,
             w2_ref, g2_ref, b2_ref,
             w3_ref, g3_ref, b3_ref,
             w4_ref, g4_ref, b4_ref,
             w5_ref, bias5_ref, o_ref) = refs
            row_mask = None

        # bf16 operands into the MXU, f32 accumulation; BN/ReLU math stays f32.
        h = jnp.dot(x_ref[...], w1_ref[...], preferred_element_type=jnp.float32)
        h = _bn_relu_bf16(h, g1_ref[...], b1_ref[...], inv_n, row_mask)

        h = jnp.dot(h, w2_ref[...], preferred_element_type=jnp.float32)
        h = _bn_relu_bf16(h, g2_ref[...], b2_ref[...], inv_n, row_mask)

        h = jnp.dot(h, w3_ref[...], preferred_element_type=jnp.float32)
        h = _bn_relu_bf16(h, g3_ref[...], b3_ref[...], inv_n, row_mask)

        h = jnp.dot(h, w4_ref[...], preferred_element_type=jnp.float32)
        h = _bn_relu_bf16(h, g4_ref[...], b4_ref[...], inv_n, row_mask)

        out = jnp.dot(h, w5_ref[...], preferred_element_type=jnp.float32)
        o_ref[...] = (out + bias5_ref[...]).astype(o_ref.dtype)

    return kernel


def _pad2(a, rows, cols, dtype):
    r, c = a.shape
    return jnp.pad(a, ((0, rows - r), (0, cols - c))).astype(dtype)


def _vmem_capacity_bytes():
    try:
        return int(pltpu.get_tpu_info().vmem_capacity_bytes)
    except Exception:
        return 64 << 20     # conservative fallback: v7x per-TensorCore physical VMEM


def prepare_params(params, input_dim, output_dim):
    """Pad/cast parameters ONCE (reused across calls): bf16 weights, f32 affine.

    Invariant (required for exactness of padded feature columns): every padded entry of
    the weights, gamma, beta and bias is exactly zero (jnp.pad default)."""
    k_pad = _round_up(input_dim, 128)
    out_pad = _round_up(output_dim, 128)
    padded = {
        "w1": _pad2(params["w1"], k_pad, WIDTH_PAD, jnp.bfloat16),
        "w2": _pad2(params["w2"], WIDTH_PAD, WIDTH_PAD, jnp.bfloat16),
        "w3": _pad2(params["w3"], WIDTH_PAD, WIDTH_PAD, jnp.bfloat16),
        "w4": _pad2(params["w4"], WIDTH_PAD, WIDTH_PAD, jnp.bfloat16),
        "w5": _pad2(params["w5"], WIDTH_PAD, out_pad, jnp.bfloat16),
        "bias5": _pad2(params["bias5"], 1, out_pad, jnp.float32),
    }
    for i in range(1, 5):
        padded[f"g{i}"] = _pad2(params[f"g{i}"], 1, WIDTH_PAD, jnp.float32)
        padded[f"b{i}"] = _pad2(params[f"b{i}"], 1, WIDTH_PAD, jnp.float32)
    # Explicit check of the zero-padding invariant (eager, one-time).
    assert float(jnp.abs(padded["g1"][0, WIDTH:]).max()) == 0.0
    assert float(jnp.abs(padded["bias5"][0, output_dim:]).max()) == 0.0
    return padded, output_dim


@functools.partial(jax.jit, static_argnames=("output_dim",))
def _forward_padded(x, padded, output_dim):
    B, input_dim = x.shape
    k_pad = _round_up(input_dim, 128)
    out_pad = padded["bias5"].shape[1]
    # Pad batch to a multiple of 16 (unmasked bf16 LHS sublane tiles on the MXU).
    B_pad = _round_up(max(B, 16), 16)
    with_mask = B_pad != B

    x_p = jnp.pad(x, ((0, B_pad - B), (0, k_pad - input_dim))).astype(jnp.bfloat16)

    args = [x_p]
    if with_mask:
        row_mask = (jnp.arange(B_pad, dtype=jnp.int32) < B).astype(jnp.float32)[:, None]
        args.append(row_mask)
    args += [
        padded["w1"], padded["g1"], padded["b1"],
        padded["w2"], padded["g2"], padded["b2"],
        padded["w3"], padded["g3"], padded["b3"],
        padded["w4"], padded["g4"], padded["b4"],
        padded["w5"], padded["bias5"],
    ]

    # Live-set accounting: bf16 weights + f32 affine + bf16 x + one f32 h + one bf16 h
    # + f32 output (+ mask); capped at ~85% of this generation's per-core VMEM.
    weight_bytes = 2 * (k_pad * WIDTH_PAD + 3 * WIDTH_PAD * WIDTH_PAD + WIDTH_PAD * out_pad)
    affine_bytes = 4 * (8 * WIDTH_PAD + out_pad)
    act_bytes = B_pad * (2 * k_pad + 4 * WIDTH_PAD + 2 * WIDTH_PAD + 4 * out_pad + 4)
    need = weight_bytes + affine_bytes + act_bytes
    vmem_limit = max(int(1.5 * need) + (4 << 20), 16 << 20)
    vmem_limit = min(vmem_limit, int(0.85 * _vmem_capacity_bytes()))

    cost = pl.CostEstimate(
        flops=2 * B_pad * (k_pad * WIDTH_PAD + 3 * WIDTH_PAD * WIDTH_PAD + WIDTH_PAD * out_pad),
        transcendentals=4 * WIDTH_PAD,
        bytes_accessed=need,
    )

    vmem_spec = pl.BlockSpec(memory_space=pltpu.MemorySpace.VMEM)
    out_padded = pl.pallas_call(
        _make_kernel(B, with_mask),
        out_shape=jax.ShapeDtypeStruct((B_pad, out_pad), jnp.float32),
        in_specs=[vmem_spec] * len(args),
        out_specs=vmem_spec,
        compiler_params=pltpu.CompilerParams(vmem_limit_bytes=vmem_limit),
        cost_estimate=cost,
    )(*args)
    return out_padded[:B, :output_dim]


def ishida_mlp_forward(x, prepared):
    """x: (B, input_dim) float32. prepared: output of prepare_params. Returns (B, out) f32."""
    padded, output_dim = prepared
    return _forward_padded(x, padded, output_dim)


def init_params(key, input_dim, output_dim):
    """Deterministic synthetic parameter init (logical shapes follow the PyTorch module)."""
    ks = jax.random.split(key, 14)

    def lin(k, fan_in, fan_out):
        # weight stored (in, out) == transpose of PyTorch's (out, in)
        return (jax.random.normal(k, (fan_in, fan_out), jnp.float32)
                / jnp.sqrt(jnp.float32(fan_in)))

    params = {
        "w1": lin(ks[0], input_dim, WIDTH),
        "w2": lin(ks[1], WIDTH, WIDTH),
        "w3": lin(ks[2], WIDTH, WIDTH),
        "w4": lin(ks[3], WIDTH, WIDTH),
        "w5": lin(ks[4], WIDTH, output_dim),
        "bias5": jax.random.normal(ks[5], (1, output_dim), jnp.float32) * 0.1,
    }
    # BatchNorm affine params (gamma ~ 1, beta ~ 0) — independent keys.
    for i in range(1, 5):
        params[f"g{i}"] = 1.0 + 0.1 * jax.random.normal(ks[5 + i], (1, WIDTH), jnp.float32)
        params[f"b{i}"] = 0.1 * jax.random.normal(ks[9 + i], (1, WIDTH), jnp.float32)
    return params


def reference_forward(x, params):
    """Pure-JAX reference: standard two-pass BN (training-mode, biased var) + ReLU,
    with the same bf16-operand / f32-accumulation matmul convention as the kernel."""
    def mm(a, w):
        return jnp.dot(a.astype(jnp.bfloat16), w.astype(jnp.bfloat16),
                       preferred_element_type=jnp.float32)

    def bn_relu(h, g, b):
        mean = jnp.mean(h, axis=0, keepdims=True)
        var = jnp.mean((h - mean) ** 2, axis=0, keepdims=True)
        return jnp.maximum((h - mean) / jnp.sqrt(var + BN_EPS) * g + b, 0.0)

    h = bn_relu(mm(x, params["w1"]), params["g1"], params["b1"])
    h = bn_relu(mm(h, params["w2"]), params["g2"], params["b2"])
    h = bn_relu(mm(h, params["w3"]), params["g3"], params["b3"])
    h = bn_relu(mm(h, params["w4"]), params["g4"], params["b4"])
    return mm(h, params["w5"]) + params["bias5"]


if __name__ == "__main__":
    key = jax.random.PRNGKey(0)

    # Test 1: aligned batch (multiple of 16) — no row-mask path.
    k_param, k_x, k_param2, k_x2 = jax.random.split(key, 4)
    B, input_dim, output_dim = 64, 16, 2
    params = init_params(k_param, input_dim, output_dim)
    prepared = prepare_params(params, input_dim, output_dim)
    x = jax.random.normal(k_x, (B, input_dim), jnp.float32)

    out = jax.block_until_ready(ishida_mlp_forward(x, prepared))
    ref = reference_forward(x, params)
    assert out.shape == (B, output_dim)
    assert jnp.allclose(out, ref, atol=2e-2, rtol=2e-2), "mismatch vs JAX reference (B=64)"

    # Test 2: ragged batch (padded to 64 with row-mask) — exercises masked-stats path.
    B2, input_dim2, output_dim2 = 50, 10, 3
    params2 = init_params(k_param2, input_dim2, output_dim2)
    prepared2 = prepare_params(params2, input_dim2, output_dim2)
    x2 = jax.random.normal(k_x2, (B2, input_dim2), jnp.float32)

    out2 = jax.block_until_ready(ishida_mlp_forward(x2, prepared2))
    ref2 = reference_forward(x2, params2)
    assert out2.shape == (B2, output_dim2)
    assert jnp.allclose(out2, ref2, atol=2e-2, rtol=2e-2), "mismatch vs JAX reference (B=50)"

    print("KERNEL_OK")
</pallas_src>

<mosaic_0001>
module attributes {stable_mosaic.version = 11 : i64} {
  func.func @kernel(%arg0: memref<64x128xbf16, #tpu.memory_space<vmem>>, %arg1: memref<128x512xbf16, #tpu.memory_space<vmem>>, %arg2: memref<1x512xf32, #tpu.memory_space<vmem>>, %arg3: memref<1x512xf32, #tpu.memory_space<vmem>>, %arg4: memref<512x512xbf16, #tpu.memory_space<vmem>>, %arg5: memref<1x512xf32, #tpu.memory_space<vmem>>, %arg6: memref<1x512xf32, #tpu.memory_space<vmem>>, %arg7: memref<512x512xbf16, #tpu.memory_space<vmem>>, %arg8: memref<1x512xf32, #tpu.memory_space<vmem>>, %arg9: memref<1x512xf32, #tpu.memory_space<vmem>>, %arg10: memref<512x512xbf16, #tpu.memory_space<vmem>>, %arg11: memref<1x512xf32, #tpu.memory_space<vmem>>, %arg12: memref<1x512xf32, #tpu.memory_space<vmem>>, %arg13: memref<512x128xbf16, #tpu.memory_space<vmem>>, %arg14: memref<1x128xf32, #tpu.memory_space<vmem>>, %arg15: memref<64x128xf32, #tpu.memory_space<vmem>>) attributes {dimension_semantics = [], scalar_prefetch = 0 : i64, scratch_operands = 0 : i64, tpu.core_type = #tpu.core_type<tc>} {
    %c0 = arith.constant 0 : index
    %c0_0 = arith.constant 0 : index
    %0 = vector.load %arg0[%c0, %c0_0] : memref<64x128xbf16, #tpu.memory_space<vmem>>, vector<64x128xbf16>
    %c0_1 = arith.constant 0 : index
    %c0_2 = arith.constant 0 : index
    %1 = vector.load %arg1[%c0_1, %c0_2] : memref<128x512xbf16, #tpu.memory_space<vmem>>, vector<128x512xbf16>
    %cst = arith.constant dense<0.000000e+00> : vector<64x512xf32>
    %2 = tpu.matmul %0, %1, %cst {dimension_numbers = #tpu.dot_dimension_numbers<[1], [0], [0], [1], [0, 0, 1, 1], [], []>} : vector<64x128xbf16>, vector<128x512xbf16>, vector<64x512xf32> -> vector<64x512xf32>
    %c0_3 = arith.constant 0 : index
    %c0_4 = arith.constant 0 : index
    %3 = vector.load %arg2[%c0_3, %c0_4] : memref<1x512xf32, #tpu.memory_space<vmem>>, vector<1x512xf32>
    %c0_5 = arith.constant 0 : index
    %c0_6 = arith.constant 0 : index
    %4 = vector.load %arg3[%c0_5, %c0_6] : memref<1x512xf32, #tpu.memory_space<vmem>>, vector<1x512xf32>
    %cst_7 = arith.constant dense<0.000000e+00> : vector<512xf32>
    %5 = vector.multi_reduction <add>, %2, %cst_7 [0] : vector<64x512xf32> to vector<512xf32>
    %6 = vector.shape_cast %5 : vector<512xf32> to vector<1x512xf32>
    %7 = arith.mulf %2, %2 : vector<64x512xf32>
    %cst_8 = arith.constant dense<0.000000e+00> : vector<512xf32>
    %8 = vector.multi_reduction <add>, %7, %cst_8 [0] : vector<64x512xf32> to vector<512xf32>
    %9 = vector.shape_cast %8 : vector<512xf32> to vector<1x512xf32>
    %cst_9 = arith.constant 1.562500e-02 : f32
    %10 = vector.broadcast %cst_9 : f32 to vector<1x512xf32>
    %11 = arith.mulf %6, %10 : vector<1x512xf32>
    %cst_10 = arith.constant 1.562500e-02 : f32
    %12 = vector.broadcast %cst_10 : f32 to vector<1x512xf32>
    %13 = arith.mulf %9, %12 : vector<1x512xf32>
    %14 = arith.mulf %11, %11 : vector<1x512xf32>
    %15 = arith.subf %13, %14 : vector<1x512xf32>
    %cst_11 = arith.constant 0.000000e+00 : f32
    %16 = vector.broadcast %cst_11 : f32 to vector<1x512xf32>
    %17 = arith.maximumf %15, %16 : vector<1x512xf32>
    %cst_12 = arith.constant 9.99999974E-6 : f32
    %18 = vector.broadcast %cst_12 : f32 to vector<1x512xf32>
    %19 = arith.addf %17, %18 : vector<1x512xf32>
    %20 = math.rsqrt %19 : vector<1x512xf32>
    %21 = arith.mulf %3, %20 : vector<1x512xf32>
    %22 = arith.mulf %11, %21 : vector<1x512xf32>
    %23 = arith.subf %4, %22 : vector<1x512xf32>
    %24 = vector.broadcast %21 : vector<1x512xf32> to vector<64x512xf32>
    %25 = arith.mulf %2, %24 : vector<64x512xf32>
    %26 = vector.broadcast %23 : vector<1x512xf32> to vector<64x512xf32>
    %27 = arith.addf %25, %26 : vector<64x512xf32>
    %cst_13 = arith.constant 0.000000e+00 : f32
    %28 = vector.broadcast %cst_13 : f32 to vector<64x512xf32>
    %29 = arith.maximumf %27, %28 : vector<64x512xf32>
    %30 = arith.truncf %29 : vector<64x512xf32> to vector<64x512xbf16>
    %c0_14 = arith.constant 0 : index
    %c0_15 = arith.constant 0 : index
    %31 = vector.load %arg4[%c0_14, %c0_15] : memref<512x512xbf16, #tpu.memory_space<vmem>>, vector<512x512xbf16>
    %cst_16 = arith.constant dense<0.000000e+00> : vector<64x512xf32>
    %32 = tpu.matmul %30, %31, %cst_16 {dimension_numbers = #tpu.dot_dimension_numbers<[1], [0], [0], [1], [0, 0, 1, 1], [], []>} : vector<64x512xbf16>, vector<512x512xbf16>, vector<64x512xf32> -> vector<64x512xf32>
    %c0_17 = arith.constant 0 : index
    %c0_18 = arith.constant 0 : index
    %33 = vector.load %arg5[%c0_17, %c0_18] : memref<1x512xf32, #tpu.memory_space<vmem>>, vector<1x512xf32>
    %c0_19 = arith.constant 0 : index
    %c0_20 = arith.constant 0 : index
    %34 = vector.load %arg6[%c0_19, %c0_20] : memref<1x512xf32, #tpu.memory_space<vmem>>, vector<1x512xf32>
    %cst_21 = arith.constant dense<0.000000e+00> : vector<512xf32>
    %35 = vector.multi_reduction <add>, %32, %cst_21 [0] : vector<64x512xf32> to vector<512xf32>
    %36 = vector.shape_cast %35 : vector<512xf32> to vector<1x512xf32>
    %37 = arith.mulf %32, %32 : vector<64x512xf32>
    %cst_22 = arith.constant dense<0.000000e+00> : vector<512xf32>
    %38 = vector.multi_reduction <add>, %37, %cst_22 [0] : vector<64x512xf32> to vector<512xf32>
    %39 = vector.shape_cast %38 : vector<512xf32> to vector<1x512xf32>
    %cst_23 = arith.constant 1.562500e-02 : f32
    %40 = vector.broadcast %cst_23 : f32 to vector<1x512xf32>
    %41 = arith.mulf %36, %40 : vector<1x512xf32>
    %cst_24 = arith.constant 1.562500e-02 : f32
    %42 = vector.broadcast %cst_24 : f32 to vector<1x512xf32>
    %43 = arith.mulf %39, %42 : vector<1x512xf32>
    %44 = arith.mulf %41, %41 : vector<1x512xf32>
    %45 = arith.subf %43, %44 : vector<1x512xf32>
    %cst_25 = arith.constant 0.000000e+00 : f32
    %46 = vector.broadcast %cst_25 : f32 to vector<1x512xf32>
    %47 = arith.maximumf %45, %46 : vector<1x512xf32>
    %cst_26 = arith.constant 9.99999974E-6 : f32
    %48 = vector.broadcast %cst_26 : f32 to vector<1x512xf32>
    %49 = arith.addf %47, %48 : vector<1x512xf32>
    %50 = math.rsqrt %49 : vector<1x512xf32>
    %51 = arith.mulf %33, %50 : vector<1x512xf32>
    %52 = arith.mulf %41, %51 : vector<1x512xf32>
    %53 = arith.subf %34, %52 : vector<1x512xf32>
    %54 = vector.broadcast %51 : vector<1x512xf32> to vector<64x512xf32>
    %55 = arith.mulf %32, %54 : vector<64x512xf32>
    %56 = vector.broadcast %53 : vector<1x512xf32> to vector<64x512xf32>
    %57 = arith.addf %55, %56 : vector<64x512xf32>
    %cst_27 = arith.constant 0.000000e+00 : f32
    %58 = vector.broadcast %cst_27 : f32 to vector<64x512xf32>
    %59 = arith.maximumf %57, %58 : vector<64x512xf32>
    %60 = arith.truncf %59 : vector<64x512xf32> to vector<64x512xbf16>
    %c0_28 = arith.constant 0 : index
    %c0_29 = arith.constant 0 : index
    %61 = vector.load %arg7[%c0_28, %c0_29] : memref<512x512xbf16, #tpu.memory_space<vmem>>, vector<512x512xbf16>
    %cst_30 = arith.constant dense<0.000000e+00> : vector<64x512xf32>
    %62 = tpu.matmul %60, %61, %cst_30 {dimension_numbers = #tpu.dot_dimension_numbers<[1], [0], [0], [1], [0, 0, 1, 1], [], []>} : vector<64x512xbf16>, vector<512x512xbf16>, vector<64x512xf32> -> vector<64x512xf32>
    %c0_31 = arith.constant 0 : index
    %c0_32 = arith.constant 0 : index
    %63 = vector.load %arg8[%c0_31, %c0_32] : memref<1x512xf32, #tpu.memory_space<vmem>>, vector<1x512xf32>
    %c0_33 = arith.constant 0 : index
    %c0_34 = arith.constant 0 : index
    %64 = vector.load %arg9[%c0_33, %c0_34] : memref<1x512xf32, #tpu.memory_space<vmem>>, vector<1x512xf32>
    %cst_35 = arith.constant dense<0.000000e+00> : vector<512xf32>
    %65 = vector.multi_reduction <add>, %62, %cst_35 [0] : vector<64x512xf32> to vector<512xf32>
    %66 = vector.shape_cast %65 : vector<512xf32> to vector<1x512xf32>
    %67 = arith.mulf %62, %62 : vector<64x512xf32>
    %cst_36 = arith.constant dense<0.000000e+00> : vector<512xf32>
    %68 = vector.multi_reduction <add>, %67, %cst_36 [0] : vector<64x512xf32> to vector<512xf32>
    %69 = vector.shape_cast %68 : vector<512xf32> to vector<1x512xf32>
    %cst_37 = arith.constant 1.562500e-02 : f32
    %70 = vector.broadcast %cst_37 : f32 to vector<1x512xf32>
    %71 = arith.mulf %66, %70 : vector<1x512xf32>
    %cst_38 = arith.constant 1.562500e-02 : f32
    %72 = vector.broadcast %cst_38 : f32 to vector<1x512xf32>
    %73 = arith.mulf %69, %72 : vector<1x512xf32>
    %74 = arith.mulf %71, %71 : vector<1x512xf32>
    %75 = arith.subf %73, %74 : vector<1x512xf32>
    %cst_39 = arith.constant 0.000000e+00 : f32
    %76 = vector.broadcast %cst_39 : f32 to vector<1x512xf32>
    %77 = arith.maximumf %75, %76 : vector<1x512xf32>
    %cst_40 = arith.constant 9.99999974E-6 : f32
    %78 = vector.broadcast %cst_40 : f32 to vector<1x512xf32>
    %79 = arith.addf %77, %78 : vector<1x512xf32>
    %80 = math.rsqrt %79 : vector<1x512xf32>
    %81 = arith.mulf %63, %80 : vector<1x512xf32>
    %82 = arith.mulf %71, %81 : vector<1x512xf32>
    %83 = arith.subf %64, %82 : vector<1x512xf32>
    %84 = vector.broadcast %81 : vector<1x512xf32> to vector<64x512xf32>
    %85 = arith.mulf %62, %84 : vector<64x512xf32>
    %86 = vector.broadcast %83 : vector<1x512xf32> to vector<64x512xf32>
    %87 = arith.addf %85, %86 : vector<64x512xf32>
    %cst_41 = arith.constant 0.000000e+00 : f32
    %88 = vector.broadcast %cst_41 : f32 to vector<64x512xf32>
    %89 = arith.maximumf %87, %88 : vector<64x512xf32>
    %90 = arith.truncf %89 : vector<64x512xf32> to vector<64x512xbf16>
    %c0_42 = arith.constant 0 : index
    %c0_43 = arith.constant 0 : index
    %91 = vector.load %arg10[%c0_42, %c0_43] : memref<512x512xbf16, #tpu.memory_space<vmem>>, vector<512x512xbf16>
    %cst_44 = arith.constant dense<0.000000e+00> : vector<64x512xf32>
    %92 = tpu.matmul %90, %91, %cst_44 {dimension_numbers = #tpu.dot_dimension_numbers<[1], [0], [0], [1], [0, 0, 1, 1], [], []>} : vector<64x512xbf16>, vector<512x512xbf16>, vector<64x512xf32> -> vector<64x512xf32>
    %c0_45 = arith.constant 0 : index
    %c0_46 = arith.constant 0 : index
    %93 = vector.load %arg11[%c0_45, %c0_46] : memref<1x512xf32, #tpu.memory_space<vmem>>, vector<1x512xf32>
    %c0_47 = arith.constant 0 : index
    %c0_48 = arith.constant 0 : index
    %94 = vector.load %arg12[%c0_47, %c0_48] : memref<1x512xf32, #tpu.memory_space<vmem>>, vector<1x512xf32>
    %cst_49 = arith.constant dense<0.000000e+00> : vector<512xf32>
    %95 = vector.multi_reduction <add>, %92, %cst_49 [0] : vector<64x512xf32> to vector<512xf32>
    %96 = vector.shape_cast %95 : vector<512xf32> to vector<1x512xf32>
    %97 = arith.mulf %92, %92 : vector<64x512xf32>
    %cst_50 = arith.constant dense<0.000000e+00> : vector<512xf32>
    %98 = vector.multi_reduction <add>, %97, %cst_50 [0] : vector<64x512xf32> to vector<512xf32>
    %99 = vector.shape_cast %98 : vector<512xf32> to vector<1x512xf32>
    %cst_51 = arith.constant 1.562500e-02 : f32
    %100 = vector.broadcast %cst_51 : f32 to vector<1x512xf32>
    %101 = arith.mulf %96, %100 : vector<1x512xf32>
    %cst_52 = arith.constant 1.562500e-02 : f32
    %102 = vector.broadcast %cst_52 : f32 to vector<1x512xf32>
    %103 = arith.mulf %99, %102 : vector<1x512xf32>
    %104 = arith.mulf %101, %101 : vector<1x512xf32>
    %105 = arith.subf %103, %104 : vector<1x512xf32>
    %cst_53 = arith.constant 0.000000e+00 : f32
    %106 = vector.broadcast %cst_53 : f32 to vector<1x512xf32>
    %107 = arith.maximumf %105, %106 : vector<1x512xf32>
    %cst_54 = arith.constant 9.99999974E-6 : f32
    %108 = vector.broadcast %cst_54 : f32 to vector<1x512xf32>
    %109 = arith.addf %107, %108 : vector<1x512xf32>
    %110 = math.rsqrt %109 : vector<1x512xf32>
    %111 = arith.mulf %93, %110 : vector<1x512xf32>
    %112 = arith.mulf %101, %111 : vector<1x512xf32>
    %113 = arith.subf %94, %112 : vector<1x512xf32>
    %114 = vector.broadcast %111 : vector<1x512xf32> to vector<64x512xf32>
    %115 = arith.mulf %92, %114 : vector<64x512xf32>
    %116 = vector.broadcast %113 : vector<1x512xf32> to vector<64x512xf32>
    %117 = arith.addf %115, %116 : vector<64x512xf32>
    %cst_55 = arith.constant 0.000000e+00 : f32
    %118 = vector.broadcast %cst_55 : f32 to vector<64x512xf32>
    %119 = arith.maximumf %117, %118 : vector<64x512xf32>
    %120 = arith.truncf %119 : vector<64x512xf32> to vector<64x512xbf16>
    %c0_56 = arith.constant 0 : index
    %c0_57 = arith.constant 0 : index
    %121 = vector.load %arg13[%c0_56, %c0_57] : memref<512x128xbf16, #tpu.memory_space<vmem>>, vector<512x128xbf16>
    %cst_58 = arith.constant dense<0.000000e+00> : vector<64x128xf32>
    %122 = tpu.matmul %120, %121, %cst_58 {dimension_numbers = #tpu.dot_dimension_numbers<[1], [0], [0], [1], [0, 0, 1, 1], [], []>} : vector<64x512xbf16>, vector<512x128xbf16>, vector<64x128xf32> -> vector<64x128xf32>
    %c0_59 = arith.constant 0 : index
    %c0_60 = arith.constant 0 : index
    %123 = vector.load %arg14[%c0_59, %c0_60] : memref<1x128xf32, #tpu.memory_space<vmem>>, vector<1x128xf32>
    %124 = vector.broadcast %123 : vector<1x128xf32> to vector<64x128xf32>
    %125 = arith.addf %122, %124 : vector<64x128xf32>
    %c0_61 = arith.constant 0 : index
    %c0_62 = arith.constant 0 : index
    %126 = vector.load %arg15[%c0_61, %c0_62] : memref<64x128xf32, #tpu.memory_space<vmem>>, vector<64x128xf32>
    tpu.vector_store %arg15[%c0_61, %c0_62], %125 {strides = array<i32>} : memref<64x128xf32, #tpu.memory_space<vmem>>, vector<64x128xf32>,
    return
  }
}

</mosaic_0001>

<llo_original>
// kernel: _forward_padded.1
$region0: #{_forward_padded.1}
  #allocation0 [shape = 'u32[]', space=smem, size = 0x4, offset = 0x4, fixed_abs, tag = 'smem constant byte address 0x4 - core index']
  #allocation1 [shape = 'u32[144,128]{1,0:T(1,128)}', space=vmem, size = 0x12000, scoped, tag = 'internal scratch']
  %s0 = inlined_call_operand.vmem [shape: bf16[64,128], index: 0, kind: input, shape index: {}]
  %s1 = inlined_call_operand.hbm [shape: bf16[128,512], index: 1, kind: input, shape index: {}]
  %s2 = inlined_call_operand.vmem [shape: f32[1,512], index: 2, kind: input, shape index: {}]
  %s3 = inlined_call_operand.vmem [shape: f32[1,512], index: 3, kind: input, shape index: {}]
  %s4 = inlined_call_operand.hbm [shape: bf16[512,512], index: 4, kind: input, shape index: {}]
  %s5 = inlined_call_operand.vmem [shape: f32[1,512], index: 5, kind: input, shape index: {}]
  %s6 = inlined_call_operand.vmem [shape: f32[1,512], index: 6, kind: input, shape index: {}]
  %s7 = inlined_call_operand.hbm [shape: bf16[512,512], index: 7, kind: input, shape index: {}]
  %s8 = inlined_call_operand.vmem [shape: f32[1,512], index: 8, kind: input, shape index: {}]
  %s9 = inlined_call_operand.vmem [shape: f32[1,512], index: 9, kind: input, shape index: {}]
  %s10 = inlined_call_operand.hbm [shape: bf16[512,512], index: 10, kind: input, shape index: {}]
  %s11 = inlined_call_operand.vmem [shape: f32[1,512], index: 11, kind: input, shape index: {}]
  %s12 = inlined_call_operand.vmem [shape: f32[1,512], index: 12, kind: input, shape index: {}]
  %s13 = inlined_call_operand.hbm [shape: bf16[512,128], index: 13, kind: input, shape index: {}]
  %s14 = inlined_call_operand.vmem [shape: f32[1,128], index: 14, kind: input, shape index: {}]
  %s15 = inlined_call_operand.vmem [shape: f32[64,128], index: 15, kind: output, shape index: {}]
  %s16 = sld [smem:[#allocation0]]
  $region90: #{_forward_padded.1} parent=0
    _
  %s18 = ssub.s32 1, %s16
  %s19 = scalar_select 0, %s18, %s16
  $region1: #{_forward_padded.1} parent=0
    #allocation2 [shape = 'u8[131072]{0}', space=vmem, size = 0x20000, scoped, tag = 'input window, operand 1, single buffered']
    #allocation3 [shape = 's32[1]{0}', space=sflag, size = 0x4, scoped, tag = 'scoped memory for _forward_padded.1']
    #allocation4 [shape = 'u8[524288]{0}', space=vmem, size = 0x80000, scoped, tag = 'input window, operand 4, single buffered']
    #allocation5 [shape = 's32[1]{0}', space=sflag, size = 0x4, scoped, tag = 'scoped memory for _forward_padded.1']
    #allocation6 [shape = 'u8[524288]{0}', space=vmem, size = 0x80000, scoped, tag = 'input window, operand 7, single buffered']
    #allocation7 [shape = 'u8[524288]{0}', space=vmem, size = 0x80000, scoped, tag = 'input window, operand 10, single buffered']
    #allocation8 [shape = 's32[1]{0}', space=sflag, size = 0x4, scoped, tag = 'scoped memory for _forward_padded.1']
    #allocation9 [shape = 'u8[131072]{0}', space=vmem, size = 0x20000, scoped, tag = 'input window, operand 13, single buffered']
    %20 = vsyncpa [#allocation3], 0
    %21 = vsyncpa [#allocation5], 0
    %22 = vsyncpa [#allocation8], 0
    // Predicated region
    $region2: #{_forward_padded.1} parent=1 // pred_check
      _
    $region3: #{_forward_padded.1} parent=1 // pred_check_branch
      %24 = sbr.rel (0) target = $region5
    $region4: #{_forward_padded.1} parent=1 // pred_region
      _
    $region5: #{_forward_padded.1} parent=1 // pred_fallthru
      _
    // Predicated region
    $region6: #{_forward_padded.1} parent=1 // pred_check
      _
    $region7: #{_forward_padded.1} parent=1 // pred_check_branch
      %26 = sbr.rel (0) target = $region9
    $region8: #{_forward_padded.1} parent=1 // pred_region
      %s28 = ssub.s32 4096, 4096
      %29 = vsyncadd [#allocation3], %s28
      %s30 = sshll.u32 [#allocation2], 4
      %s31 = int_to_ptr.vmem [resolvable:$true] %s30
      %36 = dma.hbm_to_vmem [thread:$0]  %s1, 4096, %s31, [#allocation3], 256, 256, 16
    $region9: #{_forward_padded.1} parent=1 // pred_fallthru
      _
    // Predicated region
    $region10: #{_forward_padded.1} parent=1 // pred_check
      _
    $region11: #{_forward_padded.1} parent=1 // pred_check_branch
      %38 = sbr.rel (0) target = $region13
    $region12: #{_forward_padded.1} parent=1 // pred_region
      _
    $region13: #{_forward_padded.1} parent=1 // pred_fallthru
      _
    // Predicated region
    $region14: #{_forward_padded.1} parent=1 // pred_check
      _
    $region15: #{_forward_padded.1} parent=1 // pred_check_branch
      %40 = sbr.rel (0) target = $region17
    $region16: #{_forward_padded.1} parent=1 // pred_region
      _
    $region17: #{_forward_padded.1} parent=1 // pred_fallthru
      _
    // Predicated region
    $region18: #{_forward_padded.1} parent=1 // pred_check
      _
    $region19: #{_forward_padded.1} parent=1 // pred_check_branch
      %42 = sbr.rel (0) target = $region21
    $region20: #{_forward_padded.1} parent=1 // pred_region
      %s44 = ssub.s32 16384, 16384
      %45 = vsyncadd [#allocation5], %s44
      %s46 = sshll.u32 [#allocation4], 4
      %s47 = int_to_ptr.vmem [resolvable:$true] %s46
      %52 = dma.hbm_to_vmem [thread:$0]  %s4, 16384, %s47, [#allocation5], 256, 256, 16
    $region21: #{_forward_padded.1} parent=1 // pred_fallthru
      _
    // Predicated region
    $region22: #{_forward_padded.1} parent=1 // pred_check
      _
    $region23: #{_forward_padded.1} parent=1 // pred_check_branch
      %54 = sbr.rel (0) target = $region25
    $region24: #{_forward_padded.1} parent=1 // pred_region
      _
    $region25: #{_forward_padded.1} parent=1 // pred_fallthru
      _
    // Predicated region
    $region26: #{_forward_padded.1} parent=1 // pred_check
      _
    $region27: #{_forward_padded.1} parent=1 // pred_check_branch
      %56 = sbr.rel (0) target = $region29
    $region28: #{_forward_padded.1} parent=1 // pred_region
      _
    $region29: #{_forward_padded.1} parent=1 // pred_fallthru
      _
    // Predicated region
    $region30: #{_forward_padded.1} parent=1 // pred_check
      _
    $region31: #{_forward_padded.1} parent=1 // pred_check_branch
      %58 = sbr.rel (0) target = $region33
    $region32: #{_forward_padded.1} parent=1 // pred_region
      %s60 = ssub.s32 16384, 16384
      %61 = vsyncadd [#allocation5], %s60
      %s62 = sshll.u32 [#allocation6], 4
      %s63 = int_to_ptr.vmem [resolvable:$true] %s62
      %68 = dma.hbm_to_vmem [thread:$0]  %s7, 16384, %s63, [#allocation5], 256, 256, 16
    $region33: #{_forward_padded.1} parent=1 // pred_fallthru
      _
    // Predicated region
    $region34: #{_forward_padded.1} parent=1 // pred_check
      _
    $region35: #{_forward_padded.1} parent=1 // pred_check_branch
      %70 = sbr.rel (0) target = $region37
    $region36: #{_forward_padded.1} parent=1 // pred_region
      _
    $region37: #{_forward_padded.1} parent=1 // pred_fallthru
      _
    // Predicated region
    $region38: #{_forward_padded.1} parent=1 // pred_check
      _
    $region39: #{_forward_padded.1} parent=1 // pred_check_branch
      %72 = sbr.rel (0) target = $region41
    $region40: #{_forward_padded.1} parent=1 // pred_region
      _
    $region41: #{_forward_padded.1} parent=1 // pred_fallthru
      _
    // Predicated region
    $region42: #{_forward_padded.1} parent=1 // pred_check
      _
    $region43: #{_forward_padded.1} parent=1 // pred_check_branch
      %74 = sbr.rel (0) target = $region45
    $region44: #{_forward_padded.1} parent=1 // pred_region
      %s76 = ssub.s32 16384, 16384
      %77 = vsyncadd [#allocation8], %s76
      %s78 = sshll.u32 [#allocation7], 4
      %s79 = int_to_ptr.vmem [resolvable:$true] %s78
      %84 = dma.hbm_to_vmem [thread:$0]  %s10, 16384, %s79, [#allocation8], 256, 256, 16
    $region45: #{_forward_padded.1} parent=1 // pred_fallthru
      _
    // Predicated region
    $region46: #{_forward_padded.1} parent=1 // pred_check
      _
    $region47: #{_forward_padded.1} parent=1 // pred_check_branch
      %86 = sbr.rel (0) target = $region49
    $region48: #{_forward_padded.1} parent=1 // pred_region
      _
    $region49: #{_forward_padded.1} parent=1 // pred_fallthru
      _
    // Predicated region
    $region50: #{_forward_padded.1} parent=1 // pred_check
      _
    $region51: #{_forward_padded.1} parent=1 // pred_check_branch
      %88 = sbr.rel (0) target = $region53
    $region52: #{_forward_padded.1} parent=1 // pred_region
      _
    $region53: #{_forward_padded.1} parent=1 // pred_fallthru
      _
    // Predicated region
    $region54: #{_forward_padded.1} parent=1 // pred_check
      _
    $region55: #{_forward_padded.1} parent=1 // pred_check_branch
      %90 = sbr.rel (0) target = $region57
    $region56: #{_forward_padded.1} parent=1 // pred_region
      %s92 = ssub.s32 4096, 4096
      %93 = vsyncadd [#allocation8], %s92
      %s94 = sshll.u32 [#allocation9], 4
      %s95 = int_to_ptr.vmem [resolvable:$true] %s94
      %100 = dma.hbm_to_vmem [thread:$0]  %s13, 4096, %s95, [#allocation8], 64, 64, 4
    $region57: #{_forward_padded.1} parent=1 // pred_fallthru
      _
    // Predicated region
    $region58: #{_forward_padded.1} parent=1 // pred_check
      _
    $region59: #{_forward_padded.1} parent=1 // pred_check_branch
      %102 = sbr.rel (0) target = $region61
    $region60: #{_forward_padded.1} parent=1 // pred_region
      _
    $region61: #{_forward_padded.1} parent=1 // pred_fallthru
      _
    // Predicated region
    $region62: #{_forward_padded.1} parent=1 // pred_check
      _
    $region63: #{_forward_padded.1} parent=1 // pred_check_branch
      %104 = sbr.rel (0) target = $region65
    $region64: #{_forward_padded.1} parent=1 // pred_region
      %105 = dma.done [#allocation3], 4096
    $region65: #{_forward_padded.1} parent=1 // pred_fallthru
      _
    // Predicated region
    $region66: #{_forward_padded.1} parent=1 // pred_check
      _
    $region67: #{_forward_padded.1} parent=1 // pred_check_branch
      %107 = sbr.rel (0) target = $region69
    $region68: #{_forward_padded.1} parent=1 // pred_region
      %108 = dma.done [#allocation5], 16384
    $region69: #{_forward_padded.1} parent=1 // pred_fallthru
      _
    // Predicated region
    $region70: #{_forward_padded.1} parent=1 // pred_check
      _
    $region71: #{_forward_padded.1} parent=1 // pred_check_branch
      %110 = sbr.rel (0) target = $region73
    $region72: #{_forward_padded.1} parent=1 // pred_region
      %111 = dma.done [#allocation5], 16384
    $region73: #{_forward_padded.1} parent=1 // pred_fallthru
      _
    // Predicated region
    $region74: #{_forward_padded.1} parent=1 // pred_check
      _
    $region75: #{_forward_padded.1} parent=1 // pred_check_branch
      %113 = sbr.rel (0) target = $region77
    $region76: #{_forward_padded.1} parent=1 // pred_region
      %114 = dma.done [#allocation8], 16384
    $region77: #{_forward_padded.1} parent=1 // pred_fallthru
      _
    // Predicated region
    $region78: #{_forward_padded.1} parent=1 // pred_check
      _
    $region79: #{_forward_padded.1} parent=1 // pred_check_branch
      %116 = sbr.rel (0) target = $region81
    $region80: #{_forward_padded.1} parent=1 // pred_region
      %117 = dma.done [#allocation8], 4096
    $region81: #{_forward_padded.1} parent=1 // pred_fallthru
      _
    %v119 = vld [vmem:[%s0] sm:$0xf]
    %v120 = vld [vmem:[%s0 + $0x4] sm:$0xf]
    %v121 = vld [vmem:[%s0 + $0x8] sm:$0xf]
    %v122 = vld [vmem:[%s0 + $0xc] sm:$0xf]
    %v123 = vld [vmem:[%s0 + $0x10] sm:$0xf]
    %v124 = vld [vmem:[%s0 + $0x14] sm:$0xf]
    %v125 = vld [vmem:[%s0 + $0x18] sm:$0xf]
    %v126 = vld [vmem:[%s0 + $0x1c] sm:$0xf]
    %v127 = vld [vmem:[#allocation2] sm:$0xff]
    %v128 = vld [vmem:[#allocation2 + $0x8] sm:$0xff]
    %v129 = vld [vmem:[#allocation2 + $0x10] sm:$0xff]
    %v130 = vld [vmem:[#allocation2 + $0x18] sm:$0xff]
    %v131 = vld [vmem:[#allocation2 + $0x20] sm:$0xff]
    %v132 = vld [vmem:[#allocation2 + $0x28] sm:$0xff]
    %v133 = vld [vmem:[#allocation2 + $0x30] sm:$0xff]
    %v134 = vld [vmem:[#allocation2 + $0x38] sm:$0xff]
    %v135 = vld [vmem:[#allocation2 + $0x40] sm:$0xff]
    %v136 = vld [vmem:[#allocation2 + $0x48] sm:$0xff]
    %v137 = vld [vmem:[#allocation2 + $0x50] sm:$0xff]
    %v138 = vld [vmem:[#allocation2 + $0x58] sm:$0xff]
    %v139 = vld [vmem:[#allocation2 + $0x60] sm:$0xff]
    %v140 = vld [vmem:[#allocation2 + $0x68] sm:$0xff]
    %v141 = vld [vmem:[#allocation2 + $0x70] sm:$0xff]
    %v142 = vld [vmem:[#allocation2 + $0x78] sm:$0xff]
    %v143 = vld [vmem:[#allocation2 + $0x80] sm:$0xff]
    %v144 = vld [vmem:[#allocation2 + $0x88] sm:$0xff]
    %v145 = vld [vmem:[#allocation2 + $0x90] sm:$0xff]
    %v146 = vld [vmem:[#allocation2 + $0x98] sm:$0xff]
    %v147 = vld [vmem:[#allocation2 + $0xa0] sm:$0xff]
    %v148 = vld [vmem:[#allocation2 + $0xa8] sm:$0xff]
    %v149 = vld [vmem:[#allocation2 + $0xb0] sm:$0xff]
    %v150 = vld [vmem:[#allocation2 + $0xb8] sm:$0xff]
    %v151 = vld [vmem:[#allocation2 + $0xc0] sm:$0xff]
    %v152 = vld [vmem:[#allocation2 + $0xc8] sm:$0xff]
    %v153 = vld [vmem:[#allocation2 + $0xd0] sm:$0xff]
    %v154 = vld [vmem:[#allocation2 + $0xd8] sm:$0xff]
    %v155 = vld [vmem:[#allocation2 + $0xe0] sm:$0xff]
    %v156 = vld [vmem:[#allocation2 + $0xe8] sm:$0xff]
    %v157 = vld [vmem:[#allocation2 + $0xf0] sm:$0xff]
    %v158 = vld [vmem:[#allocation2 + $0xf8] sm:$0xff]
    %v167 = vunpack.c.l.b16 %v119
    %v168 = vunpack.c.l.b16 %v120
    %v169 = vunpack.c.l.b16 %v121
    %v170 = vunpack.c.l.b16 %v122
    %v171 = vunpack.c.l.b16 %v123
    %v172 = vunpack.c.l.b16 %v124
    %v173 = vunpack.c.l.b16 %v125
    %v174 = vunpack.c.l.b16 %v126
    %v175 = vpack.c.b16 %v168, %v167
    %v176 = vpack.c.b16 %v170, %v169
    %v177 = vpack.c.b16 %v172, %v171
    %v178 = vpack.c.b16 %v174, %v173
    %v215 = vunpack.c.l.b16 %v127
    %v216 = vunpack.c.h.b16 %v127
    %v217 = vunpack.c.l.b16 %v128
    %v218 = vunpack.c.h.b16 %v128
    %v219 = vunpack.c.l.b16 %v129
    %v220 = vunpack.c.h.b16 %v129
    %v221 = vunpack.c.l.b16 %v130
    %v222 = vunpack.c.h.b16 %v130
    %v223 = vunpack.c.l.b16 %v131
    %v224 = vunpack.c.h.b16 %v131
    %v225 = vunpack.c.l.b16 %v132
    %v226 = vunpack.c.h.b16 %v132
    %v227 = vunpack.c.l.b16 %v133
    %v228 = vunpack.c.h.b16 %v133
    %v229 = vunpack.c.l.b16 %v134
    %v230 = vunpack.c.h.b16 %v134
    %v231 = vunpack.c.l.b16 %v135
    %v232 = vunpack.c.h.b16 %v135
    %v233 = vunpack.c.l.b16 %v136
    %v234 = vunpack.c.h.b16 %v136
    %v235 = vunpack.c.l.b16 %v137
    %v236 = vunpack.c.h.b16 %v137
    %v237 = vunpack.c.l.b16 %v138
    %v238 = vunpack.c.h.b16 %v138
    %v239 = vunpack.c.l.b16 %v139
    %v240 = vunpack.c.h.b16 %v139
    %v241 = vunpack.c.l.b16 %v140
    %v242 = vunpack.c.h.b16 %v140
    %v243 = vunpack.c.l.b16 %v141
    %v244 = vunpack.c.h.b16 %v141
    %v245 = vunpack.c.l.b16 %v142
    %v246 = vunpack.c.h.b16 %v142
    %v247 = vunpack.c.l.b16 %v143
    %v248 = vunpack.c.h.b16 %v143
    %v249 = vunpack.c.l.b16 %v144
    %v250 = vunpack.c.h.b16 %v144
    %v251 = vunpack.c.l.b16 %v145
    %v252 = vunpack.c.h.b16 %v145
    %v253 = vunpack.c.l.b16 %v146
    %v254 = vunpack.c.h.b16 %v146
    %v255 = vunpack.c.l.b16 %v147
    %v256 = vunpack.c.h.b16 %v147
    %v257 = vunpack.c.l.b16 %v148
    %v258 = vunpack.c.h.b16 %v148
    %v259 = vunpack.c.l.b16 %v149
    %v260 = vunpack.c.h.b16 %v149
    %v261 = vunpack.c.l.b16 %v150
    %v262 = vunpack.c.h.b16 %v150
    %v263 = vunpack.c.l.b16 %v151
    %v264 = vunpack.c.h.b16 %v151
    %v265 = vunpack.c.l.b16 %v152
    %v266 = vunpack.c.h.b16 %v152
    %v267 = vunpack.c.l.b16 %v153
    %v268 = vunpack.c.h.b16 %v153
    %v269 = vunpack.c.l.b16 %v154
    %v270 = vunpack.c.h.b16 %v154
    %v271 = vunpack.c.l.b16 %v155
    %v272 = vunpack.c.h.b16 %v155
    %v273 = vunpack.c.l.b16 %v156
    %v274 = vunpack.c.h.b16 %v156
    %v275 = vunpack.c.l.b16 %v157
    %v276 = vunpack.c.h.b16 %v157
    %v277 = vunpack.c.l.b16 %v158
    %v278 = vunpack.c.h.b16 %v158
    %v279 = vpack.c.b16 %v219, %v215
    %v280 = vpack.c.b16 %v220, %v216
    %v281 = vpack.c.b16 %v221, %v217
    %v282 = vpack.c.b16 %v222, %v218
    %v283 = vpack.c.b16 %v227, %v223
    %v284 = vpack.c.b16 %v228, %v224
    %v285 = vpack.c.b16 %v229, %v225
    %v286 = vpack.c.b16 %v230, %v226
    %v287 = vpack.c.b16 %v235, %v231
    %v288 = vpack.c.b16 %v236, %v232
    %v289 = vpack.c.b16 %v237, %v233
    %v290 = vpack.c.b16 %v238, %v234
    %v291 = vpack.c.b16 %v243, %v239
    %v292 = vpack.c.b16 %v244, %v240
    %v293 = vpack.c.b16 %v245, %v241
    %v294 = vpack.c.b16 %v246, %v242
    %v295 = vpack.c.b16 %v251, %v247
    %v296 = vpack.c.b16 %v252, %v248
    %v297 = vpack.c.b16 %v253, %v249
    %v298 = vpack.c.b16 %v254, %v250
    %v299 = vpack.c.b16 %v259, %v255
    %v300 = vpack.c.b16 %v260, %v256
    %v301 = vpack.c.b16 %v261, %v257
    %v302 = vpack.c.b16 %v262, %v258
    %v303 = vpack.c.b16 %v267, %v263
    %v304 = vpack.c.b16 %v268, %v264
    %v305 = vpack.c.b16 %v269, %v265
    %v306 = vpack.c.b16 %v270, %v266
    %v307 = vpack.c.b16 %v275, %v271
    %v308 = vpack.c.b16 %v276, %v272
    %v309 = vpack.c.b16 %v277, %v273
    %v310 = vpack.c.b16 %v278, %v274
    %343 = vmatprep.subr.bf16.mxu0 %v280
    %344 = vmatpush1.bf16.msra.mxu0 %v279
    %345 = vmatprep.subr.bf16.mxu0 %v284
    %346 = vmatpush1.bf16.msra.mxu0 %v283
    %347 = vmatprep.subr.bf16.mxu0 %v288
    %348 = vmatpush1.bf16.msra.mxu0 %v287
    %349 = vmatprep.subr.bf16.mxu0 %v292
    %350 = vmatpush1.bf16.msra.mxu0 %v291
    %351 = vmatprep.subr.bf16.mxu0 %v296
    %352 = vmatpush1.bf16.msra.mxu0 %v295
    %353 = vmatprep.subr.bf16.mxu0 %v300
    %354 = vmatpush1.bf16.msra.mxu0 %v299
    %355 = vmatprep.subr.bf16.mxu0 %v304
    %356 = vmatpush1.bf16.msra.mxu0 %v303
    %357 = vmatprep.subr.bf16.mxu0 %v308
    %358 = vmatpush1.bf16.msra.mxu0 %v307
    %359 = vmatprep.subr.bf16.mxu0 0
    %360 = vmatpush1.bf16.msra.mxu0 0
    %361 = vmatprep.subr.bf16.mxu0 0
    %362 = vmatpush1.bf16.msra.mxu0 0
    %363 = vmatprep.subr.bf16.mxu0 0
    %364 = vmatpush1.bf16.msra.mxu0 0
    %365 = vmatprep.subr.bf16.mxu0 0
    %366 = vmatpush1.bf16.msra.mxu0 0
    %367 = vmatprep.subr.bf16.mxu0 0
    %368 = vmatpush1.bf16.msra.mxu0 0
    %369 = vmatprep.subr.bf16.mxu0 0
    %370 = vmatpush1.bf16.msra.mxu0 0
    %371 = vmatprep.subr.bf16.mxu0 0
    %372 = vmatpush1.bf16.msra.mxu0 0
    %373 = vmatprep.subr.bf16.mxu0 0
    %374 = vmatpush1.bf16.msra.mxu0 0
    %375 = vmatprep.mubr.bf16.mxu0 0
    %376 = vmatmul.mubr.bf16.gmra.mrb[0].mxu0 %v175
    %v377 = vpop.f32.mrb[0].mxu0
    %v378 = vadd.f32 0.0, %v377
    %v379 = vpop.f32.mrb[0].mxu0
    %v380 = vadd.f32 0.0, %v379
    %v381 = vpop.f32.mrb[0].mxu0
    %v382 = vadd.f32 0.0, %v381
    %v383 = vpop.f32.mrb[0].mxu0
    %v384 = vadd.f32 0.0, %v383
    %385 = vmatprep.mubr.bf16.mxu0 0
    %386 = vmatmul.mubr.bf16.gmra.mrb[0].mxu0 %v176
    %v387 = vpop.f32.mrb[0].mxu0
    %v388 = vadd.f32 0.0, %v387
    %v389 = vpop.f32.mrb[0].mxu0
    %v390 = vadd.f32 0.0, %v389
    %v391 = vpop.f32.mrb[0].mxu0
    %v392 = vadd.f32 0.0, %v391
    %v393 = vpop.f32.mrb[0].mxu0
    %v394 = vadd.f32 0.0, %v393
    %395 = vmatprep.mubr.bf16.mxu0 0
    %396 = vmatmul.mubr.bf16.gmra.mrb[0].mxu0 %v177
    %v397 = vpop.f32.mrb[0].mxu0
    %v398 = vadd.f32 0.0, %v397
    %v399 = vpop.f32.mrb[0].mxu0
    %v400 = vadd.f32 0.0, %v399
    %v401 = vpop.f32.mrb[0].mxu0
    %v402 = vadd.f32 0.0, %v401
    %v403 = vpop.f32.mrb[0].mxu0
    %v404 = vadd.f32 0.0, %v403
    %405 = vmatprep.mubr.bf16.mxu0 0
    %406 = vmatmul.mubr.bf16.gmra.mrb[0].mxu0 %v178
    %v407 = vpop.f32.mrb[0].mxu0
    %v408 = vadd.f32 0.0, %v407
    %v409 = vpop.f32.mrb[0].mxu0
    %v410 = vadd.f32 0.0, %v409
    %v411 = vpop.f32.mrb[0].mxu0
    %v412 = vadd.f32 0.0, %v411
    %v413 = vpop.f32.mrb[0].mxu0
    %v414 = vadd.f32 0.0, %v413
    %415 = vdwg.mxu0
    %416 = vmatprep.subr.bf16.mxu0 %v282
    %417 = vmatpush1.bf16.msra.mxu0 %v281
    %418 = vmatprep.subr.bf16.mxu0 %v286
    %419 = vmatpush1.bf16.msra.mxu0 %v285
    %420 = vmatprep.subr.bf16.mxu0 %v290
    %421 = vmatpush1.bf16.msra.mxu0 %v289
    %422 = vmatprep.subr.bf16.mxu0 %v294
    %423 = vmatpush1.bf16.msra.mxu0 %v293
    %424 = vmatprep.subr.bf16.mxu0 %v298
    %425 = vmatpush1.bf16.msra.mxu0 %v297
    %426 = vmatprep.subr.bf16.mxu0 %v302
    %427 = vmatpush1.bf16.msra.mxu0 %v301
    %428 = vmatprep.subr.bf16.mxu0 %v306
    %429 = vmatpush1.bf16.msra.mxu0 %v305
    %430 = vmatprep.subr.bf16.mxu0 %v310
    %431 = vmatpush1.bf16.msra.mxu0 %v309
    %432 = vmatprep.subr.bf16.mxu0 0
    %433 = vmatpush1.bf16.msra.mxu0 0
    %434 = vmatprep.subr.bf16.mxu0 0
    %435 = vmatpush1.bf16.msra.mxu0 0
    %436 = vmatprep.subr.bf16.mxu0 0
    %437 = vmatpush1.bf16.msra.mxu0 0
    %438 = vmatprep.subr.bf16.mxu0 0
    %439 = vmatpush1.bf16.msra.mxu0 0
    %440 = vmatprep.subr.bf16.mxu0 0
    %441 = vmatpush1.bf16.msra.mxu0 0
    %442 = vmatprep.subr.bf16.mxu0 0
    %443 = vmatpush1.bf16.msra.mxu0 0
    %444 = vmatprep.subr.bf16.mxu0 0
    %445 = vmatpush1.bf16.msra.mxu0 0
    %446 = vmatprep.subr.bf16.mxu0 0
    %447 = vmatpush1.bf16.msra.mxu0 0
    %448 = vmatprep.mubr.bf16.mxu0 0
    %449 = vmatmul.mubr.bf16.gmra.mrb[0].mxu0 %v175
    %v450 = vpop.f32.mrb[0].mxu0
    %v451 = vadd.f32 0.0, %v450
    %v452 = vpop.f32.mrb[0].mxu0
    %v453 = vadd.f32 0.0, %v452
    %v454 = vpop.f32.mrb[0].mxu0
    %v455 = vadd.f32 0.0, %v454
    %v456 = vpop.f32.mrb[0].mxu0
    %v457 = vadd.f32 0.0, %v456
    %458 = vmatprep.mubr.bf16.mxu0 0
    %459 = vmatmul.mubr.bf16.gmra.mrb[0].mxu0 %v176
    %v460 = vpop.f32.mrb[0].mxu0
    %v461 = vadd.f32 0.0, %v460
    %v462 = vpop.f32.mrb[0].mxu0
    %v463 = vadd.f32 0.0, %v462
    %v464 = vpop.f32.mrb[0].mxu0
    %v465 = vadd.f32 0.0, %v464
    %v466 = vpop.f32.mrb[0].mxu0
    %v467 = vadd.f32 0.0, %v466
    %468 = vmatprep.mubr.bf16.mxu0 0
    %469 = vmatmul.mubr.bf16.gmra.mrb[0].mxu0 %v177
    %v470 = vpop.f32.mrb[0].mxu0
    %v471 = vadd.f32 0.0, %v470
    %v472 = vpop.f32.mrb[0].mxu0
    %v473 = vadd.f32 0.0, %v472
    %v474 = vpop.f32.mrb[0].mxu0
    %v475 = vadd.f32 0.0, %v474
    %v476 = vpop.f32.mrb[0].mxu0
    %v477 = vadd.f32 0.0, %v476
    %478 = vmatprep.mubr.bf16.mxu0 0
    %479 = vmatmul.mubr.bf16.gmra.mrb[0].mxu0 %v178
    %v480 = vpop.f32.mrb[0].mxu0
    %v481 = vadd.f32 0.0, %v480
    %v482 = vpop.f32.mrb[0].mxu0
    %v483 = vadd.f32 0.0, %v482
    %v484 = vpop.f32.mrb[0].mxu0
    %v485 = vadd.f32 0.0, %v484
    %v486 = vpop.f32.mrb[0].mxu0
    %v487 = vadd.f32 0.0, %v486
    %488 = vdwg.mxu0
    %v489 = vld [vmem:[%s2] sm:$0xf]
    %v490 = vld [vmem:[%s3] sm:$0xf]
    %v491 = vadd.f32 %v378, %v382
    %v492 = vadd.f32 %v491, %v388
    %v493 = vadd.f32 %v492, %v392
    %v494 = vadd.f32 %v493, %v398
    %v495 = vadd.f32 %v494, %v402
    %v496 = vadd.f32 %v495, %v408
    %v497 = vadd.f32 %v496, %v412
    %v498 = vrot.slane %v497, 4
    %v499 = vadd.f32 %v497, %v498
    %v500 = vrot.slane %v499, 2
    %v501 = vadd.f32 %v499, %v500
    %v502 = vrot.slane %v501, 1
    %v503 = vadd.f32 %v501, %v502
    %v504 = vadd.f32 %v380, %v384
    %v505 = vadd.f32 %v504, %v390
    %v506 = vadd.f32 %v505, %v394
    %v507 = vadd.f32 %v506, %v400
    %v508 = vadd.f32 %v507, %v404
    %v509 = vadd.f32 %v508, %v410
    %v510 = vadd.f32 %v509, %v414
    %v511 = vrot.slane %v510, 4
    %v512 = vadd.f32 %v510, %v511
    %v513 = vrot.slane %v512, 2
    %v514 = vadd.f32 %v512, %v513
    %v515 = vrot.slane %v514, 1
    %v516 = vadd.f32 %v514, %v515
    %v517 = vadd.f32 %v451, %v455
    %v518 = vadd.f32 %v517, %v461
    %v519 = vadd.f32 %v518, %v465
    %v520 = vadd.f32 %v519, %v471
    %v521 = vadd.f32 %v520, %v475
    %v522 = vadd.f32 %v521, %v481
    %v523 = vadd.f32 %v522, %v485
    %v524 = vrot.slane %v523, 4
    %v525 = vadd.f32 %v523, %v524
    %v526 = vrot.slane %v525, 2
    %v527 = vadd.f32 %v525, %v526
    %v528 = vrot.slane %v527, 1
    %v529 = vadd.f32 %v527, %v528
    %v530 = vadd.f32 %v453, %v457
    %v531 = vadd.f32 %v530, %v463
    %v532 = vadd.f32 %v531, %v467
    %v533 = vadd.f32 %v532, %v473
    %v534 = vadd.f32 %v533, %v477
    %v535 = vadd.f32 %v534, %v483
    %v536 = vadd.f32 %v535, %v487
    %v537 = vrot.slane %v536, 4
    %v538 = vadd.f32 %v536, %v537
    %v539 = vrot.slane %v538, 2
    %v540 = vadd.f32 %v538, %v539
    %v541 = vrot.slane %v540, 1
    %v542 = vadd.f32 %v540, %v541
    %v543 = vmul.f32 %v378, %v378
    %v544 = vmul.f32 %v380, %v380
    %v545 = vmul.f32 %v451, %v451
    %v546 = vmul.f32 %v453, %v453
    %v547 = vmul.f32 %v382, %v382
    %v548 = vmul.f32 %v384, %v384
    %v549 = vmul.f32 %v455, %v455
    %v550 = vmul.f32 %v457, %v457
    %v551 = vmul.f32 %v388, %v388
    %v552 = vmul.f32 %v390, %v390
    %v553 = vmul.f32 %v461, %v461
    %v554 = vmul.f32 %v463, %v463
    %v555 = vmul.f32 %v392, %v392
    %v556 = vmul.f32 %v394, %v394
    %v557 = vmul.f32 %v465, %v465
    %v558 = vmul.f32 %v467, %v467
    %v559 = vmul.f32 %v398, %v398
    %v560 = vmul.f32 %v400, %v400
    %v561 = vmul.f32 %v471, %v471
    %v562 = vmul.f32 %v473, %v473
    %v563 = vmul.f32 %v402, %v402
    %v564 = vmul.f32 %v404, %v404
    %v565 = vmul.f32 %v475, %v475
    %v566 = vmul.f32 %v477, %v477
    %v567 = vmul.f32 %v408, %v408
    %v568 = vmul.f32 %v410, %v410
    %v569 = vmul.f32 %v481, %v481
    %v570 = vmul.f32 %v483, %v483
    %v571 = vmul.f32 %v412, %v412
    %v572 = vmul.f32 %v414, %v414
    %v573 = vmul.f32 %v485, %v485
    %v574 = vmul.f32 %v487, %v487
    %v575 = vadd.f32 %v543, %v547
    %v576 = vadd.f32 %v575, %v551
    %v577 = vadd.f32 %v576, %v555
    %v578 = vadd.f32 %v577, %v559
    %v579 = vadd.f32 %v578, %v563
    %v580 = vadd.f32 %v579, %v567
    %v581 = vadd.f32 %v580, %v571
    %v582 = vrot.slane %v581, 4
    %v583 = vadd.f32 %v581, %v582
    %v584 = vrot.slane %v583, 2
    %v585 = vadd.f32 %v583, %v584
    %v586 = vrot.slane %v585, 1
    %v587 = vadd.f32 %v585, %v586
    %v588 = vadd.f32 %v544, %v548
    %v589 = vadd.f32 %v588, %v552
    %v590 = vadd.f32 %v589, %v556
    %v591 = vadd.f32 %v590, %v560
    %v592 = vadd.f32 %v591, %v564
    %v593 = vadd.f32 %v592, %v568
    %v594 = vadd.f32 %v593, %v572
    %v595 = vrot.slane %v594, 4
    %v596 = vadd.f32 %v594, %v595
    %v597 = vrot.slane %v596, 2
    %v598 = vadd.f32 %v596, %v597
    %v599 = vrot.slane %v598, 1
    %v600 = vadd.f32 %v598, %v599
    %v601 = vadd.f32 %v545, %v549
    %v602 = vadd.f32 %v601, %v553
    %v603 = vadd.f32 %v602, %v557
    %v604 = vadd.f32 %v603, %v561
    %v605 = vadd.f32 %v604, %v565
    %v606 = vadd.f32 %v605, %v569
    %v607 = vadd.f32 %v606, %v573
    %v608 = vrot.slane %v607, 4
    %v609 = vadd.f32 %v607, %v608
    %v610 = vrot.slane %v609, 2
    %v611 = vadd.f32 %v609, %v610
    %v612 = vrot.slane %v611, 1
    %v613 = vadd.f32 %v611, %v612
    %v614 = vadd.f32 %v546, %v550
    %v615 = vadd.f32 %v614, %v554
    %v616 = vadd.f32 %v615, %v558
    %v617 = vadd.f32 %v616, %v562
    %v618 = vadd.f32 %v617, %v566
    %v619 = vadd.f32 %v618, %v570
    %v620 = vadd.f32 %v619, %v574
    %v621 = vrot.slane %v620, 4
    %v622 = vadd.f32 %v620, %v621
    %v623 = vrot.slane %v622, 2
    %v624 = vadd.f32 %v622, %v623
    %v625 = vrot.slane %v624, 1
    %v626 = vadd.f32 %v624, %v625
    %v627 = vmul.f32 %v503, 0.015625
    %v628 = vmul.f32 %v516, 0.015625
    %v629 = vmul.f32 %v529, 0.015625
    %v630 = vmul.f32 %v542, 0.015625
    %v631 = vmul.f32 %v587, 0.015625
    %v632 = vmul.f32 %v600, 0.015625
    %v633 = vmul.f32 %v613, 0.015625
    %v634 = vmul.f32 %v626, 0.015625
    %v635 = vmul.f32 %v627, %v627
    %v636 = vmul.f32 %v628, %v628
    %v637 = vmul.f32 %v629, %v629
    %v638 = vmul.f32 %v630, %v630
    %v639 = vsub.f32 %v631, %v635
    %v640 = vsub.f32 %v632, %v636
    %v641 = vsub.f32 %v633, %v637
    %v642 = vsub.f32 %v634, %v638
    %v643 = vmax.f32 %v639, 0.0
    %v644 = vmax.f32 %v640, 0.0
    %v645 = vmax.f32 %v641, 0.0
    %v646 = vmax.f32 %v642, 0.0
    %v647 = vadd.f32 %v643, 1e-05
    %v648 = vadd.f32 %v644, 1e-05
    %v649 = vadd.f32 %v645, 1e-05
    %v650 = vadd.f32 %v646, 1e-05
    %v651 = vrsqrt.pop %v647
    %v652 = vrsqrt.pop %v648
    %v653 = vrsqrt.pop %v649
    %v654 = vrsqrt.pop %v650
    %v659 = vcombine.low %v651, %v652
    %v660 = vcombine.low %v653, %v654
    %v662 = vunpack.c.l.s4 1966171168
    %v663 = vunpack.c.0.s8 %v662
    %v664 = vlaneseq
    %v665 = vshrl.u32 %v664, 7
    %v666 = vsub.s32 %v663, %v665
    %v667 = vrot.slane %v659, %v666
    %v669 = vunpack.c.l.s4 1966171168
    %v670 = vunpack.c.0.s8 %v669
    %v671 = vlaneseq
    %v672 = vshrl.u32 %v671, 7
    %v673 = vsub.s32 %v670, %v672
    %v674 = vrot.slane %v660, %v673
    %v675 = vcombine.low %v667, %v674
    %v677 = vunpack.c.l.s4 1966171168
    %v678 = vunpack.c.0.s8 %v677
    %v679 = vlaneseq
    %v680 = vshrl.u32 %v679, 7
    %v681 = vsub.s32 %v678, %v680
    %v682 = vrot.slane %v675, %v681
    %v684 = vmul.f32 %v489, %v682
    %v686 = vlaneseq
    %v687 = vshrl.u32 %v686, 7
    %v688 = vsub.s32 0, %v687
    %v689 = vrot.slane %v684, %v688
    %v690 = vlaneseq
    %v691 = vshrl.u32 %v690, 7
    %v692 = vsub.s32 1, %v691
    %v693 = vrot.slane %v684, %v692
    %v694 = vlaneseq
    %v695 = vshrl.u32 %v694, 7
    %v696 = vsub.s32 2, %v695
    %v697 = vrot.slane %v684, %v696
    %v698 = vlaneseq
    %v699 = vshrl.u32 %v698, 7
    %v700 = vsub.s32 3, %v699
    %v701 = vrot.slane %v684, %v700
    %v706 = vmul.f32 %v627, %v689
    %v707 = vmul.f32 %v628, %v693
    %v708 = vmul.f32 %v629, %v697
    %v709 = vmul.f32 %v630, %v701
    %v714 = vcombine.low %v706, %v707
    %v715 = vcombine.low %v708, %v709
    %v717 = vunpack.c.l.s4 1966171168
    %v718 = vunpack.c.0.s8 %v717
    %v719 = vlaneseq
    %v720 = vshrl.u32 %v719, 7
    %v721 = vsub.s32 %v718, %v720
    %v722 = vrot.slane %v714, %v721
    %v724 = vunpack.c.l.s4 1966171168
    %v725 = vunpack.c.0.s8 %v724
    %v726 = vlaneseq
    %v727 = vshrl.u32 %v726, 7
    %v728 = vsub.s32 %v725, %v727
    %v729 = vrot.slane %v715, %v728
    %v730 = vcombine.low %v722, %v729
    %v732 = vunpack.c.l.s4 1966171168
    %v733 = vunpack.c.0.s8 %v732
    %v734 = vlaneseq
    %v735 = vshrl.u32 %v734, 7
    %v736 = vsub.s32 %v733, %v735
    %v737 = vrot.slane %v730, %v736
    %v739 = vsub.f32 %v490, %v737
    %v740 = vmul.f32 %v378, %v689
    %v741 = vmul.f32 %v380, %v693
    %v742 = vmul.f32 %v451, %v697
    %v743 = vmul.f32 %v453, %v701
    %v744 = vmul.f32 %v382, %v689
    %v745 = vmul.f32 %v384, %v693
    %v746 = vmul.f32 %v455, %v697
    %v747 = vmul.f32 %v457, %v701
    %v748 = vmul.f32 %v388, %v689
    %v749 = vmul.f32 %v390, %v693
    %v750 = vmul.f32 %v461, %v697
    %v751 = vmul.f32 %v463, %v701
    %v752 = vmul.f32 %v392, %v689
    %v753 = vmul.f32 %v394, %v693
    %v754 = vmul.f32 %v465, %v697
    %v755 = vmul.f32 %v467, %v701
    %v756 = vmul.f32 %v398, %v689
    %v757 = vmul.f32 %v400, %v693
    %v758 = vmul.f32 %v471, %v697
    %v759 = vmul.f32 %v473, %v701
    %v760 = vmul.f32 %v402, %v689
    %v761 = vmul.f32 %v404, %v693
    %v762 = vmul.f32 %v475, %v697
    %v763 = vmul.f32 %v477, %v701
    %v764 = vmul.f32 %v408, %v689
    %v765 = vmul.f32 %v410, %v693
    %v766 = vmul.f32 %v481, %v697
    %v767 = vmul.f32 %v483, %v701
    %v768 = vmul.f32 %v412, %v689
    %v769 = vmul.f32 %v414, %v693
    %v770 = vmul.f32 %v485, %v697
    %v771 = vmul.f32 %v487, %v701
    %v773 = vlaneseq
    %v774 = vshrl.u32 %v773, 7
    %v775 = vsub.s32 0, %v774
    %v776 = vrot.slane %v739, %v775
    %v777 = vlaneseq
    %v778 = vshrl.u32 %v777, 7
    %v779 = vsub.s32 1, %v778
    %v780 = vrot.slane %v739, %v779
    %v781 = vlaneseq
    %v782 = vshrl.u32 %v781, 7
    %v783 = vsub.s32 2, %v782
    %v784 = vrot.slane %v739, %v783
    %v785 = vlaneseq
    %v786 = vshrl.u32 %v785, 7
    %v787 = vsub.s32 3, %v786
    %v788 = vrot.slane %v739, %v787
    %v793 = vadd.f32 %v740, %v776
    %v794 = vadd.f32 %v741, %v780
    %v795 = vadd.f32 %v742, %v784
    %v796 = vadd.f32 %v743, %v788
    %v797 = vadd.f32 %v744, %v776
    %v798 = vadd.f32 %v745, %v780
    %v799 = vadd.f32 %v746, %v784
    %v800 = vadd.f32 %v747, %v788
    %v801 = vadd.f32 %v748, %v776
    %v802 = vadd.f32 %v749, %v780
    %v803 = vadd.f32 %v750, %v784
    %v804 = vadd.f32 %v751, %v788
    %v805 = vadd.f32 %v752, %v776
    %v806 = vadd.f32 %v753, %v780
    %v807 = vadd.f32 %v754, %v784
    %v808 = vadd.f32 %v755, %v788
    %v809 = vadd.f32 %v756, %v776
    %v810 = vadd.f32 %v757, %v780
    %v811 = vadd.f32 %v758, %v784
    %v812 = vadd.f32 %v759, %v788
    %v813 = vadd.f32 %v760, %v776
    %v814 = vadd.f32 %v761, %v780
    %v815 = vadd.f32 %v762, %v784
    %v816 = vadd.f32 %v763, %v788
    %v817 = vadd.f32 %v764, %v776
    %v818 = vadd.f32 %v765, %v780
    %v819 = vadd.f32 %v766, %v784
    %v820 = vadd.f32 %v767, %v788
    %v821 = vadd.f32 %v768, %v776
    %v822 = vadd.f32 %v769, %v780
    %v823 = vadd.f32 %v770, %v784
    %v824 = vadd.f32 %v771, %v788
    %v825 = vmax.f32 %v793, 0.0
    %v826 = vmax.f32 %v794, 0.0
    %v827 = vmax.f32 %v795, 0.0
    %v828 = vmax.f32 %v796, 0.0
    %v829 = vmax.f32 %v797, 0.0
    %v830 = vmax.f32 %v798, 0.0
    %v831 = vmax.f32 %v799, 0.0
    %v832 = vmax.f32 %v800, 0.0
    %v833 = vmax.f32 %v801, 0.0
    %v834 = vmax.f32 %v802, 0.0
    %v835 = vmax.f32 %v803, 0.0
    %v836 = vmax.f32 %v804, 0.0
    %v837 = vmax.f32 %v805, 0.0
    %v838 = vmax.f32 %v806, 0.0
    %v839 = vmax.f32 %v807, 0.0
    %v840 = vmax.f32 %v808, 0.0
    %v841 = vmax.f32 %v809, 0.0
    %v842 = vmax.f32 %v810, 0.0
    %v843 = vmax.f32 %v811, 0.0
    %v844 = vmax.f32 %v812, 0.0
    %v845 = vmax.f32 %v813, 0.0
    %v846 = vmax.f32 %v814, 0.0
    %v847 = vmax.f32 %v815, 0.0
    %v848 = vmax.f32 %v816, 0.0
    %v849 = vmax.f32 %v817, 0.0
    %v850 = vmax.f32 %v818, 0.0
    %v851 = vmax.f32 %v819, 0.0
    %v852 = vmax.f32 %v820, 0.0
    %v853 = vmax.f32 %v821, 0.0
    %v854 = vmax.f32 %v822, 0.0
    %v855 = vmax.f32 %v823, 0.0
    %v856 = vmax.f32 %v824, 0.0
    %v857 = vpack.c.bf16 %v829, %v825
    %v858 = vpack.c.bf16 %v830, %v826
    %v859 = vpack.c.bf16 %v831, %v827
    %v860 = vpack.c.bf16 %v832, %v828
    %v861 = vpack.c.bf16 %v837, %v833
    %v862 = vpack.c.bf16 %v838, %v834
    %v863 = vpack.c.bf16 %v839, %v835
    %v864 = vpack.c.bf16 %v840, %v836
    %v865 = vpack.c.bf16 %v845, %v841
    %v866 = vpack.c.bf16 %v846, %v842
    %v867 = vpack.c.bf16 %v847, %v843
    %v868 = vpack.c.bf16 %v848, %v844
    %v869 = vpack.c.bf16 %v853, %v849
    %v870 = vpack.c.bf16 %v854, %v850
    %v871 = vpack.c.bf16 %v855, %v851
    %v872 = vpack.c.bf16 %v856, %v852
    %v873 = vld [vmem:[#allocation4] sm:$0xff]
    %v874 = vld [vmem:[#allocation4 + $0x8] sm:$0xff]
    %v875 = vld [vmem:[#allocation4 + $0x10] sm:$0xff]
    %v876 = vld [vmem:[#allocation4 + $0x18] sm:$0xff]
    %v877 = vld [vmem:[#allocation4 + $0x20] sm:$0xff]
    %v878 = vld [vmem:[#allocation4 + $0x28] sm:$0xff]
    %v879 = vld [vmem:[#allocation4 + $0x30] sm:$0xff]
    %v880 = vld [vmem:[#allocation4 + $0x38] sm:$0xff]
    %v881 = vld [vmem:[#allocation4 + $0x40] sm:$0xff]
    %v882 = vld [vmem:[#allocation4 + $0x48] sm:$0xff]
    %v883 = vld [vmem:[#allocation4 + $0x50] sm:$0xff]
    %v884 = vld [vmem:[#allocation4 + $0x58] sm:$0xff]
    %v885 = vld [vmem:[#allocation4 + $0x60] sm:$0xff]
    %v886 = vld [vmem:[#allocation4 + $0x68] sm:$0xff]
    %v887 = vld [vmem:[#allocation4 + $0x70] sm:$0xff]
    %v888 = vld [vmem:[#allocation4 + $0x78] sm:$0xff]
    %v889 = vld [vmem:[#allocation4 + $0x80] sm:$0xff]
    %v890 = vld [vmem:[#allocation4 + $0x88] sm:$0xff]
    %v891 = vld [vmem:[#allocation4 + $0x90] sm:$0xff]
    %v892 = vld [vmem:[#allocation4 + $0x98] sm:$0xff]
    %v893 = vld [vmem:[#allocation4 + $0xa0] sm:$0xff]
    %v894 = vld [vmem:[#allocation4 + $0xa8] sm:$0xff]
    %v895 = vld [vmem:[#allocation4 + $0xb0] sm:$0xff]
    %v896 = vld [vmem:[#allocation4 + $0xb8] sm:$0xff]
    %v897 = vld [vmem:[#allocation4 + $0xc0] sm:$0xff]
    %v898 = vld [vmem:[#allocation4 + $0xc8] sm:$0xff]
    %v899 = vld [vmem:[#allocation4 + $0xd0] sm:$0xff]
    %v900 = vld [vmem:[#allocation4 + $0xd8] sm:$0xff]
    %v901 = vld [vmem:[#allocation4 + $0xe0] sm:$0xff]
    %v902 = vld [vmem:[#allocation4 + $0xe8] sm:$0xff]
    %v903 = vld [vmem:[#allocation4 + $0xf0] sm:$0xff]
    %v904 = vld [vmem:[#allocation4 + $0xf8] sm:$0xff]
    %v905 = vld [vmem:[#allocation4 + $0x100] sm:$0xff]
    %v906 = vld [vmem:[#allocation4 + $0x108] sm:$0xff]
    %v907 = vld [vmem:[#allocation4 + $0x110] sm:$0xff]
    %v908 = vld [vmem:[#allocation4 + $0x118] sm:$0xff]
    %v909 = vld [vmem:[#allocation4 + $0x120] sm:$0xff]
    %v910 = vld [vmem:[#allocation4 + $0x128] sm:$0xff]
    %v911 = vld [vmem:[#allocation4 + $0x130] sm:$0xff]
    %v912 = vld [vmem:[#allocation4 + $0x138] sm:$0xff]
    %v913 = vld [vmem:[#allocation4 + $0x140] sm:$0xff]
    %v914 = vld [vmem:[#allocation4 + $0x148] sm:$0xff]
    %v915 = vld [vmem:[#allocation4 + $0x150] sm:$0xff]
    %v916 = vld [vmem:[#allocation4 + $0x158] sm:$0xff]
    %v917 = vld [vmem:[#allocation4 + $0x160] sm:$0xff]
    %v918 = vld [vmem:[#allocation4 + $0x168] sm:$0xff]
    %v919 = vld [vmem:[#allocation4 + $0x170] sm:$0xff]
    %v920 = vld [vmem:[#allocation4 + $0x178] sm:$0xff]
    %v921 = vld [vmem:[#allocation4 + $0x180] sm:$0xff]
    %v922 = vld [vmem:[#allocation4 + $0x188] sm:$0xff]
    %v923 = vld [vmem:[#allocation4 + $0x190] sm:$0xff]
    %v924 = vld [vmem:[#allocation4 + $0x198] sm:$0xff]
    %v925 = vld [vmem:[#allocation4 + $0x1a0] sm:$0xff]
    %v926 = vld [vmem:[#allocation4 + $0x1a8] sm:$0xff]
    %v927 = vld [vmem:[#allocation4 + $0x1b0] sm:$0xff]
    %v928 = vld [vmem:[#allocation4 + $0x1b8] sm:$0xff]
    %v929 = vld [vmem:[#allocation4 + $0x1c0] sm:$0xff]
    %v930 = vld [vmem:[#allocation4 + $0x1c8] sm:$0xff]
    %v931 = vld [vmem:[#allocation4 + $0x1d0] sm:$0xff]
    %v932 = vld [vmem:[#allocation4 + $0x1d8] sm:$0xff]
    %v933 = vld [vmem:[#allocation4 + $0x1e0] sm:$0xff]
    %v934 = vld [vmem:[#allocation4 + $0x1e8] sm:$0xff]
    %v935 = vld [vmem:[#allocation4 + $0x1f0] sm:$0xff]
    %v936 = vld [vmem:[#allocation4 + $0x1f8] sm:$0xff]
    %v937 = vld [vmem:[#allocation4 + $0x200] sm:$0xff]
    %v938 = vld [vmem:[#allocation4 + $0x208] sm:$0xff]
    %v939 = vld [vmem:[#allocation4 + $0x210] sm:$0xff]
    %v940 = vld [vmem:[#allocation4 + $0x218] sm:$0xff]
    %v941 = vld [vmem:[#allocation4 + $0x220] sm:$0xff]
    %v942 = vld [vmem:[#allocation4 + $0x228] sm:$0xff]
    %v943 = vld [vmem:[#allocation4 + $0x230] sm:$0xff]
    %v944 = vld [vmem:[#allocation4 + $0x238] sm:$0xff]
    %v945 = vld [vmem:[#allocation4 + $0x240] sm:$0xff]
    %v946 = vld [vmem:[#allocation4 + $0x248] sm:$0xff]
    %v947 = vld [vmem:[#allocation4 + $0x250] sm:$0xff]
    %v948 = vld [vmem:[#allocation4 + $0x258] sm:$0xff]
    %v949 = vld [vmem:[#allocation4 + $0x260] sm:$0xff]
    %v950 = vld [vmem:[#allocation4 + $0x268] sm:$0xff]
    %v951 = vld [vmem:[#allocation4 + $0x270] sm:$0xff]
    %v952 = vld [vmem:[#allocation4 + $0x278] sm:$0xff]
    %v953 = vld [vmem:[#allocation4 + $0x280] sm:$0xff]
    %v954 = vld [vmem:[#allocation4 + $0x288] sm:$0xff]
    %v955 = vld [vmem:[#allocation4 + $0x290] sm:$0xff]
    %v956 = vld [vmem:[#allocation4 + $0x298] sm:$0xff]
    %v957 = vld [vmem:[#allocation4 + $0x2a0] sm:$0xff]
    %v958 = vld [vmem:[#allocation4 + $0x2a8] sm:$0xff]
    %v959 = vld [vmem:[#allocation4 + $0x2b0] sm:$0xff]
    %v960 = vld [vmem:[#allocation4 + $0x2b8] sm:$0xff]
    %v961 = vld [vmem:[#allocation4 + $0x2c0] sm:$0xff]
    %v962 = vld [vmem:[#allocation4 + $0x2c8] sm:$0xff]
    %v963 = vld [vmem:[#allocation4 + $0x2d0] sm:$0xff]
    %v964 = vld [vmem:[#allocation4 + $0x2d8] sm:$0xff]
    %v965 = vld [vmem:[#allocation4 + $0x2e0] sm:$0xff]
    %v966 = vld [vmem:[#allocation4 + $0x2e8] sm:$0xff]
    %v967 = vld [vmem:[#allocation4 + $0x2f0] sm:$0xff]
    %v968 = vld [vmem:[#allocation4 + $0x2f8] sm:$0xff]
    %v969 = vld [vmem:[#allocation4 + $0x300] sm:$0xff]
    %v970 = vld [vmem:[#allocation4 + $0x308] sm:$0xff]
    %v971 = vld [vmem:[#allocation4 + $0x310] sm:$0xff]
    %v972 = vld [vmem:[#allocation4 + $0x318] sm:$0xff]
    %v973 = vld [vmem:[#allocation4 + $0x320] sm:$0xff]
    %v974 = vld [vmem:[#allocation4 + $0x328] sm:$0xff]
    %v975 = vld [vmem:[#allocation4 + $0x330] sm:$0xff]
    %v976 = vld [vmem:[#allocation4 + $0x338] sm:$0xff]
    %v977 = vld [vmem:[#allocation4 + $0x340] sm:$0xff]
    %v978 = vld [vmem:[#allocation4 + $0x348] sm:$0xff]
    %v979 = vld [vmem:[#allocation4 + $0x350] sm:$0xff]
    %v980 = vld [vmem:[#allocation4 + $0x358] sm:$0xff]
    %v981 = vld [vmem:[#allocation4 + $0x360] sm:$0xff]
    %v982 = vld [vmem:[#allocation4 + $0x368] sm:$0xff]
    %v983 = vld [vmem:[#allocation4 + $0x370] sm:$0xff]
    %v984 = vld [vmem:[#allocation4 + $0x378] sm:$0xff]
    %v985 = vld [vmem:[#allocation4 + $0x380] sm:$0xff]
    %v986 = vld [vmem:[#allocation4 + $0x388] sm:$0xff]
    %v987 = vld [vmem:[#allocation4 + $0x390] sm:$0xff]
    %v988 = vld [vmem:[#allocation4 + $0x398] sm:$0xff]
    %v989 = vld [vmem:[#allocation4 + $0x3a0] sm:$0xff]
    %v990 = vld [vmem:[#allocation4 + $0x3a8] sm:$0xff]
    %v991 = vld [vmem:[#allocation4 + $0x3b0] sm:$0xff]
    %v992 = vld [vmem:[#allocation4 + $0x3b8] sm:$0xff]
    %v993 = vld [vmem:[#allocation4 + $0x3c0] sm:$0xff]
    %v994 = vld [vmem:[#allocation4 + $0x3c8] sm:$0xff]
    %v995 = vld [vmem:[#allocation4 + $0x3d0] sm:$0xff]
    %v996 = vld [vmem:[#allocation4 + $0x3d8] sm:$0xff]
    %v997 = vld [vmem:[#allocation4 + $0x3e0] sm:$0xff]
    %v998 = vld [vmem:[#allocation4 + $0x3e8] sm:$0xff]
    %v999 = vld [vmem:[#allocation4 + $0x3f0] sm:$0xff]
    %v1000 = vld [vmem:[#allocation4 + $0x3f8] sm:$0xff]
    %v1129 = vunpack.c.l.b16 %v873
    %v1130 = vunpack.c.h.b16 %v873
    %v1131 = vunpack.c.l.b16 %v874
    %v1132 = vunpack.c.h.b16 %v874
    %v1133 = vunpack.c.l.b16 %v875
    %v1134 = vunpack.c.h.b16 %v875
    %v1135 = vunpack.c.l.b16 %v876
    %v1136 = vunpack.c.h.b16 %v876
    %v1137 = vunpack.c.l.b16 %v877
    %v1138 = vunpack.c.h.b16 %v877
    %v1139 = vunpack.c.l.b16 %v878
    %v1140 = vunpack.c.h.b16 %v878
    %v1141 = vunpack.c.l.b16 %v879
    %v1142 = vunpack.c.h.b16 %v879
    %v1143 = vunpack.c.l.b16 %v880
    %v1144 = vunpack.c.h.b16 %v880
    %v1145 = vunpack.c.l.b16 %v881
    %v1146 = vunpack.c.h.b16 %v881
    %v1147 = vunpack.c.l.b16 %v882
    %v1148 = vunpack.c.h.b16 %v882
    %v1149 = vunpack.c.l.b16 %v883
    %v1150 = vunpack.c.h.b16 %v883
    %v1151 = vunpack.c.l.b16 %v884
    %v1152 = vunpack.c.h.b16 %v884
    %v1153 = vunpack.c.l.b16 %v885
    %v1154 = vunpack.c.h.b16 %v885
    %v1155 = vunpack.c.l.b16 %v886
    %v1156 = vunpack.c.h.b16 %v886
    %v1157 = vunpack.c.l.b16 %v887
    %v1158 = vunpack.c.h.b16 %v887
    %v1159 = vunpack.c.l.b16 %v888
    %v1160 = vunpack.c.h.b16 %v888
    %v1161 = vunpack.c.l.b16 %v889
    %v1162 = vunpack.c.h.b16 %v889
    %v1163 = vunpack.c.l.b16 %v890
    %v1164 = vunpack.c.h.b16 %v890
    %v1165 = vunpack.c.l.b16 %v891
    %v1166 = vunpack.c.h.b16 %v891
    %v1167 = vunpack.c.l.b16 %v892
    %v1168 = vunpack.c.h.b16 %v892
    %v1169 = vunpack.c.l.b16 %v893
    %v1170 = vunpack.c.h.b16 %v893
    %v1171 = vunpack.c.l.b16 %v894
    %v1172 = vunpack.c.h.b16 %v894
    %v1173 = vunpack.c.l.b16 %v895
    %v1174 = vunpack.c.h.b16 %v895
    %v1175 = vunpack.c.l.b16 %v896
    %v1176 = vunpack.c.h.b16 %v896
    %v1177 = vunpack.c.l.b16 %v897
    %v1178 = vunpack.c.h.b16 %v897
    %v1179 = vunpack.c.l.b16 %v898
    %v1180 = vunpack.c.h.b16 %v898
    %v1181 = vunpack.c.l.b16 %v899
    %v1182 = vunpack.c.h.b16 %v899
    %v1183 = vunpack.c.l.b16 %v900
    %v1184 = vunpack.c.h.b16 %v900
    %v1185 = vunpack.c.l.b16 %v901
    %v1186 = vunpack.c.h.b16 %v901
    %v1187 = vunpack.c.l.b16 %v902
    %v1188 = vunpack.c.h.b16 %v902
    %v1189 = vunpack.c.l.b16 %v903
    %v1190 = vunpack.c.h.b16 %v903
    %v1191 = vunpack.c.l.b16 %v904
    %v1192 = vunpack.c.h.b16 %v904
    %v1193 = vunpack.c.l.b16 %v905
    %v1194 = vunpack.c.h.b16 %v905
    %v1195 = vunpack.c.l.b16 %v906
    %v1196 = vunpack.c.h.b16 %v906
    %v1197 = vunpack.c.l.b16 %v907
    %v1198 = vunpack.c.h.b16 %v907
    %v1199 = vunpack.c.l.b16 %v908
    %v1200 = vunpack.c.h.b16 %v908
    %v1201 = vunpack.c.l.b16 %v909
    %v1202 = vunpack.c.h.b16 %v909
    %v1203 = vunpack.c.l.b16 %v910
    %v1204 = vunpack.c.h.b16 %v910
    %v1205 = vunpack.c.l.b16 %v911
    %v1206 = vunpack.c.h.b16 %v911
    %v1207 = vunpack.c.l.b16 %v912
    %v1208 = vunpack.c.h.b16 %v912
    %v1209 = vunpack.c.l.b16 %v913
    %v1210 = vunpack.c.h.b16 %v913
    %v1211 = vunpack.c.l.b16 %v914
    %v1212 = vunpack.c.h.b16 %v914
    %v1213 = vunpack.c.l.b16 %v915
    %v1214 = vunpack.c.h.b16 %v915
    %v1215 = vunpack.c.l.b16 %v916
    %v1216 = vunpack.c.h.b16 %v916
    %v1217 = vunpack.c.l.b16 %v917
    %v1218 = vunpack.c.h.b16 %v917
    %v1219 = vunpack.c.l.b16 %v918
    %v1220 = vunpack.c.h.b16 %v918
    %v1221 = vunpack.c.l.b16 %v919
    %v1222 = vunpack.c.h.b16 %v919
    %v1223 = vunpack.c.l.b16 %v920
    %v1224 = vunpack.c.h.b16 %v920
    %v1225 = vunpack.c.l.b16 %v921
    %v1226 = vunpack.c.h.b16 %v921
    %v1227 = vunpack.c.l.b16 %v922
    %v1228 = vunpack.c.h.b16 %v922
    %v1229 = vunpack.c.l.b16 %v923
    %v1230 = vunpack.c.h.b16 %v923
    %v1231 = vunpack.c.l.b16 %v924
    %v1232 = vunpack.c.h.b16 %v924
    %v1233 = vunpack.c.l.b16 %v925
    %v1234 = vunpack.c.h.b16 %v925
    %v1235 = vunpack.c.l.b16 %v926
    %v1236 = vunpack.c.h.b16 %v926
    %v1237 = vunpack.c.l.b16 %v927
    %v1238 = vunpack.c.h.b16 %v927
    %v1239 = vunpack.c.l.b16 %v928
    %v1240 = vunpack.c.h.b16 %v928
    %v1241 = vunpack.c.l.b16 %v929
    %v1242 = vunpack.c.h.b16 %v929
    %v1243 = vunpack.c.l.b16 %v930
    %v1244 = vunpack.c.h.b16 %v930
    %v1245 = vunpack.c.l.b16 %v931
    %v1246 = vunpack.c.h.b16 %v931
    %v1247 = vunpack.c.l.b16 %v932
    %v1248 = vunpack.c.h.b16 %v932
    %v1249 = vunpack.c.l.b16 %v933
    %v1250 = vunpack.c.h.b16 %v933
    %v1251 = vunpack.c.l.b16 %v934
    %v1252 = vunpack.c.h.b16 %v934
    %v1253 = vunpack.c.l.b16 %v935
    %v1254 = vunpack.c.h.b16 %v935
    %v1255 = vunpack.c.l.b16 %v936
    %v1256 = vunpack.c.h.b16 %v936
    %v1257 = vunpack.c.l.b16 %v937
    %v1258 = vunpack.c.h.b16 %v937
    %v1259 = vunpack.c.l.b16 %v938
    %v1260 = vunpack.c.h.b16 %v938
    %v1261 = vunpack.c.l.b16 %v939
    %v1262 = vunpack.c.h.b16 %v939
    %v1263 = vunpack.c.l.b16 %v940
    %v1264 = vunpack.c.h.b16 %v940
    %v1265 = vunpack.c.l.b16 %v941
    %v1266 = vunpack.c.h.b16 %v941
    %v1267 = vunpack.c.l.b16 %v942
    %v1268 = vunpack.c.h.b16 %v942
    %v1269 = vunpack.c.l.b16 %v943
    %v1270 = vunpack.c.h.b16 %v943
    %v1271 = vunpack.c.l.b16 %v944
    %v1272 = vunpack.c.h.b16 %v944
    %v1273 = vunpack.c.l.b16 %v945
    %v1274 = vunpack.c.h.b16 %v945
    %v1275 = vunpack.c.l.b16 %v946
    %v1276 = vunpack.c.h.b16 %v946
    %v1277 = vunpack.c.l.b16 %v947
    %v1278 = vunpack.c.h.b16 %v947
    %v1279 = vunpack.c.l.b16 %v948
    %v1280 = vunpack.c.h.b16 %v948
    %v1281 = vunpack.c.l.b16 %v949
    %v1282 = vunpack.c.h.b16 %v949
    %v1283 = vunpack.c.l.b16 %v950
    %v1284 = vunpack.c.h.b16 %v950
    %v1285 = vunpack.c.l.b16 %v951
    %v1286 = vunpack.c.h.b16 %v951
    %v1287 = vunpack.c.l.b16 %v952
    %v1288 = vunpack.c.h.b16 %v952
    %v1289 = vunpack.c.l.b16 %v953
    %v1290 = vunpack.c.h.b16 %v953
    %v1291 = vunpack.c.l.b16 %v954
    %v1292 = vunpack.c.h.b16 %v954
    %v1293 = vunpack.c.l.b16 %v955
    %v1294 = vunpack.c.h.b16 %v955
    %v1295 = vunpack.c.l.b16 %v956
    %v1296 = vunpack.c.h.b16 %v956
    %v1297 = vunpack.c.l.b16 %v957
    %v1298 = vunpack.c.h.b16 %v957
    %v1299 = vunpack.c.l.b16 %v958
    %v1300 = vunpack.c.h.b16 %v958
    %v1301 = vunpack.c.l.b16 %v959
    %v1302 = vunpack.c.h.b16 %v959
    %v1303 = vunpack.c.l.b16 %v960
    %v1304 = vunpack.c.h.b16 %v960
    %v1305 = vunpack.c.l.b16 %v961
    %v1306 = vunpack.c.h.b16 %v961
    %v1307 = vunpack.c.l.b16 %v962
    %v1308 = vunpack.c.h.b16 %v962
    %v1309 = vunpack.c.l.b16 %v963
    %v1310 = vunpack.c.h.b16 %v963
    %v1311 = vunpack.c.l.b16 %v964
    %v1312 = vunpack.c.h.b16 %v964
    %v1313 = vunpack.c.l.b16 %v965
    %v1314 = vunpack.c.h.b16 %v965
    %v1315 = vunpack.c.l.b16 %v966
    %v1316 = vunpack.c.h.b16 %v966
    %v1317 = vunpack.c.l.b16 %v967
    %v1318 = vunpack.c.h.b16 %v967
    %v1319 = vunpack.c.l.b16 %v968
    %v1320 = vunpack.c.h.b16 %v968
    %v1321 = vunpack.c.l.b16 %v969
    %v1322 = vunpack.c.h.b16 %v969
    %v1323 = vunpack.c.l.b16 %v970
    %v1324 = vunpack.c.h.b16 %v970
    %v1325 = vunpack.c.l.b16 %v971
    %v1326 = vunpack.c.h.b16 %v971
    %v1327 = vunpack.c.l.b16 %v972
    %v1328 = vunpack.c.h.b16 %v972
    %v1329 = vunpack.c.l.b16 %v973
    %v1330 = vunpack.c.h.b16 %v973
    %v1331 = vunpack.c.l.b16 %v974
    %v1332 = vunpack.c.h.b16 %v974
    %v1333 = vunpack.c.l.b16 %v975
    %v1334 = vunpack.c.h.b16 %v975
    %v1335 = vunpack.c.l.b16 %v976
    %v1336 = vunpack.c.h.b16 %v976
    %v1337 = vunpack.c.l.b16 %v977
    %v1338 = vunpack.c.h.b16 %v977
    %v1339 = vunpack.c.l.b16 %v978
    %v1340 = vunpack.c.h.b16 %v978
    %v1341 = vunpack.c.l.b16 %v979
    %v1342 = vunpack.c.h.b16 %v979
    %v1343 = vunpack.c.l.b16 %v980
    %v1344 = vunpack.c.h.b16 %v980
    %v1345 = vunpack.c.l.b16 %v981
    %v1346 = vunpack.c.h.b16 %v981
    %v1347 = vunpack.c.l.b16 %v982
    %v1348 = vunpack.c.h.b16 %v982
    %v1349 = vunpack.c.l.b16 %v983
    %v1350 = vunpack.c.h.b16 %v983
    %v1351 = vunpack.c.l.b16 %v984
    %v1352 = vunpack.c.h.b16 %v984
    %v1353 = vunpack.c.l.b16 %v985
    %v1354 = vunpack.c.h.b16 %v985
    %v1355 = vunpack.c.l.b16 %v986
    %v1356 = vunpack.c.h.b16 %v986
    %v1357 = vunpack.c.l.b16 %v987
    %v1358 = vunpack.c.h.b16 %v987
    %v1359 = vunpack.c.l.b16 %v988
    %v1360 = vunpack.c.h.b16 %v988
    %v1361 = vunpack.c.l.b16 %v989
    %v1362 = vunpack.c.h.b16 %v989
    %v1363 = vunpack.c.l.b16 %v990
    %v1364 = vunpack.c.h.b16 %v990
    %v1365 = vunpack.c.l.b16 %v991
    %v1366 = vunpack.c.h.b16 %v991
    %v1367 = vunpack.c.l.b16 %v992
    %v1368 = vunpack.c.h.b16 %v992
    %v1369 = vunpack.c.l.b16 %v993
    %v1370 = vunpack.c.h.b16 %v993
    %v1371 = vunpack.c.l.b16 %v994
    %v1372 = vunpack.c.h.b16 %v994
    %v1373 = vunpack.c.l.b16 %v995
    %v1374 = vunpack.c.h.b16 %v995
    %v1375 = vunpack.c.l.b16 %v996
    %v1376 = vunpack.c.h.b16 %v996
    %v1377 = vunpack.c.l.b16 %v997
    %v1378 = vunpack.c.h.b16 %v997
    %v1379 = vunpack.c.l.b16 %v998
    %v1380 = vunpack.c.h.b16 %v998
    %v1381 = vunpack.c.l.b16 %v999
    %v1382 = vunpack.c.h.b16 %v999
    %v1383 = vunpack.c.l.b16 %v1000
    %v1384 = vunpack.c.h.b16 %v1000
    %v1385 = vpack.c.b16 %v1133, %v1129
    %v1386 = vpack.c.b16 %v1134, %v1130
    %v1387 = vpack.c.b16 %v1135, %v1131
    %v1388 = vpack.c.b16 %v1136, %v1132
    %v1389 = vpack.c.b16 %v1141, %v1137
    %v1390 = vpack.c.b16 %v1142, %v1138
    %v1391 = vpack.c.b16 %v1143, %v1139
    %v1392 = vpack.c.b16 %v1144, %v1140
    %v1393 = vpack.c.b16 %v1149, %v1145
    %v1394 = vpack.c.b16 %v1150, %v1146
    %v1395 = vpack.c.b16 %v1151, %v1147
    %v1396 = vpack.c.b16 %v1152, %v1148
    %v1397 = vpack.c.b16 %v1157, %v1153
    %v1398 = vpack.c.b16 %v1158, %v1154
    %v1399 = vpack.c.b16 %v1159, %v1155
    %v1400 = vpack.c.b16 %v1160, %v1156
    %v1401 = vpack.c.b16 %v1165, %v1161
    %v1402 = vpack.c.b16 %v1166, %v1162
    %v1403 = vpack.c.b16 %v1167, %v1163
    %v1404 = vpack.c.b16 %v1168, %v1164
    %v1405 = vpack.c.b16 %v1173, %v1169
    %v1406 = vpack.c.b16 %v1174, %v1170
    %v1407 = vpack.c.b16 %v1175, %v1171
    %v1408 = vpack.c.b16 %v1176, %v1172
    %v1409 = vpack.c.b16 %v1181, %v1177
    %v1410 = vpack.c.b16 %v1182, %v1178
    %v1411 = vpack.c.b16 %v1183, %v1179
    %v1412 = vpack.c.b16 %v1184, %v1180
    %v1413 = vpack.c.b16 %v1189, %v1185
    %v1414 = vpack.c.b16 %v1190, %v1186
    %v1415 = vpack.c.b16 %v1191, %v1187
    %v1416 = vpack.c.b16 %v1192, %v1188
    %v1417 = vpack.c.b16 %v1197, %v1193
    %v1418 = vpack.c.b16 %v1198, %v1194
    %v1419 = vpack.c.b16 %v1199, %v1195
    %v1420 = vpack.c.b16 %v1200, %v1196
    %v1421 = vpack.c.b16 %v1205, %v1201
    %v1422 = vpack.c.b16 %v1206, %v1202
    %v1423 = vpack.c.b16 %v1207, %v1203
    %v1424 = vpack.c.b16 %v1208, %v1204
    %v1425 = vpack.c.b16 %v1213, %v1209
    %v1426 = vpack.c.b16 %v1214, %v1210
    %v1427 = vpack.c.b16 %v1215, %v1211
    %v1428 = vpack.c.b16 %v1216, %v1212
    %v1429 = vpack.c.b16 %v1221, %v1217
    %v1430 = vpack.c.b16 %v1222, %v1218
    %v1431 = vpack.c.b16 %v1223, %v1219
    %v1432 = vpack.c.b16 %v1224, %v1220
    %v1433 = vpack.c.b16 %v1229, %v1225
    %v1434 = vpack.c.b16 %v1230, %v1226
    %v1435 = vpack.c.b16 %v1231, %v1227
    %v1436 = vpack.c.b16 %v1232, %v1228
    %v1437 = vpack.c.b16 %v1237, %v1233
    %v1438 = vpack.c.b16 %v1238, %v1234
    %v1439 = vpack.c.b16 %v1239, %v1235
    %v1440 = vpack.c.b16 %v1240, %v1236
    %v1441 = vpack.c.b16 %v1245, %v1241
    %v1442 = vpack.c.b16 %v1246, %v1242
    %v1443 = vpack.c.b16 %v1247, %v1243
    %v1444 = vpack.c.b16 %v1248, %v1244
    %v1445 = vpack.c.b16 %v1253, %v1249
    %v1446 = vpack.c.b16 %v1254, %v1250
    %v1447 = vpack.c.b16 %v1255, %v1251
    %v1448 = vpack.c.b16 %v1256, %v1252
    %v1449 = vpack.c.b16 %v1261, %v1257
    %v1450 = vpack.c.b16 %v1262, %v1258
    %v1451 = vpack.c.b16 %v1263, %v1259
    %v1452 = vpack.c.b16 %v1264, %v1260
    %v1453 = vpack.c.b16 %v1269, %v1265
    %v1454 = vpack.c.b16 %v1270, %v1266
    %v1455 = vpack.c.b16 %v1271, %v1267
    %v1456 = vpack.c.b16 %v1272, %v1268
    %v1457 = vpack.c.b16 %v1277, %v1273
    %v1458 = vpack.c.b16 %v1278, %v1274
    %v1459 = vpack.c.b16 %v1279, %v1275
    %v1460 = vpack.c.b16 %v1280, %v1276
    %v1461 = vpack.c.b16 %v1285, %v1281
    %v1462 = vpack.c.b16 %v1286, %v1282
    %v1463 = vpack.c.b16 %v1287, %v1283
    %v1464 = vpack.c.b16 %v1288, %v1284
    %v1465 = vpack.c.b16 %v1293, %v1289
    %v1466 = vpack.c.b16 %v1294, %v1290
    %v1467 = vpack.c.b16 %v1295, %v1291
    %v1468 = vpack.c.b16 %v1296, %v1292
    %v1469 = vpack.c.b16 %v1301, %v1297
    %v1470 = vpack.c.b16 %v1302, %v1298
    %v1471 = vpack.c.b16 %v1303, %v1299
    %v1472 = vpack.c.b16 %v1304, %v1300
    %v1473 = vpack.c.b16 %v1309, %v1305
    %v1474 = vpack.c.b16 %v1310, %v1306
    %v1475 = vpack.c.b16 %v1311, %v1307
    %v1476 = vpack.c.b16 %v1312, %v1308
    %v1477 = vpack.c.b16 %v1317, %v1313
    %v1478 = vpack.c.b16 %v1318, %v1314
    %v1479 = vpack.c.b16 %v1319, %v1315
    %v1480 = vpack.c.b16 %v1320, %v1316
    %v1481 = vpack.c.b16 %v1325, %v1321
    %v1482 = vpack.c.b16 %v1326, %v1322
    %v1483 = vpack.c.b16 %v1327, %v1323
    %v1484 = vpack.c.b16 %v1328, %v1324
    %v1485 = vpack.c.b16 %v1333, %v1329
    %v1486 = vpack.c.b16 %v1334, %v1330
    %v1487 = vpack.c.b16 %v1335, %v1331
    %v1488 = vpack.c.b16 %v1336, %v1332
    %v1489 = vpack.c.b16 %v1341, %v1337
    %v1490 = vpack.c.b16 %v1342, %v1338
    %v1491 = vpack.c.b16 %v1343, %v1339
    %v1492 = vpack.c.b16 %v1344, %v1340
    %v1493 = vpack.c.b16 %v1349, %v1345
    %v1494 = vpack.c.b16 %v1350, %v1346
    %v1495 = vpack.c.b16 %v1351, %v1347
    %v1496 = vpack.c.b16 %v1352, %v1348
    %v1497 = vpack.c.b16 %v1357, %v1353
    %v1498 = vpack.c.b16 %v1358, %v1354
    %v1499 = vpack.c.b16 %v1359, %v1355
    %v1500 = vpack.c.b16 %v1360, %v1356
    %v1501 = vpack.c.b16 %v1365, %v1361
    %v1502 = vpack.c.b16 %v1366, %v1362
    %v1503 = vpack.c.b16 %v1367, %v1363
    %v1504 = vpack.c.b16 %v1368, %v1364
    %v1505 = vpack.c.b16 %v1373, %v1369
    %v1506 = vpack.c.b16 %v1374, %v1370
    %v1507 = vpack.c.b16 %v1375, %v1371
    %v1508 = vpack.c.b16 %v1376, %v1372
    %v1509 = vpack.c.b16 %v1381, %v1377
    %v1510 = vpack.c.b16 %v1382, %v1378
    %v1511 = vpack.c.b16 %v1383, %v1379
    %v1512 = vpack.c.b16 %v1384, %v1380
    %1641 = vmatprep.subr.bf16.mxu0 %v1386
    %1642 = vmatpush1.bf16.msra.mxu0 %v1385
    %1643 = vmatprep.subr.bf16.mxu0 %v1390
    %1644 = vmatpush1.bf16.msra.mxu0 %v1389
    %1645 = vmatprep.subr.bf16.mxu0 %v1394
    %1646 = vmatpush1.bf16.msra.mxu0 %v1393
    %1647 = vmatprep.subr.bf16.mxu0 %v1398
    %1648 = vmatpush1.bf16.msra.mxu0 %v1397
    %1649 = vmatprep.subr.bf16.mxu0 %v1402
    %1650 = vmatpush1.bf16.msra.mxu0 %v1401
    %1651 = vmatprep.subr.bf16.mxu0 %v1406
    %1652 = vmatpush1.bf16.msra.mxu0 %v1405
    %1653 = vmatprep.subr.bf16.mxu0 %v1410
    %1654 = vmatpush1.bf16.msra.mxu0 %v1409
    %1655 = vmatprep.subr.bf16.mxu0 %v1414
    %1656 = vmatpush1.bf16.msra.mxu0 %v1413
    %1657 = vmatprep.subr.bf16.mxu0 %v1418
    %1658 = vmatpush1.bf16.msra.mxu0 %v1417
    %1659 = vmatprep.subr.bf16.mxu0 %v1422
    %1660 = vmatpush1.bf16.msra.mxu0 %v1421
    %1661 = vmatprep.subr.bf16.mxu0 %v1426
    %1662 = vmatpush1.bf16.msra.mxu0 %v1425
    %1663 = vmatprep.subr.bf16.mxu0 %v1430
    %1664 = vmatpush1.bf16.msra.mxu0 %v1429
    %1665 = vmatprep.subr.bf16.mxu0 %v1434
    %1666 = vmatpush1.bf16.msra.mxu0 %v1433
    %1667 = vmatprep.subr.bf16.mxu0 %v1438
    %1668 = vmatpush1.bf16.msra.mxu0 %v1437
    %1669 = vmatprep.subr.bf16.mxu0 %v1442
    %1670 = vmatpush1.bf16.msra.mxu0 %v1441
    %1671 = vmatprep.subr.bf16.mxu0 %v1446
    %1672 = vmatpush1.bf16.msra.mxu0 %v1445
    %1673 = vmatprep.mubr.bf16.mxu0 %v858
    %1674 = vmatmul.mubr.bf16.gmra.mrb[0].mxu0 %v857
    %v1675 = vpop.f32.mrb[0].mxu0
    %v1676 = vadd.f32 0.0, %v1675
    %v1677 = vpop.f32.mrb[0].mxu0
    %v1678 = vadd.f32 0.0, %v1677
    %v1679 = vpop.f32.mrb[0].mxu0
    %v1680 = vadd.f32 0.0, %v1679
    %v1681 = vpop.f32.mrb[0].mxu0
    %v1682 = vadd.f32 0.0, %v1681
    %1683 = vmatprep.mubr.bf16.mxu0 %v862
    %1684 = vmatmul.mubr.bf16.gmra.mrb[0].mxu0 %v861
    %v1685 = vpop.f32.mrb[0].mxu0
    %v1686 = vadd.f32 0.0, %v1685
    %v1687 = vpop.f32.mrb[0].mxu0
    %v1688 = vadd.f32 0.0, %v1687
    %v1689 = vpop.f32.mrb[0].mxu0
    %v1690 = vadd.f32 0.0, %v1689
    %v1691 = vpop.f32.mrb[0].mxu0
    %v1692 = vadd.f32 0.0, %v1691
    %1693 = vmatprep.mubr.bf16.mxu0 %v866
    %1694 = vmatmul.mubr.bf16.gmra.mrb[0].mxu0 %v865
    %v1695 = vpop.f32.mrb[0].mxu0
    %v1696 = vadd.f32 0.0, %v1695
    %v1697 = vpop.f32.mrb[0].mxu0
    %v1698 = vadd.f32 0.0, %v1697
    %v1699 = vpop.f32.mrb[0].mxu0
    %v1700 = vadd.f32 0.0, %v1699
    %v1701 = vpop.f32.mrb[0].mxu0
    %v1702 = vadd.f32 0.0, %v1701
    %1703 = vmatprep.mubr.bf16.mxu0 %v870
    %1704 = vmatmul.mubr.bf16.gmra.mrb[0].mxu0 %v869
    %v1705 = vpop.f32.mrb[0].mxu0
    %v1706 = vadd.f32 0.0, %v1705
    %v1707 = vpop.f32.mrb[0].mxu0
    %v1708 = vadd.f32 0.0, %v1707
    %v1709 = vpop.f32.mrb[0].mxu0
    %v1710 = vadd.f32 0.0, %v1709
    %v1711 = vpop.f32.mrb[0].mxu0
    %v1712 = vadd.f32 0.0, %v1711
    %1713 = vdwg.mxu0
    %1714 = vmatprep.subr.bf16.mxu0 %v1450
    %1715 = vmatpush1.bf16.msra.mxu0 %v1449
    %1716 = vmatprep.subr.bf16.mxu0 %v1454
    %1717 = vmatpush1.bf16.msra.mxu0 %v1453
    %1718 = vmatprep.subr.bf16.mxu0 %v1458
    %1719 = vmatpush1.bf16.msra.mxu0 %v1457
    %1720 = vmatprep.subr.bf16.mxu0 %v1462
    %1721 = vmatpush1.bf16.msra.mxu0 %v1461
    %1722 = vmatprep.subr.bf16.mxu0 %v1466
    %1723 = vmatpush1.bf16.msra.mxu0 %v1465
    %1724 = vmatprep.subr.bf16.mxu0 %v1470
    %1725 = vmatpush1.bf16.msra.mxu0 %v1469
    %1726 = vmatprep.subr.bf16.mxu0 %v1474
    %1727 = vmatpush1.bf16.msra.mxu0 %v1473
    %1728 = vmatprep.subr.bf16.mxu0 %v1478
    %1729 = vmatpush1.bf16.msra.mxu0 %v1477
    %1730 = vmatprep.subr.bf16.mxu0 %v1482
    %1731 = vmatpush1.bf16.msra.mxu0 %v1481
    %1732 = vmatprep.subr.bf16.mxu0 %v1486
    %1733 = vmatpush1.bf16.msra.mxu0 %v1485
    %1734 = vmatprep.subr.bf16.mxu0 %v1490
    %1735 = vmatpush1.bf16.msra.mxu0 %v1489
    %1736 = vmatprep.subr.bf16.mxu0 %v1494
    %1737 = vmatpush1.bf16.msra.mxu0 %v1493
    %1738 = vmatprep.subr.bf16.mxu0 %v1498
    %1739 = vmatpush1.bf16.msra.mxu0 %v1497
    %1740 = vmatprep.subr.bf16.mxu0 %v1502
    %1741 = vmatpush1.bf16.msra.mxu0 %v1501
    %1742 = vmatprep.subr.bf16.mxu0 %v1506
    %1743 = vmatpush1.bf16.msra.mxu0 %v1505
    %1744 = vmatprep.subr.bf16.mxu0 %v1510
    %1745 = vmatpush1.bf16.msra.mxu0 %v1509
    %1746 = vmatprep.mubr.bf16.mxu0 %v860
    %1747 = vmatmul.mubr.bf16.gmra.mrb[0].mxu0 %v859
    %v1748 = vpop.f32.mrb[0].mxu0
    %v1749 = vadd.f32 %v1676, %v1748
    %v1750 = vpop.f32.mrb[0].mxu0
    %v1751 = vadd.f32 %v1678, %v1750
    %v1752 = vpop.f32.mrb[0].mxu0
    %v1753 = vadd.f32 %v1680, %v1752
    %v1754 = vpop.f32.mrb[0].mxu0
    %v1755 = vadd.f32 %v1682, %v1754
    %1756 = vmatprep.mubr.bf16.mxu0 %v864
    %1757 = vmatmul.mubr.bf16.gmra.mrb[0].mxu0 %v863
    %v1758 = vpop.f32.mrb[0].mxu0
    %v1759 = vadd.f32 %v1686, %v1758
    %v1760 = vpop.f32.mrb[0].mxu0
    %v1761 = vadd.f32 %v1688, %v1760
    %v1762 = vpop.f32.mrb[0].mxu0
    %v1763 = vadd.f32 %v1690, %v1762
    %v1764 = vpop.f32.mrb[0].mxu0
    %v1765 = vadd.f32 %v1692, %v1764
    %1766 = vmatprep.mubr.bf16.mxu0 %v868
    %1767 = vmatmul.mubr.bf16.gmra.mrb[0].mxu0 %v867
    %v1768 = vpop.f32.mrb[0].mxu0
    %v1769 = vadd.f32 %v1696, %v1768
    %v1770 = vpop.f32.mrb[0].mxu0
    %v1771 = vadd.f32 %v1698, %v1770
    %v1772 = vpop.f32.mrb[0].mxu0
    %v1773 = vadd.f32 %v1700, %v1772
    %v1774 = vpop.f32.mrb[0].mxu0
    %v1775 = vadd.f32 %v1702, %v1774
    %1776 = vmatprep.mubr.bf16.mxu0 %v872
    %1777 = vmatmul.mubr.bf16.gmra.mrb[0].mxu0 %v871
    %v1778 = vpop.f32.mrb[0].mxu0
    %v1779 = vadd.f32 %v1706, %v1778
    %v1780 = vpop.f32.mrb[0].mxu0
    %v1781 = vadd.f32 %v1708, %v1780
    %v1782 = vpop.f32.mrb[0].mxu0
    %v1783 = vadd.f32 %v1710, %v1782
    %v1784 = vpop.f32.mrb[0].mxu0
    %v1785 = vadd.f32 %v1712, %v1784
    %1786 = vdwg.mxu0
    %1787 = vmatprep.subr.bf16.mxu0 %v1388
    %1788 = vmatpush1.bf16.msra.mxu0 %v1387
    %1789 = vmatprep.subr.bf16.mxu0 %v1392
    %1790 = vmatpush1.bf16.msra.mxu0 %v1391
    %1791 = vmatprep.subr.bf16.mxu0 %v1396
    %1792 = vmatpush1.bf16.msra.mxu0 %v1395
    %1793 = vmatprep.subr.bf16.mxu0 %v1400
    %1794 = vmatpush1.bf16.msra.mxu0 %v1399
    %1795 = vmatprep.subr.bf16.mxu0 %v1404
    %1796 = vmatpush1.bf16.msra.mxu0 %v1403
    %1797 = vmatprep.subr.bf16.mxu0 %v1408
    %1798 = vmatpush1.bf16.msra.mxu0 %v1407
    %1799 = vmatprep.subr.bf16.mxu0 %v1412
    %1800 = vmatpush1.bf16.msra.mxu0 %v1411
    %1801 = vmatprep.subr.bf16.mxu0 %v1416
    %1802 = vmatpush1.bf16.msra.mxu0 %v1415
    %1803 = vmatprep.subr.bf16.mxu0 %v1420
    %1804 = vmatpush1.bf16.msra.mxu0 %v1419
    %1805 = vmatprep.subr.bf16.mxu0 %v1424
    %1806 = vmatpush1.bf16.msra.mxu0 %v1423
    %1807 = vmatprep.subr.bf16.mxu0 %v1428
    %1808 = vmatpush1.bf16.msra.mxu0 %v1427
    %1809 = vmatprep.subr.bf16.mxu0 %v1432
    %1810 = vmatpush1.bf16.msra.mxu0 %v1431
    %1811 = vmatprep.subr.bf16.mxu0 %v1436
    %1812 = vmatpush1.bf16.msra.mxu0 %v1435
    %1813 = vmatprep.subr.bf16.mxu0 %v1440
    %1814 = vmatpush1.bf16.msra.mxu0 %v1439
    %1815 = vmatprep.subr.bf16.mxu0 %v1444
    %1816 = vmatpush1.bf16.msra.mxu0 %v1443
    %1817 = vmatprep.subr.bf16.mxu0 %v1448
    %1818 = vmatpush1.bf16.msra.mxu0 %v1447
    %1819 = vmatprep.mubr.bf16.mxu0 %v858
    %1820 = vmatmul.mubr.bf16.gmra.mrb[0].mxu0 %v857
    %v1821 = vpop.f32.mrb[0].mxu0
    %v1822 = vadd.f32 0.0, %v1821
    %v1823 = vpop.f32.mrb[0].mxu0
    %v1824 = vadd.f32 0.0, %v1823
    %v1825 = vpop.f32.mrb[0].mxu0
    %v1826 = vadd.f32 0.0, %v1825
    %v1827 = vpop.f32.mrb[0].mxu0
    %v1828 = vadd.f32 0.0, %v1827
    %1829 = vmatprep.mubr.bf16.mxu0 %v862
    %1830 = vmatmul.mubr.bf16.gmra.mrb[0].mxu0 %v861
    %v1831 = vpop.f32.mrb[0].mxu0
    %v1832 = vadd.f32 0.0, %v1831
    %v1833 = vpop.f32.mrb[0].mxu0
    %v1834 = vadd.f32 0.0, %v1833
    %v1835 = vpop.f32.mrb[0].mxu0
    %v1836 = vadd.f32 0.0, %v1835
    %v1837 = vpop.f32.mrb[0].mxu0
    %v1838 = vadd.f32 0.0, %v1837
    %1839 = vmatprep.mubr.bf16.mxu0 %v866
    %1840 = vmatmul.mubr.bf16.gmra.mrb[0].mxu0 %v865
    %v1841 = vpop.f32.mrb[0].mxu0
    %v1842 = vadd.f32 0.0, %v1841
    %v1843 = vpop.f32.mrb[0].mxu0
    %v1844 = vadd.f32 0.0, %v1843
    %v1845 = vpop.f32.mrb[0].mxu0
    %v1846 = vadd.f32 0.0, %v1845
    %v1847 = vpop.f32.mrb[0].mxu0
    %v1848 = vadd.f32 0.0, %v1847
    %1849 = vmatprep.mubr.bf16.mxu0 %v870
    %1850 = vmatmul.mubr.bf16.gmra.mrb[0].mxu0 %v869
    %v1851 = vpop.f32.mrb[0].mxu0
    %v1852 = vadd.f32 0.0, %v1851
    %v1853 = vpop.f32.mrb[0].mxu0
    %v1854 = vadd.f32 0.0, %v1853
    %v1855 = vpop.f32.mrb[0].mxu0
    %v1856 = vadd.f32 0.0, %v1855
    %v1857 = vpop.f32.mrb[0].mxu0
    %v1858 = vadd.f32 0.0, %v1857
    %1859 = vdwg.mxu0
    %1860 = vmatprep.subr.bf16.mxu0 %v1452
    %1861 = vmatpush1.bf16.msra.mxu0 %v1451
    %1862 = vmatprep.subr.bf16.mxu0 %v1456
    %1863 = vmatpush1.bf16.msra.mxu0 %v1455
    %1864 = vmatprep.subr.bf16.mxu0 %v1460
    %1865 = vmatpush1.bf16.msra.mxu0 %v1459
    %1866 = vmatprep.subr.bf16.mxu0 %v1464
    %1867 = vmatpush1.bf16.msra.mxu0 %v1463
    %1868 = vmatprep.subr.bf16.mxu0 %v1468
    %1869 = vmatpush1.bf16.msra.mxu0 %v1467
    %1870 = vmatprep.subr.bf16.mxu0 %v1472
    %1871 = vmatpush1.bf16.msra.mxu0 %v1471
    %1872 = vmatprep.subr.bf16.mxu0 %v1476
    %1873 = vmatpush1.bf16.msra.mxu0 %v1475
    %1874 = vmatprep.subr.bf16.mxu0 %v1480
    %1875 = vmatpush1.bf16.msra.mxu0 %v1479
    %1876 = vmatprep.subr.bf16.mxu0 %v1484
    %1877 = vmatpush1.bf16.msra.mxu0 %v1483
    %1878 = vmatprep.subr.bf16.mxu0 %v1488
    %1879 = vmatpush1.bf16.msra.mxu0 %v1487
    %1880 = vmatprep.subr.bf16.mxu0 %v1492
    %1881 = vmatpush1.bf16.msra.mxu0 %v1491
    %1882 = vmatprep.subr.bf16.mxu0 %v1496
    %1883 = vmatpush1.bf16.msra.mxu0 %v1495
    %1884 = vmatprep.subr.bf16.mxu0 %v1500
    %1885 = vmatpush1.bf16.msra.mxu0 %v1499
    %1886 = vmatprep.subr.bf16.mxu0 %v1504
    %1887 = vmatpush1.bf16.msra.mxu0 %v1503
    %1888 = vmatprep.subr.bf16.mxu0 %v1508
    %1889 = vmatpush1.bf16.msra.mxu0 %v1507
    %1890 = vmatprep.subr.bf16.mxu0 %v1512
    %1891 = vmatpush1.bf16.msra.mxu0 %v1511
    %1892 = vmatprep.mubr.bf16.mxu0 %v860
    %1893 = vmatmul.mubr.bf16.gmra.mrb[0].mxu0 %v859
    %v1894 = vpop.f32.mrb[0].mxu0
    %v1895 = vadd.f32 %v1822, %v1894
    %v1896 = vpop.f32.mrb[0].mxu0
    %v1897 = vadd.f32 %v1824, %v1896
    %v1898 = vpop.f32.mrb[0].mxu0
    %v1899 = vadd.f32 %v1826, %v1898
    %v1900 = vpop.f32.mrb[0].mxu0
    %v1901 = vadd.f32 %v1828, %v1900
    %1902 = vmatprep.mubr.bf16.mxu0 %v864
    %1903 = vmatmul.mubr.bf16.gmra.mrb[0].mxu0 %v863
    %v1904 = vpop.f32.mrb[0].mxu0
    %v1905 = vadd.f32 %v1832, %v1904
    %v1906 = vpop.f32.mrb[0].mxu0
    %v1907 = vadd.f32 %v1834, %v1906
    %v1908 = vpop.f32.mrb[0].mxu0
    %v1909 = vadd.f32 %v1836, %v1908
    %v1910 = vpop.f32.mrb[0].mxu0
    %v1911 = vadd.f32 %v1838, %v1910
    %1912 = vmatprep.mubr.bf16.mxu0 %v868
    %1913 = vmatmul.mubr.bf16.gmra.mrb[0].mxu0 %v867
    %v1914 = vpop.f32.mrb[0].mxu0
    %v1915 = vadd.f32 %v1842, %v1914
    %v1916 = vpop.f32.mrb[0].mxu0
    %v1917 = vadd.f32 %v1844, %v1916
    %v1918 = vpop.f32.mrb[0].mxu0
    %v1919 = vadd.f32 %v1846, %v1918
    %v1920 = vpop.f32.mrb[0].mxu0
    %v1921 = vadd.f32 %v1848, %v1920
    %1922 = vmatprep.mubr.bf16.mxu0 %v872
    %1923 = vmatmul.mubr.bf16.gmra.mrb[0].mxu0 %v871
    %v1924 = vpop.f32.mrb[0].mxu0
    %v1925 = vadd.f32 %v1852, %v1924
    %v1926 = vpop.f32.mrb[0].mxu0
    %v1927 = vadd.f32 %v1854, %v1926
    %v1928 = vpop.f32.mrb[0].mxu0
    %v1929 = vadd.f32 %v1856, %v1928
    %v1930 = vpop.f32.mrb[0].mxu0
    %v1931 = vadd.f32 %v1858, %v1930
    %1932 = vdwg.mxu0
    %v1933 = vld [vmem:[%s5] sm:$0xf]
    %v1934 = vld [vmem:[%s6] sm:$0xf]
    %v1935 = vadd.f32 %v1749, %v1753
    %v1936 = vadd.f32 %v1935, %v1759
    %v1937 = vadd.f32 %v1936, %v1763
    %v1938 = vadd.f32 %v1937, %v1769
    %v1939 = vadd.f32 %v1938, %v1773
    %v1940 = vadd.f32 %v1939, %v1779
    %v1941 = vadd.f32 %v1940, %v1783
    %v1942 = vrot.slane %v1941, 4
    %v1943 = vadd.f32 %v1941, %v1942
    %v1944 = vrot.slane %v1943, 2
    %v1945 = vadd.f32 %v1943, %v1944
    %v1946 = vrot.slane %v1945, 1
    %v1947 = vadd.f32 %v1945, %v1946
    %v1948 = vadd.f32 %v1751, %v1755
    %v1949 = vadd.f32 %v1948, %v1761
    %v1950 = vadd.f32 %v1949, %v1765
    %v1951 = vadd.f32 %v1950, %v1771
    %v1952 = vadd.f32 %v1951, %v1775
    %v1953 = vadd.f32 %v1952, %v1781
    %v1954 = vadd.f32 %v1953, %v1785
    %v1955 = vrot.slane %v1954, 4
    %v1956 = vadd.f32 %v1954, %v1955
    %v1957 = vrot.slane %v1956, 2
    %v1958 = vadd.f32 %v1956, %v1957
    %v1959 = vrot.slane %v1958, 1
    %v1960 = vadd.f32 %v1958, %v1959
    %v1961 = vadd.f32 %v1895, %v1899
    %v1962 = vadd.f32 %v1961, %v1905
    %v1963 = vadd.f32 %v1962, %v1909
    %v1964 = vadd.f32 %v1963, %v1915
    %v1965 = vadd.f32 %v1964, %v1919
    %v1966 = vadd.f32 %v1965, %v1925
    %v1967 = vadd.f32 %v1966, %v1929
    %v1968 = vrot.slane %v1967, 4
    %v1969 = vadd.f32 %v1967, %v1968
    %v1970 = vrot.slane %v1969, 2
    %v1971 = vadd.f32 %v1969, %v1970
    %v1972 = vrot.slane %v1971, 1
    %v1973 = vadd.f32 %v1971, %v1972
    %v1974 = vadd.f32 %v1897, %v1901
    %v1975 = vadd.f32 %v1974, %v1907
    %v1976 = vadd.f32 %v1975, %v1911
    %v1977 = vadd.f32 %v1976, %v1917
    %v1978 = vadd.f32 %v1977, %v1921
    %v1979 = vadd.f32 %v1978, %v1927
    %v1980 = vadd.f32 %v1979, %v1931
    %v1981 = vrot.slane %v1980, 4
    %v1982 = vadd.f32 %v1980, %v1981
    %v1983 = vrot.slane %v1982, 2
    %v1984 = vadd.f32 %v1982, %v1983
    %v1985 = vrot.slane %v1984, 1
    %v1986 = vadd.f32 %v1984, %v1985
    %v1987 = vmul.f32 %v1749, %v1749
    %v1988 = vmul.f32 %v1751, %v1751
    %v1989 = vmul.f32 %v1895, %v1895
    %v1990 = vmul.f32 %v1897, %v1897
    %v1991 = vmul.f32 %v1753, %v1753
    %v1992 = vmul.f32 %v1755, %v1755
    %v1993 = vmul.f32 %v1899, %v1899
    %v1994 = vmul.f32 %v1901, %v1901
    %v1995 = vmul.f32 %v1759, %v1759
    %v1996 = vmul.f32 %v1761, %v1761
    %v1997 = vmul.f32 %v1905, %v1905
    %v1998 = vmul.f32 %v1907, %v1907
    %v1999 = vmul.f32 %v1763, %v1763
    %v2000 = vmul.f32 %v1765, %v1765
    %v2001 = vmul.f32 %v1909, %v1909
    %v2002 = vmul.f32 %v1911, %v1911
    %v2003 = vmul.f32 %v1769, %v1769
    %v2004 = vmul.f32 %v1771, %v1771
    %v2005 = vmul.f32 %v1915, %v1915
    %v2006 = vmul.f32 %v1917, %v1917
    %v2007 = vmul.f32 %v1773, %v1773
    %v2008 = vmul.f32 %v1775, %v1775
    %v2009 = vmul.f32 %v1919, %v1919
    %v2010 = vmul.f32 %v1921, %v1921
    %v2011 = vmul.f32 %v1779, %v1779
    %v2012 = vmul.f32 %v1781, %v1781
    %v2013 = vmul.f32 %v1925, %v1925
    %v2014 = vmul.f32 %v1927, %v1927
    %v2015 = vmul.f32 %v1783, %v1783
    %v2016 = vmul.f32 %v1785, %v1785
    %v2017 = vmul.f32 %v1929, %v1929
    %v2018 = vmul.f32 %v1931, %v1931
    %v2019 = vadd.f32 %v1987, %v1991
    %v2020 = vadd.f32 %v2019, %v1995
    %v2021 = vadd.f32 %v2020, %v1999
    %v2022 = vadd.f32 %v2021, %v2003
    %v2023 = vadd.f32 %v2022, %v2007
    %v2024 = vadd.f32 %v2023, %v2011
    %v2025 = vadd.f32 %v2024, %v2015
    %v2026 = vrot.slane %v2025, 4
    %v2027 = vadd.f32 %v2025, %v2026
    %v2028 = vrot.slane %v2027, 2
    %v2029 = vadd.f32 %v2027, %v2028
    %v2030 = vrot.slane %v2029, 1
    %v2031 = vadd.f32 %v2029, %v2030
    %v2032 = vadd.f32 %v1988, %v1992
    %v2033 = vadd.f32 %v2032, %v1996
    %v2034 = vadd.f32 %v2033, %v2000
    %v2035 = vadd.f32 %v2034, %v2004
    %v2036 = vadd.f32 %v2035, %v2008
    %v2037 = vadd.f32 %v2036, %v2012
    %v2038 = vadd.f32 %v2037, %v2016
    %v2039 = vrot.slane %v2038, 4
    %v2040 = vadd.f32 %v2038, %v2039
    %v2041 = vrot.slane %v2040, 2
    %v2042 = vadd.f32 %v2040, %v2041
    %v2043 = vrot.slane %v2042, 1
    %v2044 = vadd.f32 %v2042, %v2043
    %v2045 = vadd.f32 %v1989, %v1993
    %v2046 = vadd.f32 %v2045, %v1997
    %v2047 = vadd.f32 %v2046, %v2001
    %v2048 = vadd.f32 %v2047, %v2005
    %v2049 = vadd.f32 %v2048, %v2009
    %v2050 = vadd.f32 %v2049, %v2013
    %v2051 = vadd.f32 %v2050, %v2017
    %v2052 = vrot.slane %v2051, 4
    %v2053 = vadd.f32 %v2051, %v2052
    %v2054 = vrot.slane %v2053, 2
    %v2055 = vadd.f32 %v2053, %v2054
    %v2056 = vrot.slane %v2055, 1
    %v2057 = vadd.f32 %v2055, %v2056
    %v2058 = vadd.f32 %v1990, %v1994
    %v2059 = vadd.f32 %v2058, %v1998
    %v2060 = vadd.f32 %v2059, %v2002
    %v2061 = vadd.f32 %v2060, %v2006
    %v2062 = vadd.f32 %v2061, %v2010
    %v2063 = vadd.f32 %v2062, %v2014
    %v2064 = vadd.f32 %v2063, %v2018
    %v2065 = vrot.slane %v2064, 4
    %v2066 = vadd.f32 %v2064, %v2065
    %v2067 = vrot.slane %v2066, 2
    %v2068 = vadd.f32 %v2066, %v2067
    %v2069 = vrot.slane %v2068, 1
    %v2070 = vadd.f32 %v2068, %v2069
    %v2071 = vmul.f32 %v1947, 0.015625
    %v2072 = vmul.f32 %v1960, 0.015625
    %v2073 = vmul.f32 %v1973, 0.015625
    %v2074 = vmul.f32 %v1986, 0.015625
    %v2075 = vmul.f32 %v2031, 0.015625
    %v2076 = vmul.f32 %v2044, 0.015625
    %v2077 = vmul.f32 %v2057, 0.015625
    %v2078 = vmul.f32 %v2070, 0.015625
    %v2079 = vmul.f32 %v2071, %v2071
    %v2080 = vmul.f32 %v2072, %v2072
    %v2081 = vmul.f32 %v2073, %v2073
    %v2082 = vmul.f32 %v2074, %v2074
    %v2083 = vsub.f32 %v2075, %v2079
    %v2084 = vsub.f32 %v2076, %v2080
    %v2085 = vsub.f32 %v2077, %v2081
    %v2086 = vsub.f32 %v2078, %v2082
    %v2087 = vmax.f32 %v2083, 0.0
    %v2088 = vmax.f32 %v2084, 0.0
    %v2089 = vmax.f32 %v2085, 0.0
    %v2090 = vmax.f32 %v2086, 0.0
    %v2091 = vadd.f32 %v2087, 1e-05
    %v2092 = vadd.f32 %v2088, 1e-05
    %v2093 = vadd.f32 %v2089, 1e-05
    %v2094 = vadd.f32 %v2090, 1e-05
    %v2095 = vrsqrt.pop %v2091
    %v2096 = vrsqrt.pop %v2092
    %v2097 = vrsqrt.pop %v2093
    %v2098 = vrsqrt.pop %v2094
    %v2103 = vcombine.low %v2095, %v2096
    %v2104 = vcombine.low %v2097, %v2098
    %v2106 = vunpack.c.l.s4 1966171168
    %v2107 = vunpack.c.0.s8 %v2106
    %v2108 = vlaneseq
    %v2109 = vshrl.u32 %v2108, 7
    %v2110 = vsub.s32 %v2107, %v2109
    %v2111 = vrot.slane %v2103, %v2110
    %v2113 = vunpack.c.l.s4 1966171168
    %v2114 = vunpack.c.0.s8 %v2113
    %v2115 = vlaneseq
    %v2116 = vshrl.u32 %v2115, 7
    %v2117 = vsub.s32 %v2114, %v2116
    %v2118 = vrot.slane %v2104, %v2117
    %v2119 = vcombine.low %v2111, %v2118
    %v2121 = vunpack.c.l.s4 1966171168
    %v2122 = vunpack.c.0.s8 %v2121
    %v2123 = vlaneseq
    %v2124 = vshrl.u32 %v2123, 7
    %v2125 = vsub.s32 %v2122, %v2124
    %v2126 = vrot.slane %v2119, %v2125
    %v2128 = vmul.f32 %v1933, %v2126
    %v2130 = vlaneseq
    %v2131 = vshrl.u32 %v2130, 7
    %v2132 = vsub.s32 0, %v2131
    %v2133 = vrot.slane %v2128, %v2132
    %v2134 = vlaneseq
    %v2135 = vshrl.u32 %v2134, 7
    %v2136 = vsub.s32 1, %v2135
    %v2137 = vrot.slane %v2128, %v2136
    %v2138 = vlaneseq
    %v2139 = vshrl.u32 %v2138, 7
    %v2140 = vsub.s32 2, %v2139
    %v2141 = vrot.slane %v2128, %v2140
    %v2142 = vlaneseq
    %v2143 = vshrl.u32 %v2142, 7
    %v2144 = vsub.s32 3, %v2143
    %v2145 = vrot.slane %v2128, %v2144
    %v2150 = vmul.f32 %v2071, %v2133
    %v2151 = vmul.f32 %v2072, %v2137
    %v2152 = vmul.f32 %v2073, %v2141
    %v2153 = vmul.f32 %v2074, %v2145
    %v2158 = vcombine.low %v2150, %v2151
    %v2159 = vcombine.low %v2152, %v2153
    %v2161 = vunpack.c.l.s4 1966171168
    %v2162 = vunpack.c.0.s8 %v2161
    %v2163 = vlaneseq
    %v2164 = vshrl.u32 %v2163, 7
    %v2165 = vsub.s32 %v2162, %v2164
    %v2166 = vrot.slane %v2158, %v2165
    %v2168 = vunpack.c.l.s4 1966171168
    %v2169 = vunpack.c.0.s8 %v2168
    %v2170 = vlaneseq
    %v2171 = vshrl.u32 %v2170, 7
    %v2172 = vsub.s32 %v2169, %v2171
    %v2173 = vrot.slane %v2159, %v2172
    %v2174 = vcombine.low %v2166, %v2173
    %v2176 = vunpack.c.l.s4 1966171168
    %v2177 = vunpack.c.0.s8 %v2176
    %v2178 = vlaneseq
    %v2179 = vshrl.u32 %v2178, 7
    %v2180 = vsub.s32 %v2177, %v2179
    %v2181 = vrot.slane %v2174, %v2180
    %v2183 = vsub.f32 %v1934, %v2181
    %v2184 = vmul.f32 %v1749, %v2133
    %v2185 = vmul.f32 %v1751, %v2137
    %v2186 = vmul.f32 %v1895, %v2141
    %v2187 = vmul.f32 %v1897, %v2145
    %v2188 = vmul.f32 %v1753, %v2133
    %v2189 = vmul.f32 %v1755, %v2137
    %v2190 = vmul.f32 %v1899, %v2141
    %v2191 = vmul.f32 %v1901, %v2145
    %v2192 = vmul.f32 %v1759, %v2133
    %v2193 = vmul.f32 %v1761, %v2137
    %v2194 = vmul.f32 %v1905, %v2141
    %v2195 = vmul.f32 %v1907, %v2145
    %v2196 = vmul.f32 %v1763, %v2133
    %v2197 = vmul.f32 %v1765, %v2137
    %v2198 = vmul.f32 %v1909, %v2141
    %v2199 = vmul.f32 %v1911, %v2145
    %v2200 = vmul.f32 %v1769, %v2133
    %v2201 = vmul.f32 %v1771, %v2137
    %v2202 = vmul.f32 %v1915, %v2141
    %v2203 = vmul.f32 %v1917, %v2145
    %v2204 = vmul.f32 %v1773, %v2133
    %v2205 = vmul.f32 %v1775, %v2137
    %v2206 = vmul.f32 %v1919, %v2141
    %v2207 = vmul.f32 %v1921, %v2145
    %v2208 = vmul.f32 %v1779, %v2133
    %v2209 = vmul.f32 %v1781, %v2137
    %v2210 = vmul.f32 %v1925, %v2141
    %v2211 = vmul.f32 %v1927, %v2145
    %v2212 = vmul.f32 %v1783, %v2133
    %v2213 = vmul.f32 %v1785, %v2137
    %v2214 = vmul.f32 %v1929, %v2141
    %v2215 = vmul.f32 %v1931, %v2145
    %v2217 = vlaneseq
    %v2218 = vshrl.u32 %v2217, 7
    %v2219 = vsub.s32 0, %v2218
    %v2220 = vrot.slane %v2183, %v2219
    %v2221 = vlaneseq
    %v2222 = vshrl.u32 %v2221, 7
    %v2223 = vsub.s32 1, %v2222
    %v2224 = vrot.slane %v2183, %v2223
    %v2225 = vlaneseq
    %v2226 = vshrl.u32 %v2225, 7
    %v2227 = vsub.s32 2, %v2226
    %v2228 = vrot.slane %v2183, %v2227
    %v2229 = vlaneseq
    %v2230 = vshrl.u32 %v2229, 7
    %v2231 = vsub.s32 3, %v2230
    %v2232 = vrot.slane %v2183, %v2231
    %v2237 = vadd.f32 %v2184, %v2220
    %v2238 = vadd.f32 %v2185, %v2224
    %v2239 = vadd.f32 %v2186, %v2228
    %v2240 = vadd.f32 %v2187, %v2232
    %v2241 = vadd.f32 %v2188, %v2220
    %v2242 = vadd.f32 %v2189, %v2224
    %v2243 = vadd.f32 %v2190, %v2228
    %v2244 = vadd.f32 %v2191, %v2232
    %v2245 = vadd.f32 %v2192, %v2220
    %v2246 = vadd.f32 %v2193, %v2224
    %v2247 = vadd.f32 %v2194, %v2228
    %v2248 = vadd.f32 %v2195, %v2232
    %v2249 = vadd.f32 %v2196, %v2220
    %v2250 = vadd.f32 %v2197, %v2224
    %v2251 = vadd.f32 %v2198, %v2228
    %v2252 = vadd.f32 %v2199, %v2232
    %v2253 = vadd.f32 %v2200, %v2220
    %v2254 = vadd.f32 %v2201, %v2224
    %v2255 = vadd.f32 %v2202, %v2228
    %v2256 = vadd.f32 %v2203, %v2232
    %v2257 = vadd.f32 %v2204, %v2220
    %v2258 = vadd.f32 %v2205, %v2224
    %v2259 = vadd.f32 %v2206, %v2228
    %v2260 = vadd.f32 %v2207, %v2232
    %v2261 = vadd.f32 %v2208, %v2220
    %v2262 = vadd.f32 %v2209, %v2224
    %v2263 = vadd.f32 %v2210, %v2228
    %v2264 = vadd.f32 %v2211, %v2232
    %v2265 = vadd.f32 %v2212, %v2220
    %v2266 = vadd.f32 %v2213, %v2224
    %v2267 = vadd.f32 %v2214, %v2228
    %v2268 = vadd.f32 %v2215, %v2232
    %v2269 = vmax.f32 %v2237, 0.0
    %v2270 = vmax.f32 %v2238, 0.0
    %v2271 = vmax.f32 %v2239, 0.0
    %v2272 = vmax.f32 %v2240, 0.0
    %v2273 = vmax.f32 %v2241, 0.0
    %v2274 = vmax.f32 %v2242, 0.0
    %v2275 = vmax.f32 %v2243, 0.0
    %v2276 = vmax.f32 %v2244, 0.0
    %v2277 = vmax.f32 %v2245, 0.0
    %v2278 = vmax.f32 %v2246, 0.0
    %v2279 = vmax.f32 %v2247, 0.0
    %v2280 = vmax.f32 %v2248, 0.0
    %v2281 = vmax.f32 %v2249, 0.0
    %v2282 = vmax.f32 %v2250, 0.0
    %v2283 = vmax.f32 %v2251, 0.0
    %v2284 = vmax.f32 %v2252, 0.0
    %v2285 = vmax.f32 %v2253, 0.0
    %v2286 = vmax.f32 %v2254, 0.0
    %v2287 = vmax.f32 %v2255, 0.0
    %v2288 = vmax.f32 %v2256, 0.0
    %v2289 = vmax.f32 %v2257, 0.0
    %v2290 = vmax.f32 %v2258, 0.0
    %v2291 = vmax.f32 %v2259, 0.0
    %v2292 = vmax.f32 %v2260, 0.0
    %v2293 = vmax.f32 %v2261, 0.0
    %v2294 = vmax.f32 %v2262, 0.0
    %v2295 = vmax.f32 %v2263, 0.0
    %v2296 = vmax.f32 %v2264, 0.0
    %v2297 = vmax.f32 %v2265, 0.0
    %v2298 = vmax.f32 %v2266, 0.0
    %v2299 = vmax.f32 %v2267, 0.0
    %v2300 = vmax.f32 %v2268, 0.0
    %v2301 = vpack.c.bf16 %v2273, %v2269
    %v2302 = vpack.c.bf16 %v2274, %v2270
    %v2303 = vpack.c.bf16 %v2275, %v2271
    %v2304 = vpack.c.bf16 %v2276, %v2272
    %v2305 = vpack.c.bf16 %v2281, %v2277
    %v2306 = vpack.c.bf16 %v2282, %v2278
    %v2307 = vpack.c.bf16 %v2283, %v2279
    %v2308 = vpack.c.bf16 %v2284, %v2280
    %v2309 = vpack.c.bf16 %v2289, %v2285
    %v2310 = vpack.c.bf16 %v2290, %v2286
    %v2311 = vpack.c.bf16 %v2291, %v2287
    %v2312 = vpack.c.bf16 %v2292, %v2288
    %v2313 = vpack.c.bf16 %v2297, %v2293
    %v2314 = vpack.c.bf16 %v2298, %v2294
    %v2315 = vpack.c.bf16 %v2299, %v2295
    %v2316 = vpack.c.bf16 %v2300, %v2296
    %v2317 = vld [vmem:[#allocation6] sm:$0xff]
    %v2318 = vld [vmem:[#allocation6 + $0x8] sm:$0xff]
    %v2319 = vld [vmem:[#allocation6 + $0x10] sm:$0xff]
    %v2320 = vld [vmem:[#allocation6 + $0x18] sm:$0xff]
    %v2321 = vld [vmem:[#allocation6 + $0x20] sm:$0xff]
    %v2322 = vld [vmem:[#allocation6 + $0x28] sm:$0xff]
    %v2323 = vld [vmem:[#allocation6 + $0x30] sm:$0xff]
    %v2324 = vld [vmem:[#allocation6 + $0x38] sm:$0xff]
    %v2325 = vld [vmem:[#allocation6 + $0x40] sm:$0xff]
    %v2326 = vld [vmem:[#allocation6 + $0x48] sm:$0xff]
    %v2327 = vld [vmem:[#allocation6 + $0x50] sm:$0xff]
    %v2328 = vld [vmem:[#allocation6 + $0x58] sm:$0xff]
    %v2329 = vld [vmem:[#allocation6 + $0x60] sm:$0xff]
    %v2330 = vld [vmem:[#allocation6 + $0x68] sm:$0xff]
    %v2331 = vld [vmem:[#allocation6 + $0x70] sm:$0xff]
    %v2332 = vld [vmem:[#allocation6 + $0x78] sm:$0xff]
    %v2333 = vld [vmem:[#allocation6 + $0x80] sm:$0xff]
    %v2334 = vld [vmem:[#allocation6 + $0x88] sm:$0xff]
    %v2335 = vld [vmem:[#allocation6 + $0x90] sm:$0xff]
    %v2336 = vld [vmem:[#allocation6 + $0x98] sm:$0xff]
    %v2337 = vld [vmem:[#allocation6 + $0xa0] sm:$0xff]
    %v2338 = vld [vmem:[#allocation6 + $0xa8] sm:$0xff]
    %v2339 = vld [vmem:[#allocation6 + $0xb0] sm:$0xff]
    %v2340 = vld [vmem:[#allocation6 + $0xb8] sm:$0xff]
    %v2341 = vld [vmem:[#allocation6 + $0xc0] sm:$0xff]
    %v2342 = vld [vmem:[#allocation6 + $0xc8] sm:$0xff]
    %v2343 = vld [vmem:[#allocation6 + $0xd0] sm:$0xff]
    %v2344 = vld [vmem:[#allocation6 + $0xd8] sm:$0xff]
    %v2345 = vld [vmem:[#allocation6 + $0xe0] sm:$0xff]
    %v2346 = vld [vmem:[#allocation6 + $0xe8] sm:$0xff]
    %v2347 = vld [vmem:[#allocation6 + $0xf0] sm:$0xff]
    %v2348 = vld [vmem:[#allocation6 + $0xf8] sm:$0xff]
    %v2349 = vld [vmem:[#allocation6 + $0x100] sm:$0xff]
    %v2350 = vld [vmem:[#allocation6 + $0x108] sm:$0xff]
    %v2351 = vld [vmem:[#allocation6 + $0x110] sm:$0xff]
    %v2352 = vld [vmem:[#allocation6 + $0x118] sm:$0xff]
    %v2353 = vld [vmem:[#allocation6 + $0x120] sm:$0xff]
    %v2354 = vld [vmem:[#allocation6 + $0x128] sm:$0xff]
    %v2355 = vld [vmem:[#allocation6 + $0x130] sm:$0xff]
    %v2356 = vld [vmem:[#allocation6 + $0x138] sm:$0xff]
    %v2357 = vld [vmem:[#allocation6 + $0x140] sm:$0xff]
    %v2358 = vld [vmem:[#allocation6 + $0x148] sm:$0xff]
    %v2359 = vld [vmem:[#allocation6 + $0x150] sm:$0xff]
    %v2360 = vld [vmem:[#allocation6 + $0x158] sm:$0xff]
    %v2361 = vld [vmem:[#allocation6 + $0x160] sm:$0xff]
    %v2362 = vld [vmem:[#allocation6 + $0x168] sm:$0xff]
    %v2363 = vld [vmem:[#allocation6 + $0x170] sm:$0xff]
    %v2364 = vld [vmem:[#allocation6 + $0x178] sm:$0xff]
    %v2365 = vld [vmem:[#allocation6 + $0x180] sm:$0xff]
    %v2366 = vld [vmem:[#allocation6 + $0x188] sm:$0xff]
    %v2367 = vld [vmem:[#allocation6 + $0x190] sm:$0xff]
    %v2368 = vld [vmem:[#allocation6 + $0x198] sm:$0xff]
    %v2369 = vld [vmem:[#allocation6 + $0x1a0] sm:$0xff]
    %v2370 = vld [vmem:[#allocation6 + $0x1a8] sm:$0xff]
    %v2371 = vld [vmem:[#allocation6 + $0x1b0] sm:$0xff]
    %v2372 = vld [vmem:[#allocation6 + $0x1b8] sm:$0xff]
    %v2373 = vld [vmem:[#allocation6 + $0x1c0] sm:$0xff]
    %v2374 = vld [vmem:[#allocation6 + $0x1c8] sm:$0xff]
    %v2375 = vld [vmem:[#allocation6 + $0x1d0] sm:$0xff]
    %v2376 = vld [vmem:[#allocation6 + $0x1d8] sm:$0xff]
    %v2377 = vld [vmem:[#allocation6 + $0x1e0] sm:$0xff]
    %v2378 = vld [vmem:[#allocation6 + $0x1e8] sm:$0xff]
    %v2379 = vld [vmem:[#allocation6 + $0x1f0] sm:$0xff]
    %v2380 = vld [vmem:[#allocation6 + $0x1f8] sm:$0xff]
    %v2381 = vld [vmem:[#allocation6 + $0x200] sm:$0xff]
    %v2382 = vld [vmem:[#allocation6 + $0x208] sm:$0xff]
    %v2383 = vld [vmem:[#allocation6 + $0x210] sm:$0xff]
    %v2384 = vld [vmem:[#allocation6 + $0x218] sm:$0xff]
    %v2385 = vld [vmem:[#allocation6 + $0x220] sm:$0xff]
    %v2386 = vld [vmem:[#allocation6 + $0x228] sm:$0xff]
    %v2387 = vld [vmem:[#allocation6 + $0x230] sm:$0xff]
    %v2388 = vld [vmem:[#allocation6 + $0x238] sm:$0xff]
    %v2389 = vld [vmem:[#allocation6 + $0x240] sm:$0xff]
    %v2390 = vld [vmem:[#allocation6 + $0x248] sm:$0xff]
    %v2391 = vld [vmem:[#allocation6 + $0x250] sm:$0xff]
    %v2392 = vld [vmem:[#allocation6 + $0x258] sm:$0xff]
    %v2393 = vld [vmem:[#allocation6 + $0x260] sm:$0xff]
    %v2394 = vld [vmem:[#allocation6 + $0x268] sm:$0xff]
    %v2395 = vld [vmem:[#allocation6 + $0x270] sm:$0xff]
    %v2396 = vld [vmem:[#allocation6 + $0x278] sm:$0xff]
    %v2397 = vld [vmem:[#allocation6 + $0x280] sm:$0xff]
    %v2398 = vld [vmem:[#allocation6 + $0x288] sm:$0xff]
    %v2399 = vld [vmem:[#allocation6 + $0x290] sm:$0xff]
    %v2400 = vld [vmem:[#allocation6 + $0x298] sm:$0xff]
    %v2401 = vld [vmem:[#allocation6 + $0x2a0] sm:$0xff]
    %v2402 = vld [vmem:[#allocation6 + $0x2a8] sm:$0xff]
    %v2403 = vld [vmem:[#allocation6 + $0x2b0] sm:$0xff]
    %v2404 = vld [vmem:[#allocation6 + $0x2b8] sm:$0xff]
    %v2405 = vld [vmem:[#allocation6 + $0x2c0] sm:$0xff]
    %v2406 = vld [vmem:[#allocation6 + $0x2c8] sm:$0xff]
    %v2407 = vld [vmem:[#allocation6 + $0x2d0] sm:$0xff]
    %v2408 = vld [vmem:[#allocation6 + $0x2d8] sm:$0xff]
    %v2409 = vld [vmem:[#allocation6 + $0x2e0] sm:$0xff]
    %v2410 = vld [vmem:[#allocation6 + $0x2e8] sm:$0xff]
    %v2411 = vld [vmem:[#allocation6 + $0x2f0] sm:$0xff]
    %v2412 = vld [vmem:[#allocation6 + $0x2f8] sm:$0xff]
    %v2413 = vld [vmem:[#allocation6 + $0x300] sm:$0xff]
    %v2414 = vld [vmem:[#allocation6 + $0x308] sm:$0xff]
    %v2415 = vld [vmem:[#allocation6 + $0x310] sm:$0xff]
    %v2416 = vld [vmem:[#allocation6 + $0x318] sm:$0xff]
    %v2417 = vld [vmem:[#allocation6 + $0x320] sm:$0xff]
    %v2418 = vld [vmem:[#allocation6 + $0x328] sm:$0xff]
    %v2419 = vld [vmem:[#allocation6 + $0x330] sm:$0xff]
    %v2420 = vld [vmem:[#allocation6 + $0x338] sm:$0xff]
    %v2421 = vld [vmem:[#allocation6 + $0x340] sm:$0xff]
    %v2422 = vld [vmem:[#allocation6 + $0x348] sm:$0xff]
    %v2423 = vld [vmem:[#allocation6 + $0x350] sm:$0xff]
    %v2424 = vld [vmem:[#allocation6 + $0x358] sm:$0xff]
    %v2425 = vld [vmem:[#allocation6 + $0x360] sm:$0xff]
    %v2426 = vld [vmem:[#allocation6 + $0x368] sm:$0xff]
    %v2427 = vld [vmem:[#allocation6 + $0x370] sm:$0xff]
    %v2428 = vld [vmem:[#allocation6 + $0x378] sm:$0xff]
    %v2429 = vld [vmem:[#allocation6 + $0x380] sm:$0xff]
    %v2430 = vld [vmem:[#allocation6 + $0x388] sm:$0xff]
    %v2431 = vld [vmem:[#allocation6 + $0x390] sm:$0xff]
    %v2432 = vld [vmem:[#allocation6 + $0x398] sm:$0xff]
    %v2433 = vld [vmem:[#allocation6 + $0x3a0] sm:$0xff]
    %v2434 = vld [vmem:[#allocation6 + $0x3a8] sm:$0xff]
    %v2435 = vld [vmem:[#allocation6 + $0x3b0] sm:$0xff]
    %v2436 = vld [vmem:[#allocation6 + $0x3b8] sm:$0xff]
    %v2437 = vld [vmem:[#allocation6 + $0x3c0] sm:$0xff]
    %v2438 = vld [vmem:[#allocation6 + $0x3c8] sm:$0xff]
    %v2439 = vld [vmem:[#allocation6 + $0x3d0] sm:$0xff]
    %v2440 = vld [vmem:[#allocation6 + $0x3d8] sm:$0xff]
    %v2441 = vld [vmem:[#allocation6 + $0x3e0] sm:$0xff]
    %v2442 = vld [vmem:[#allocation6 + $0x3e8] sm:$0xff]
    %v2443 = vld [vmem:[#allocation6 + $0x3f0] sm:$0xff]
    %v2444 = vld [vmem:[#allocation6 + $0x3f8] sm:$0xff]
    %v2573 = vunpack.c.l.b16 %v2317
    %v2574 = vunpack.c.h.b16 %v2317
    %v2575 = vunpack.c.l.b16 %v2318
    %v2576 = vunpack.c.h.b16 %v2318
    %v2577 = vunpack.c.l.b16 %v2319
    %v2578 = vunpack.c.h.b16 %v2319
    %v2579 = vunpack.c.l.b16 %v2320
    %v2580 = vunpack.c.h.b16 %v2320
    %v2581 = vunpack.c.l.b16 %v2321
    %v2582 = vunpack.c.h.b16 %v2321
    %v2583 = vunpack.c.l.b16 %v2322
    %v2584 = vunpack.c.h.b16 %v2322
    %v2585 = vunpack.c.l.b16 %v2323
    %v2586 = vunpack.c.h.b16 %v2323
    %v2587 = vunpack.c.l.b16 %v2324
    %v2588 = vunpack.c.h.b16 %v2324
    %v2589 = vunpack.c.l.b16 %v2325
    %v2590 = vunpack.c.h.b16 %v2325
    %v2591 = vunpack.c.l.b16 %v2326
    %v2592 = vunpack.c.h.b16 %v2326
    %v2593 = vunpack.c.l.b16 %v2327
    %v2594 = vunpack.c.h.b16 %v2327
    %v2595 = vunpack.c.l.b16 %v2328
    %v2596 = vunpack.c.h.b16 %v2328
    %v2597 = vunpack.c.l.b16 %v2329
    %v2598 = vunpack.c.h.b16 %v2329
    %v2599 = vunpack.c.l.b16 %v2330
    %v2600 = vunpack.c.h.b16 %v2330
    %v2601 = vunpack.c.l.b16 %v2331
    %v2602 = vunpack.c.h.b16 %v2331
    %v2603 = vunpack.c.l.b16 %v2332
    %v2604 = vunpack.c.h.b16 %v2332
    %v2605 = vunpack.c.l.b16 %v2333
    %v2606 = vunpack.c.h.b16 %v2333
    %v2607 = vunpack.c.l.b16 %v2334
    %v2608 = vunpack.c.h.b16 %v2334
    %v2609 = vunpack.c.l.b16 %v2335
    %v2610 = vunpack.c.h.b16 %v2335
    %v2611 = vunpack.c.l.b16 %v2336
    %v2612 = vunpack.c.h.b16 %v2336
    %v2613 = vunpack.c.l.b16 %v2337
    %v2614 = vunpack.c.h.b16 %v2337
    %v2615 = vunpack.c.l.b16 %v2338
    %v2616 = vunpack.c.h.b16 %v2338
    %v2617 = vunpack.c.l.b16 %v2339
    %v2618 = vunpack.c.h.b16 %v2339
    %v2619 = vunpack.c.l.b16 %v2340
    %v2620 = vunpack.c.h.b16 %v2340
    %v2621 = vunpack.c.l.b16 %v2341
    %v2622 = vunpack.c.h.b16 %v2341
    %v2623 = vunpack.c.l.b16 %v2342
    %v2624 = vunpack.c.h.b16 %v2342
    %v2625 = vunpack.c.l.b16 %v2343
    %v2626 = vunpack.c.h.b16 %v2343
    %v2627 = vunpack.c.l.b16 %v2344
    %v2628 = vunpack.c.h.b16 %v2344
    %v2629 = vunpack.c.l.b16 %v2345
    %v2630 = vunpack.c.h.b16 %v2345
    %v2631 = vunpack.c.l.b16 %v2346
    %v2632 = vunpack.c.h.b16 %v2346
    %v2633 = vunpack.c.l.b16 %v2347
    %v2634 = vunpack.c.h.b16 %v2347
    %v2635 = vunpack.c.l.b16 %v2348
    %v2636 = vunpack.c.h.b16 %v2348
    %v2637 = vunpack.c.l.b16 %v2349
    %v2638 = vunpack.c.h.b16 %v2349
    %v2639 = vunpack.c.l.b16 %v2350
    %v2640 = vunpack.c.h.b16 %v2350
    %v2641 = vunpack.c.l.b16 %v2351
    %v2642 = vunpack.c.h.b16 %v2351
    %v2643 = vunpack.c.l.b16 %v2352
    %v2644 = vunpack.c.h.b16 %v2352
    %v2645 = vunpack.c.l.b16 %v2353
    %v2646 = vunpack.c.h.b16 %v2353
    %v2647 = vunpack.c.l.b16 %v2354
    %v2648 = vunpack.c.h.b16 %v2354
    %v2649 = vunpack.c.l.b16 %v2355
    %v2650 = vunpack.c.h.b16 %v2355
    %v2651 = vunpack.c.l.b16 %v2356
    %v2652 = vunpack.c.h.b16 %v2356
    %v2653 = vunpack.c.l.b16 %v2357
    %v2654 = vunpack.c.h.b16 %v2357
    %v2655 = vunpack.c.l.b16 %v2358
    %v2656 = vunpack.c.h.b16 %v2358
    %v2657 = vunpack.c.l.b16 %v2359
    %v2658 = vunpack.c.h.b16 %v2359
    %v2659 = vunpack.c.l.b16 %v2360
    %v2660 = vunpack.c.h.b16 %v2360
    %v2661 = vunpack.c.l.b16 %v2361
    %v2662 = vunpack.c.h.b16 %v2361
    %v2663 = vunpack.c.l.b16 %v2362
    %v2664 = vunpack.c.h.b16 %v2362
    %v2665 = vunpack.c.l.b16 %v2363
    %v2666 = vunpack.c.h.b16 %v2363
    %v2667 = vunpack.c.l.b16 %v2364
    %v2668 = vunpack.c.h.b16 %v2364
    %v2669 = vunpack.c.l.b16 %v2365
    %v2670 = vunpack.c.h.b16 %v2365
    %v2671 = vunpack.c.l.b16 %v2366
    %v2672 = vunpack.c.h.b16 %v2366
    %v2673 = vunpack.c.l.b16 %v2367
    %v2674 = vunpack.c.h.b16 %v2367
    %v2675 = vunpack.c.l.b16 %v2368
    %v2676 = vunpack.c.h.b16 %v2368
    %v2677 = vunpack.c.l.b16 %v2369
    %v2678 = vunpack.c.h.b16 %v2369
    %v2679 = vunpack.c.l.b16 %v2370
    %v2680 = vunpack.c.h.b16 %v2370
    %v2681 = vunpack.c.l.b16 %v2371
    %v2682 = vunpack.c.h.b16 %v2371
    %v2683 = vunpack.c.l.b16 %v2372
    %v2684 = vunpack.c.h.b16 %v2372
    %v2685 = vunpack.c.l.b16 %v2373
    %v2686 = vunpack.c.h.b16 %v2373
    %v2687 = vunpack.c.l.b16 %v2374
    %v2688 = vunpack.c.h.b16 %v2374
    %v2689 = vunpack.c.l.b16 %v2375
    %v2690 = vunpack.c.h.b16 %v2375
    %v2691 = vunpack.c.l.b16 %v2376
    %v2692 = vunpack.c.h.b16 %v2376
    %v2693 = vunpack.c.l.b16 %v2377
    %v2694 = vunpack.c.h.b16 %v2377
    %v2695 = vunpack.c.l.b16 %v2378
    %v2696 = vunpack.c.h.b16 %v2378
    %v2697 = vunpack.c.l.b16 %v2379
    %v2698 = vunpack.c.h.b16 %v2379
    %v2699 = vunpack.c.l.b16 %v2380
    %v2700 = vunpack.c.h.b16 %v2380
    %v2701 = vunpack.c.l.b16 %v2381
    %v2702 = vunpack.c.h.b16 %v2381
    %v2703 = vunpack.c.l.b16 %v2382
    %v2704 = vunpack.c.h.b16 %v2382
    %v2705 = vunpack.c.l.b16 %v2383
    %v2706 = vunpack.c.h.b16 %v2383
    %v2707 = vunpack.c.l.b16 %v2384
    %v2708 = vunpack.c.h.b16 %v2384
    %v2709 = vunpack.c.l.b16 %v2385
    %v2710 = vunpack.c.h.b16 %v2385
    %v2711 = vunpack.c.l.b16 %v2386
    %v2712 = vunpack.c.h.b16 %v2386
    %v2713 = vunpack.c.l.b16 %v2387
    %v2714 = vunpack.c.h.b16 %v2387
    %v2715 = vunpack.c.l.b16 %v2388
    %v2716 = vunpack.c.h.b16 %v2388
    %v2717 = vunpack.c.l.b16 %v2389
    %v2718 = vunpack.c.h.b16 %v2389
    %v2719 = vunpack.c.l.b16 %v2390
    %v2720 = vunpack.c.h.b16 %v2390
    %v2721 = vunpack.c.l.b16 %v2391
    %v2722 = vunpack.c.h.b16 %v2391
    %v2723 = vunpack.c.l.b16 %v2392
    %v2724 = vunpack.c.h.b16 %v2392
    %v2725 = vunpack.c.l.b16 %v2393
    %v2726 = vunpack.c.h.b16 %v2393
    %v2727 = vunpack.c.l.b16 %v2394
    %v2728 = vunpack.c.h.b16 %v2394
    %v2729 = vunpack.c.l.b16 %v2395
    %v2730 = vunpack.c.h.b16 %v2395
    %v2731 = vunpack.c.l.b16 %v2396
    %v2732 = vunpack.c.h.b16 %v2396
    %v2733 = vunpack.c.l.b16 %v2397
    %v2734 = vunpack.c.h.b16 %v2397
    %v2735 = vunpack.c.l.b16 %v2398
    %v2736 = vunpack.c.h.b16 %v2398
    %v2737 = vunpack.c.l.b16 %v2399
    %v2738 = vunpack.c.h.b16 %v2399
    %v2739 = vunpack.c.l.b16 %v2400
    %v2740 = vunpack.c.h.b16 %v2400
    %v2741 = vunpack.c.l.b16 %v2401
    %v2742 = vunpack.c.h.b16 %v2401
    %v2743 = vunpack.c.l.b16 %v2402
    %v2744 = vunpack.c.h.b16 %v2402
    %v2745 = vunpack.c.l.b16 %v2403
    %v2746 = vunpack.c.h.b16 %v2403
    %v2747 = vunpack.c.l.b16 %v2404
    %v2748 = vunpack.c.h.b16 %v2404
    %v2749 = vunpack.c.l.b16 %v2405
    %v2750 = vunpack.c.h.b16 %v2405
    %v2751 = vunpack.c.l.b16 %v2406
    %v2752 = vunpack.c.h.b16 %v2406
    %v2753 = vunpack.c.l.b16 %v2407
    %v2754 = vunpack.c.h.b16 %v2407
    %v2755 = vunpack.c.l.b16 %v2408
    %v2756 = vunpack.c.h.b16 %v2408
    %v2757 = vunpack.c.l.b16 %v2409
    %v2758 = vunpack.c.h.b16 %v2409
    %v2759 = vunpack.c.l.b16 %v2410
    %v2760 = vunpack.c.h.b16 %v2410
    %v2761 = vunpack.c.l.b16 %v2411
    %v2762 = vunpack.c.h.b16 %v2411
    %v2763 = vunpack.c.l.b16 %v2412
    %v2764 = vunpack.c.h.b16 %v2412
    %v2765 = vunpack.c.l.b16 %v2413
    %v2766 = vunpack.c.h.b16 %v2413
    %v2767 = vunpack.c.l.b16 %v2414
    %v2768 = vunpack.c.h.b16 %v2414
    %v2769 = vunpack.c.l.b16 %v2415
    %v2770 = vunpack.c.h.b16 %v2415
    %v2771 = vunpack.c.l.b16 %v2416
    %v2772 = vunpack.c.h.b16 %v2416
    %v2773 = vunpack.c.l.b16 %v2417
    %v2774 = vunpack.c.h.b16 %v2417
    %v2775 = vunpack.c.l.b16 %v2418
    %v2776 = vunpack.c.h.b16 %v2418
    %v2777 = vunpack.c.l.b16 %v2419
    %v2778 = vunpack.c.h.b16 %v2419
    %v2779 = vunpack.c.l.b16 %v2420
    %v2780 = vunpack.c.h.b16 %v2420
    %v2781 = vunpack.c.l.b16 %v2421
    %v2782 = vunpack.c.h.b16 %v2421
    %v2783 = vunpack.c.l.b16 %v2422
    %v2784 = vunpack.c.h.b16 %v2422
    %v2785 = vunpack.c.l.b16 %v2423
    %v2786 = vunpack.c.h.b16 %v2423
    %v2787 = vunpack.c.l.b16 %v2424
    %v2788 = vunpack.c.h.b16 %v2424
    %v2789 = vunpack.c.l.b16 %v2425
    %v2790 = vunpack.c.h.b16 %v2425
    %v2791 = vunpack.c.l.b16 %v2426
    %v2792 = vunpack.c.h.b16 %v2426
    %v2793 = vunpack.c.l.b16 %v2427
    %v2794 = vunpack.c.h.b16 %v2427
    %v2795 = vunpack.c.l.b16 %v2428
    %v2796 = vunpack.c.h.b16 %v2428
    %v2797 = vunpack.c.l.b16 %v2429
    %v2798 = vunpack.c.h.b16 %v2429
    %v2799 = vunpack.c.l.b16 %v2430
    %v2800 = vunpack.c.h.b16 %v2430
    %v2801 = vunpack.c.l.b16 %v2431
    %v2802 = vunpack.c.h.b16 %v2431
    %v2803 = vunpack.c.l.b16 %v2432
    %v2804 = vunpack.c.h.b16 %v2432
    %v2805 = vunpack.c.l.b16 %v2433
    %v2806 = vunpack.c.h.b16 %v2433
    %v2807 = vunpack.c.l.b16 %v2434
    %v2808 = vunpack.c.h.b16 %v2434
    %v2809 = vunpack.c.l.b16 %v2435
    %v2810 = vunpack.c.h.b16 %v2435
    %v2811 = vunpack.c.l.b16 %v2436
    %v2812 = vunpack.c.h.b16 %v2436
    %v2813 = vunpack.c.l.b16 %v2437
    %v2814 = vunpack.c.h.b16 %v2437
    %v2815 = vunpack.c.l.b16 %v2438
    %v2816 = vunpack.c.h.b16 %v2438
    %v2817 = vunpack.c.l.b16 %v2439
    %v2818 = vunpack.c.h.b16 %v2439
    %v2819 = vunpack.c.l.b16 %v2440
    %v2820 = vunpack.c.h.b16 %v2440
    %v2821 = vunpack.c.l.b16 %v2441
    %v2822 = vunpack.c.h.b16 %v2441
    %v2823 = vunpack.c.l.b16 %v2442
    %v2824 = vunpack.c.h.b16 %v2442
    %v2825 = vunpack.c.l.b16 %v2443
    %v2826 = vunpack.c.h.b16 %v2443
    %v2827 = vunpack.c.l.b16 %v2444
    %v2828 = vunpack.c.h.b16 %v2444
    %v2829 = vpack.c.b16 %v2577, %v2573
    %v2830 = vpack.c.b16 %v2578, %v2574
    %v2831 = vpack.c.b16 %v2579, %v2575
    %v2832 = vpack.c.b16 %v2580, %v2576
    %v2833 = vpack.c.b16 %v2585, %v2581
    %v2834 = vpack.c.b16 %v2586, %v2582
    %v2835 = vpack.c.b16 %v2587, %v2583
    %v2836 = vpack.c.b16 %v2588, %v2584
    %v2837 = vpack.c.b16 %v2593, %v2589
    %v2838 = vpack.c.b16 %v2594, %v2590
    %v2839 = vpack.c.b16 %v2595, %v2591
    %v2840 = vpack.c.b16 %v2596, %v2592
    %v2841 = vpack.c.b16 %v2601, %v2597
    %v2842 = vpack.c.b16 %v2602, %v2598
    %v2843 = vpack.c.b16 %v2603, %v2599
    %v2844 = vpack.c.b16 %v2604, %v2600
    %v2845 = vpack.c.b16 %v2609, %v2605
    %v2846 = vpack.c.b16 %v2610, %v2606
    %v2847 = vpack.c.b16 %v2611, %v2607
    %v2848 = vpack.c.b16 %v2612, %v2608
    %v2849 = vpack.c.b16 %v2617, %v2613
    %v2850 = vpack.c.b16 %v2618, %v2614
    %v2851 = vpack.c.b16 %v2619, %v2615
    %v2852 = vpack.c.b16 %v2620, %v2616
    %v2853 = vpack.c.b16 %v2625, %v2621
    %v2854 = vpack.c.b16 %v2626, %v2622
    %v2855 = vpack.c.b16 %v2627, %v2623
    %v2856 = vpack.c.b16 %v2628, %v2624
    %v2857 = vpack.c.b16 %v2633, %v2629
    %v2858 = vpack.c.b16 %v2634, %v2630
    %v2859 = vpack.c.b16 %v2635, %v2631
    %v2860 = vpack.c.b16 %v2636, %v2632
    %v2861 = vpack.c.b16 %v2641, %v2637
    %v2862 = vpack.c.b16 %v2642, %v2638
    %v2863 = vpack.c.b16 %v2643, %v2639
    %v2864 = vpack.c.b16 %v2644, %v2640
    %v2865 = vpack.c.b16 %v2649, %v2645
    %v2866 = vpack.c.b16 %v2650, %v2646
    %v2867 = vpack.c.b16 %v2651, %v2647
    %v2868 = vpack.c.b16 %v2652, %v2648
    %v2869 = vpack.c.b16 %v2657, %v2653
    %v2870 = vpack.c.b16 %v2658, %v2654
    %v2871 = vpack.c.b16 %v2659, %v2655
    %v2872 = vpack.c.b16 %v2660, %v2656
    %v2873 = vpack.c.b16 %v2665, %v2661
    %v2874 = vpack.c.b16 %v2666, %v2662
    %v2875 = vpack.c.b16 %v2667, %v2663
    %v2876 = vpack.c.b16 %v2668, %v2664
    %v2877 = vpack.c.b16 %v2673, %v2669
    %v2878 = vpack.c.b16 %v2674, %v2670
    %v2879 = vpack.c.b16 %v2675, %v2671
    %v2880 = vpack.c.b16 %v2676, %v2672
    %v2881 = vpack.c.b16 %v2681, %v2677
    %v2882 = vpack.c.b16 %v2682, %v2678
    %v2883 = vpack.c.b16 %v2683, %v2679
    %v2884 = vpack.c.b16 %v2684, %v2680
    %v2885 = vpack.c.b16 %v2689, %v2685
    %v2886 = vpack.c.b16 %v2690, %v2686
    %v2887 = vpack.c.b16 %v2691, %v2687
    %v2888 = vpack.c.b16 %v2692, %v2688
    %v2889 = vpack.c.b16 %v2697, %v2693
    %v2890 = vpack.c.b16 %v2698, %v2694
    %v2891 = vpack.c.b16 %v2699, %v2695
    %v2892 = vpack.c.b16 %v2700, %v2696
    %v2893 = vpack.c.b16 %v2705, %v2701
    %v2894 = vpack.c.b16 %v2706, %v2702
    %v2895 = vpack.c.b16 %v2707, %v2703
    %v2896 = vpack.c.b16 %v2708, %v2704
    %v2897 = vpack.c.b16 %v2713, %v2709
    %v2898 = vpack.c.b16 %v2714, %v2710
    %v2899 = vpack.c.b16 %v2715, %v2711
    %v2900 = vpack.c.b16 %v2716, %v2712
    %v2901 = vpack.c.b16 %v2721, %v2717
    %v2902 = vpack.c.b16 %v2722, %v2718
    %v2903 = vpack.c.b16 %v2723, %v2719
    %v2904 = vpack.c.b16 %v2724, %v2720
    %v2905 = vpack.c.b16 %v2729, %v2725
    %v2906 = vpack.c.b16 %v2730, %v2726
    %v2907 = vpack.c.b16 %v2731, %v2727
    %v2908 = vpack.c.b16 %v2732, %v2728
    %v2909 = vpack.c.b16 %v2737, %v2733
    %v2910 = vpack.c.b16 %v2738, %v2734
    %v2911 = vpack.c.b16 %v2739, %v2735
    %v2912 = vpack.c.b16 %v2740, %v2736
    %v2913 = vpack.c.b16 %v2745, %v2741
    %v2914 = vpack.c.b16 %v2746, %v2742
    %v2915 = vpack.c.b16 %v2747, %v2743
    %v2916 = vpack.c.b16 %v2748, %v2744
    %v2917 = vpack.c.b16 %v2753, %v2749
    %v2918 = vpack.c.b16 %v2754, %v2750
    %v2919 = vpack.c.b16 %v2755, %v2751
    %v2920 = vpack.c.b16 %v2756, %v2752
    %v2921 = vpack.c.b16 %v2761, %v2757
    %v2922 = vpack.c.b16 %v2762, %v2758
    %v2923 = vpack.c.b16 %v2763, %v2759
    %v2924 = vpack.c.b16 %v2764, %v2760
    %v2925 = vpack.c.b16 %v2769, %v2765
    %v2926 = vpack.c.b16 %v2770, %v2766
    %v2927 = vpack.c.b16 %v2771, %v2767
    %v2928 = vpack.c.b16 %v2772, %v2768
    %v2929 = vpack.c.b16 %v2777, %v2773
    %v2930 = vpack.c.b16 %v2778, %v2774
    %v2931 = vpack.c.b16 %v2779, %v2775
    %v2932 = vpack.c.b16 %v2780, %v2776
    %v2933 = vpack.c.b16 %v2785, %v2781
    %v2934 = vpack.c.b16 %v2786, %v2782
    %v2935 = vpack.c.b16 %v2787, %v2783
    %v2936 = vpack.c.b16 %v2788, %v2784
    %v2937 = vpack.c.b16 %v2793, %v2789
    %v2938 = vpack.c.b16 %v2794, %v2790
    %v2939 = vpack.c.b16 %v2795, %v2791
    %v2940 = vpack.c.b16 %v2796, %v2792
    %v2941 = vpack.c.b16 %v2801, %v2797
    %v2942 = vpack.c.b16 %v2802, %v2798
    %v2943 = vpack.c.b16 %v2803, %v2799
    %v2944 = vpack.c.b16 %v2804, %v2800
    %v2945 = vpack.c.b16 %v2809, %v2805
    %v2946 = vpack.c.b16 %v2810, %v2806
    %v2947 = vpack.c.b16 %v2811, %v2807
    %v2948 = vpack.c.b16 %v2812, %v2808
    %v2949 = vpack.c.b16 %v2817, %v2813
    %v2950 = vpack.c.b16 %v2818, %v2814
    %v2951 = vpack.c.b16 %v2819, %v2815
    %v2952 = vpack.c.b16 %v2820, %v2816
    %v2953 = vpack.c.b16 %v2825, %v2821
    %v2954 = vpack.c.b16 %v2826, %v2822
    %v2955 = vpack.c.b16 %v2827, %v2823
    %v2956 = vpack.c.b16 %v2828, %v2824
    %3085 = vmatprep.subr.bf16.mxu0 %v2830
    %3086 = vmatpush1.bf16.msra.mxu0 %v2829
    %3087 = vmatprep.subr.bf16.mxu0 %v2834
    %3088 = vmatpush1.bf16.msra.mxu0 %v2833
    %3089 = vmatprep.subr.bf16.mxu0 %v2838
    %3090 = vmatpush1.bf16.msra.mxu0 %v2837
    %3091 = vmatprep.subr.bf16.mxu0 %v2842
    %3092 = vmatpush1.bf16.msra.mxu0 %v2841
    %3093 = vmatprep.subr.bf16.mxu0 %v2846
    %3094 = vmatpush1.bf16.msra.mxu0 %v2845
    %3095 = vmatprep.subr.bf16.mxu0 %v2850
    %3096 = vmatpush1.bf16.msra.mxu0 %v2849
    %3097 = vmatprep.subr.bf16.mxu0 %v2854
    %3098 = vmatpush1.bf16.msra.mxu0 %v2853
    %3099 = vmatprep.subr.bf16.mxu0 %v2858
    %3100 = vmatpush1.bf16.msra.mxu0 %v2857
    %3101 = vmatprep.subr.bf16.mxu0 %v2862
    %3102 = vmatpush1.bf16.msra.mxu0 %v2861
    %3103 = vmatprep.subr.bf16.mxu0 %v2866
    %3104 = vmatpush1.bf16.msra.mxu0 %v2865
    %3105 = vmatprep.subr.bf16.mxu0 %v2870
    %3106 = vmatpush1.bf16.msra.mxu0 %v2869
    %3107 = vmatprep.subr.bf16.mxu0 %v2874
    %3108 = vmatpush1.bf16.msra.mxu0 %v2873
    %3109 = vmatprep.subr.bf16.mxu0 %v2878
    %3110 = vmatpush1.bf16.msra.mxu0 %v2877
    %3111 = vmatprep.subr.bf16.mxu0 %v2882
    %3112 = vmatpush1.bf16.msra.mxu0 %v2881
    %3113 = vmatprep.subr.bf16.mxu0 %v2886
    %3114 = vmatpush1.bf16.msra.mxu0 %v2885
    %3115 = vmatprep.subr.bf16.mxu0 %v2890
    %3116 = vmatpush1.bf16.msra.mxu0 %v2889
    %3117 = vmatprep.mubr.bf16.mxu0 %v2302
    %3118 = vmatmul.mubr.bf16.gmra.mrb[0].mxu0 %v2301
    %v3119 = vpop.f32.mrb[0].mxu0
    %v3120 = vadd.f32 0.0, %v3119
    %v3121 = vpop.f32.mrb[0].mxu0
    %v3122 = vadd.f32 0.0, %v3121
    %v3123 = vpop.f32.mrb[0].mxu0
    %v3124 = vadd.f32 0.0, %v3123
    %v3125 = vpop.f32.mrb[0].mxu0
    %v3126 = vadd.f32 0.0, %v3125
    %3127 = vmatprep.mubr.bf16.mxu0 %v2306
    %3128 = vmatmul.mubr.bf16.gmra.mrb[0].mxu0 %v2305
    %v3129 = vpop.f32.mrb[0].mxu0
    %v3130 = vadd.f32 0.0, %v3129
    %v3131 = vpop.f32.mrb[0].mxu0
    %v3132 = vadd.f32 0.0, %v3131
    %v3133 = vpop.f32.mrb[0].mxu0
    %v3134 = vadd.f32 0.0, %v3133
    %v3135 = vpop.f32.mrb[0].mxu0
    %v3136 = vadd.f32 0.0, %v3135
    %3137 = vmatprep.mubr.bf16.mxu0 %v2310
    %3138 = vmatmul.mubr.bf16.gmra.mrb[0].mxu0 %v2309
    %v3139 = vpop.f32.mrb[0].mxu0
    %v3140 = vadd.f32 0.0, %v3139
    %v3141 = vpop.f32.mrb[0].mxu0
    %v3142 = vadd.f32 0.0, %v3141
    %v3143 = vpop.f32.mrb[0].mxu0
    %v3144 = vadd.f32 0.0, %v3143
    %v3145 = vpop.f32.mrb[0].mxu0
    %v3146 = vadd.f32 0.0, %v3145
    %3147 = vmatprep.mubr.bf16.mxu0 %v2314
    %3148 = vmatmul.mubr.bf16.gmra.mrb[0].mxu0 %v2313
    %v3149 = vpop.f32.mrb[0].mxu0
    %v3150 = vadd.f32 0.0, %v3149
    %v3151 = vpop.f32.mrb[0].mxu0
    %v3152 = vadd.f32 0.0, %v3151
    %v3153 = vpop.f32.mrb[0].mxu0
    %v3154 = vadd.f32 0.0, %v3153
    %v3155 = vpop.f32.mrb[0].mxu0
    %v3156 = vadd.f32 0.0, %v3155
    %3157 = vdwg.mxu0
    %3158 = vmatprep.subr.bf16.mxu0 %v2894
    %3159 = vmatpush1.bf16.msra.mxu0 %v2893
    %3160 = vmatprep.subr.bf16.mxu0 %v2898
    %3161 = vmatpush1.bf16.msra.mxu0 %v2897
    %3162 = vmatprep.subr.bf16.mxu0 %v2902
    %3163 = vmatpush1.bf16.msra.mxu0 %v2901
    %3164 = vmatprep.subr.bf16.mxu0 %v2906
    %3165 = vmatpush1.bf16.msra.mxu0 %v2905
    %3166 = vmatprep.subr.bf16.mxu0 %v2910
    %3167 = vmatpush1.bf16.msra.mxu0 %v2909
    %3168 = vmatprep.subr.bf16.mxu0 %v2914
    %3169 = vmatpush1.bf16.msra.mxu0 %v2913
    %3170 = vmatprep.subr.bf16.mxu0 %v2918
    %3171 = vmatpush1.bf16.msra.mxu0 %v2917
    %3172 = vmatprep.subr.bf16.mxu0 %v2922
    %3173 = vmatpush1.bf16.msra.mxu0 %v2921
    %3174 = vmatprep.subr.bf16.mxu0 %v2926
    %3175 = vmatpush1.bf16.msra.mxu0 %v2925
    %3176 = vmatprep.subr.bf16.mxu0 %v2930
    %3177 = vmatpush1.bf16.msra.mxu0 %v2929
    %3178 = vmatprep.subr.bf16.mxu0 %v2934
    %3179 = vmatpush1.bf16.msra.mxu0 %v2933
    %3180 = vmatprep.subr.bf16.mxu0 %v2938
    %3181 = vmatpush1.bf16.msra.mxu0 %v2937
    %3182 = vmatprep.subr.bf16.mxu0 %v2942
    %3183 = vmatpush1.bf16.msra.mxu0 %v2941
    %3184 = vmatprep.subr.bf16.mxu0 %v2946
    %3185 = vmatpush1.bf16.msra.mxu0 %v2945
    %3186 = vmatprep.subr.bf16.mxu0 %v2950
    %3187 = vmatpush1.bf16.msra.mxu0 %v2949
    %3188 = vmatprep.subr.bf16.mxu0 %v2954
    %3189 = vmatpush1.bf16.msra.mxu0 %v2953
    %3190 = vmatprep.mubr.bf16.mxu0 %v2304
    %3191 = vmatmul.mubr.bf16.gmra.mrb[0].mxu0 %v2303
    %v3192 = vpop.f32.mrb[0].mxu0
    %v3193 = vadd.f32 %v3120, %v3192
    %v3194 = vpop.f32.mrb[0].mxu0
    %v3195 = vadd.f32 %v3122, %v3194
    %v3196 = vpop.f32.mrb[0].mxu0
    %v3197 = vadd.f32 %v3124, %v3196
    %v3198 = vpop.f32.mrb[0].mxu0
    %v3199 = vadd.f32 %v3126, %v3198
    %3200 = vmatprep.mubr.bf16.mxu0 %v2308
    %3201 = vmatmul.mubr.bf16.gmra.mrb[0].mxu0 %v2307
    %v3202 = vpop.f32.mrb[0].mxu0
    %v3203 = vadd.f32 %v3130, %v3202
    %v3204 = vpop.f32.mrb[0].mxu0
    %v3205 = vadd.f32 %v3132, %v3204
    %v3206 = vpop.f32.mrb[0].mxu0
    %v3207 = vadd.f32 %v3134, %v3206
    %v3208 = vpop.f32.mrb[0].mxu0
    %v3209 = vadd.f32 %v3136, %v3208
    %3210 = vmatprep.mubr.bf16.mxu0 %v2312
    %3211 = vmatmul.mubr.bf16.gmra.mrb[0].mxu0 %v2311
    %v3212 = vpop.f32.mrb[0].mxu0
    %v3213 = vadd.f32 %v3140, %v3212
    %v3214 = vpop.f32.mrb[0].mxu0
    %v3215 = vadd.f32 %v3142, %v3214
    %v3216 = vpop.f32.mrb[0].mxu0
    %v3217 = vadd.f32 %v3144, %v3216
    %v3218 = vpop.f32.mrb[0].mxu0
    %v3219 = vadd.f32 %v3146, %v3218
    %3220 = vmatprep.mubr.bf16.mxu0 %v2316
    %3221 = vmatmul.mubr.bf16.gmra.mrb[0].mxu0 %v2315
    %v3222 = vpop.f32.mrb[0].mxu0
    %v3223 = vadd.f32 %v3150, %v3222
    %v3224 = vpop.f32.mrb[0].mxu0
    %v3225 = vadd.f32 %v3152, %v3224
    %v3226 = vpop.f32.mrb[0].mxu0
    %v3227 = vadd.f32 %v3154, %v3226
    %v3228 = vpop.f32.mrb[0].mxu0
    %v3229 = vadd.f32 %v3156, %v3228
    %3230 = vdwg.mxu0
    %3231 = vmatprep.subr.bf16.mxu0 %v2832
    %3232 = vmatpush1.bf16.msra.mxu0 %v2831
    %3233 = vmatprep.subr.bf16.mxu0 %v2836
    %3234 = vmatpush1.bf16.msra.mxu0 %v2835
    %3235 = vmatprep.subr.bf16.mxu0 %v2840
    %3236 = vmatpush1.bf16.msra.mxu0 %v2839
    %3237 = vmatprep.subr.bf16.mxu0 %v2844
    %3238 = vmatpush1.bf16.msra.mxu0 %v2843
    %3239 = vmatprep.subr.bf16.mxu0 %v2848
    %3240 = vmatpush1.bf16.msra.mxu0 %v2847
    %3241 = vmatprep.subr.bf16.mxu0 %v2852
    %3242 = vmatpush1.bf16.msra.mxu0 %v2851
    %3243 = vmatprep.subr.bf16.mxu0 %v2856
    %3244 = vmatpush1.bf16.msra.mxu0 %v2855
    %3245 = vmatprep.subr.bf16.mxu0 %v2860
    %3246 = vmatpush1.bf16.msra.mxu0 %v2859
    %3247 = vmatprep.subr.bf16.mxu0 %v2864
    %3248 = vmatpush1.bf16.msra.mxu0 %v2863
    %3249 = vmatprep.subr.bf16.mxu0 %v2868
    %3250 = vmatpush1.bf16.msra.mxu0 %v2867
    %3251 = vmatprep.subr.bf16.mxu0 %v2872
    %3252 = vmatpush1.bf16.msra.mxu0 %v2871
    %3253 = vmatprep.subr.bf16.mxu0 %v2876
    %3254 = vmatpush1.bf16.msra.mxu0 %v2875
    %3255 = vmatprep.subr.bf16.mxu0 %v2880
    %3256 = vmatpush1.bf16.msra.mxu0 %v2879
    %3257 = vmatprep.subr.bf16.mxu0 %v2884
    %3258 = vmatpush1.bf16.msra.mxu0 %v2883
    %3259 = vmatprep.subr.bf16.mxu0 %v2888
    %3260 = vmatpush1.bf16.msra.mxu0 %v2887
    %3261 = vmatprep.subr.bf16.mxu0 %v2892
    %3262 = vmatpush1.bf16.msra.mxu0 %v2891
    %3263 = vmatprep.mubr.bf16.mxu0 %v2302
    %3264 = vmatmul.mubr.bf16.gmra.mrb[0].mxu0 %v2301
    %v3265 = vpop.f32.mrb[0].mxu0
    %v3266 = vadd.f32 0.0, %v3265
    %v3267 = vpop.f32.mrb[0].mxu0
    %v3268 = vadd.f32 0.0, %v3267
    %v3269 = vpop.f32.mrb[0].mxu0
    %v3270 = vadd.f32 0.0, %v3269
    %v3271 = vpop.f32.mrb[0].mxu0
    %v3272 = vadd.f32 0.0, %v3271
    %3273 = vmatprep.mubr.bf16.mxu0 %v2306
    %3274 = vmatmul.mubr.bf16.gmra.mrb[0].mxu0 %v2305
    %v3275 = vpop.f32.mrb[0].mxu0
    %v3276 = vadd.f32 0.0, %v3275
    %v3277 = vpop.f32.mrb[0].mxu0
    %v3278 = vadd.f32 0.0, %v3277
    %v3279 = vpop.f32.mrb[0].mxu0
    %v3280 = vadd.f32 0.0, %v3279
    %v3281 = vpop.f32.mrb[0].mxu0
    %v3282 = vadd.f32 0.0, %v3281
    %3283 = vmatprep.mubr.bf16.mxu0 %v2310
    %3284 = vmatmul.mubr.bf16.gmra.mrb[0].mxu0 %v2309
    %v3285 = vpop.f32.mrb[0].mxu0
    %v3286 = vadd.f32 0.0, %v3285
    %v3287 = vpop.f32.mrb[0].mxu0
    %v3288 = vadd.f32 0.0, %v3287
    %v3289 = vpop.f32.mrb[0].mxu0
    %v3290 = vadd.f32 0.0, %v3289
    %v3291 = vpop.f32.mrb[0].mxu0
    %v3292 = vadd.f32 0.0, %v3291
    %3293 = vmatprep.mubr.bf16.mxu0 %v2314
    %3294 = vmatmul.mubr.bf16.gmra.mrb[0].mxu0 %v2313
    %v3295 = vpop.f32.mrb[0].mxu0
    %v3296 = vadd.f32 0.0, %v3295
    %v3297 = vpop.f32.mrb[0].mxu0
    %v3298 = vadd.f32 0.0, %v3297
    %v3299 = vpop.f32.mrb[0].mxu0
    %v3300 = vadd.f32 0.0, %v3299
    %v3301 = vpop.f32.mrb[0].mxu0
    %v3302 = vadd.f32 0.0, %v3301
    %3303 = vdwg.mxu0
    %3304 = vmatprep.subr.bf16.mxu0 %v2896
    %3305 = vmatpush1.bf16.msra.mxu0 %v2895
    %3306 = vmatprep.subr.bf16.mxu0 %v2900
    %3307 = vmatpush1.bf16.msra.mxu0 %v2899
    %3308 = vmatprep.subr.bf16.mxu0 %v2904
    %3309 = vmatpush1.bf16.msra.mxu0 %v2903
    %3310 = vmatprep.subr.bf16.mxu0 %v2908
    %3311 = vmatpush1.bf16.msra.mxu0 %v2907
    %3312 = vmatprep.subr.bf16.mxu0 %v2912
    %3313 = vmatpush1.bf16.msra.mxu0 %v2911
    %3314 = vmatprep.subr.bf16.mxu0 %v2916
    %3315 = vmatpush1.bf16.msra.mxu0 %v2915
    %3316 = vmatprep.subr.bf16.mxu0 %v2920
    %3317 = vmatpush1.bf16.msra.mxu0 %v2919
    %3318 = vmatprep.subr.bf16.mxu0 %v2924
    %3319 = vmatpush1.bf16.msra.mxu0 %v2923
    %3320 = vmatprep.subr.bf16.mxu0 %v2928
    %3321 = vmatpush1.bf16.msra.mxu0 %v2927
    %3322 = vmatprep.subr.bf16.mxu0 %v2932
    %3323 = vmatpush1.bf16.msra.mxu0 %v2931
    %3324 = vmatprep.subr.bf16.mxu0 %v2936
    %3325 = vmatpush1.bf16.msra.mxu0 %v2935
    %3326 = vmatprep.subr.bf16.mxu0 %v2940
    %3327 = vmatpush1.bf16.msra.mxu0 %v2939
    %3328 = vmatprep.subr.bf16.mxu0 %v2944
    %3329 = vmatpush1.bf16.msra.mxu0 %v2943
    %3330 = vmatprep.subr.bf16.mxu0 %v2948
    %3331 = vmatpush1.bf16.msra.mxu0 %v2947
    %3332 = vmatprep.subr.bf16.mxu0 %v2952
    %3333 = vmatpush1.bf16.msra.mxu0 %v2951
    %3334 = vmatprep.subr.bf16.mxu0 %v2956
    %3335 = vmatpush1.bf16.msra.mxu0 %v2955
    %3336 = vmatprep.mubr.bf16.mxu0 %v2304
    %3337 = vmatmul.mubr.bf16.gmra.mrb[0].mxu0 %v2303
    %v3338 = vpop.f32.mrb[0].mxu0
    %v3339 = vadd.f32 %v3266, %v3338
    %v3340 = vpop.f32.mrb[0].mxu0
    %v3341 = vadd.f32 %v3268, %v3340
    %v3342 = vpop.f32.mrb[0].mxu0
    %v3343 = vadd.f32 %v3270, %v3342
    %v3344 = vpop.f32.mrb[0].mxu0
    %v3345 = vadd.f32 %v3272, %v3344
    %3346 = vmatprep.mubr.bf16.mxu0 %v2308
    %3347 = vmatmul.mubr.bf16.gmra.mrb[0].mxu0 %v2307
    %v3348 = vpop.f32.mrb[0].mxu0
    %v3349 = vadd.f32 %v3276, %v3348
    %v3350 = vpop.f32.mrb[0].mxu0
    %v3351 = vadd.f32 %v3278, %v3350
    %v3352 = vpop.f32.mrb[0].mxu0
    %v3353 = vadd.f32 %v3280, %v3352
    %v3354 = vpop.f32.mrb[0].mxu0
    %v3355 = vadd.f32 %v3282, %v3354
    %3356 = vmatprep.mubr.bf16.mxu0 %v2312
    %3357 = vmatmul.mubr.bf16.gmra.mrb[0].mxu0 %v2311
    %v3358 = vpop.f32.mrb[0].mxu0
    %v3359 = vadd.f32 %v3286, %v3358
    %v3360 = vpop.f32.mrb[0].mxu0
    %v3361 = vadd.f32 %v3288, %v3360
    %v3362 = vpop.f32.mrb[0].mxu0
    %v3363 = vadd.f32 %v3290, %v3362
    %v3364 = vpop.f32.mrb[0].mxu0
    %v3365 = vadd.f32 %v3292, %v3364
    %3366 = vmatprep.mubr.bf16.mxu0 %v2316
    %3367 = vmatmul.mubr.bf16.gmra.mrb[0].mxu0 %v2315
    %v3368 = vpop.f32.mrb[0].mxu0
    %v3369 = vadd.f32 %v3296, %v3368
    %v3370 = vpop.f32.mrb[0].mxu0
    %v3371 = vadd.f32 %v3298, %v3370
    %v3372 = vpop.f32.mrb[0].mxu0
    %v3373 = vadd.f32 %v3300, %v3372
    %v3374 = vpop.f32.mrb[0].mxu0
    %v3375 = vadd.f32 %v3302, %v3374
    %3376 = vdwg.mxu0
    %v3377 = vld [vmem:[%s8] sm:$0xf]
    %v3378 = vld [vmem:[%s9] sm:$0xf]
    %v3379 = vadd.f32 %v3193, %v3197
    %v3380 = vadd.f32 %v3379, %v3203
    %v3381 = vadd.f32 %v3380, %v3207
    %v3382 = vadd.f32 %v3381, %v3213
    %v3383 = vadd.f32 %v3382, %v3217
    %v3384 = vadd.f32 %v3383, %v3223
    %v3385 = vadd.f32 %v3384, %v3227
    %v3386 = vrot.slane %v3385, 4
    %v3387 = vadd.f32 %v3385, %v3386
    %v3388 = vrot.slane %v3387, 2
    %v3389 = vadd.f32 %v3387, %v3388
    %v3390 = vrot.slane %v3389, 1
    %v3391 = vadd.f32 %v3389, %v3390
    %v3392 = vadd.f32 %v3195, %v3199
    %v3393 = vadd.f32 %v3392, %v3205
    %v3394 = vadd.f32 %v3393, %v3209
    %v3395 = vadd.f32 %v3394, %v3215
    %v3396 = vadd.f32 %v3395, %v3219
    %v3397 = vadd.f32 %v3396, %v3225
    %v3398 = vadd.f32 %v3397, %v3229
    %v3399 = vrot.slane %v3398, 4
    %v3400 = vadd.f32 %v3398, %v3399
    %v3401 = vrot.slane %v3400, 2
    %v3402 = vadd.f32 %v3400, %v3401
    %v3403 = vrot.slane %v3402, 1
    %v3404 = vadd.f32 %v3402, %v3403
    %v3405 = vadd.f32 %v3339, %v3343
    %v3406 = vadd.f32 %v3405, %v3349
    %v3407 = vadd.f32 %v3406, %v3353
    %v3408 = vadd.f32 %v3407, %v3359
    %v3409 = vadd.f32 %v3408, %v3363
    %v3410 = vadd.f32 %v3409, %v3369
    %v3411 = vadd.f32 %v3410, %v3373
    %v3412 = vrot.slane %v3411, 4
    %v3413 = vadd.f32 %v3411, %v3412
    %v3414 = vrot.slane %v3413, 2
    %v3415 = vadd.f32 %v3413, %v3414
    %v3416 = vrot.slane %v3415, 1
    %v3417 = vadd.f32 %v3415, %v3416
    %v3418 = vadd.f32 %v3341, %v3345
    %v3419 = vadd.f32 %v3418, %v3351
    %v3420 = vadd.f32 %v3419, %v3355
    %v3421 = vadd.f32 %v3420, %v3361
    %v3422 = vadd.f32 %v3421, %v3365
    %v3423 = vadd.f32 %v3422, %v3371
    %v3424 = vadd.f32 %v3423, %v3375
    %v3425 = vrot.slane %v3424, 4
    %v3426 = vadd.f32 %v3424, %v3425
    %v3427 = vrot.slane %v3426, 2
    %v3428 = vadd.f32 %v3426, %v3427
    %v3429 = vrot.slane %v3428, 1
    %v3430 = vadd.f32 %v3428, %v3429
    %v3431 = vmul.f32 %v3193, %v3193
    %v3432 = vmul.f32 %v3195, %v3195
    %v3433 = vmul.f32 %v3339, %v3339
    %v3434 = vmul.f32 %v3341, %v3341
    %v3435 = vmul.f32 %v3197, %v3197
    %v3436 = vmul.f32 %v3199, %v3199
    %v3437 = vmul.f32 %v3343, %v3343
    %v3438 = vmul.f32 %v3345, %v3345
    %v3439 = vmul.f32 %v3203, %v3203
    %v3440 = vmul.f32 %v3205, %v3205
    %v3441 = vmul.f32 %v3349, %v3349
    %v3442 = vmul.f32 %v3351, %v3351
    %v3443 = vmul.f32 %v3207, %v3207
    %v3444 = vmul.f32 %v3209, %v3209
    %v3445 = vmul.f32 %v3353, %v3353
    %v3446 = vmul.f32 %v3355, %v3355
    %v3447 = vmul.f32 %v3213, %v3213
    %v3448 = vmul.f32 %v3215, %v3215
    %v3449 = vmul.f32 %v3359, %v3359
    %v3450 = vmul.f32 %v3361, %v3361
    %v3451 = vmul.f32 %v3217, %v3217
    %v3452 = vmul.f32 %v3219, %v3219
    %v3453 = vmul.f32 %v3363, %v3363
    %v3454 = vmul.f32 %v3365, %v3365
    %v3455 = vmul.f32 %v3223, %v3223
    %v3456 = vmul.f32 %v3225, %v3225
    %v3457 = vmul.f32 %v3369, %v3369
    %v3458 = vmul.f32 %v3371, %v3371
    %v3459 = vmul.f32 %v3227, %v3227
    %v3460 = vmul.f32 %v3229, %v3229
    %v3461 = vmul.f32 %v3373, %v3373
    %v3462 = vmul.f32 %v3375, %v3375
    %v3463 = vadd.f32 %v3431, %v3435
    %v3464 = vadd.f32 %v3463, %v3439
    %v3465 = vadd.f32 %v3464, %v3443
    %v3466 = vadd.f32 %v3465, %v3447
    %v3467 = vadd.f32 %v3466, %v3451
    %v3468 = vadd.f32 %v3467, %v3455
    %v3469 = vadd.f32 %v3468, %v3459
    %v3470 = vrot.slane %v3469, 4
    %v3471 = vadd.f32 %v3469, %v3470
    %v3472 = vrot.slane %v3471, 2
    %v3473 = vadd.f32 %v3471, %v3472
    %v3474 = vrot.slane %v3473, 1
    %v3475 = vadd.f32 %v3473, %v3474
    %v3476 = vadd.f32 %v3432, %v3436
    %v3477 = vadd.f32 %v3476, %v3440
    %v3478 = vadd.f32 %v3477, %v3444
    %v3479 = vadd.f32 %v3478, %v3448
    %v3480 = vadd.f32 %v3479, %v3452
    %v3481 = vadd.f32 %v3480, %v3456
    %v3482 = vadd.f32 %v3481, %v3460
    %v3483 = vrot.slane %v3482, 4
    %v3484 = vadd.f32 %v3482, %v3483
    %v3485 = vrot.slane %v3484, 2
    %v3486 = vadd.f32 %v3484, %v3485
    %v3487 = vrot.slane %v3486, 1
    %v3488 = vadd.f32 %v3486, %v3487
    %v3489 = vadd.f32 %v3433, %v3437
    %v3490 = vadd.f32 %v3489, %v3441
    %v3491 = vadd.f32 %v3490, %v3445
    %v3492 = vadd.f32 %v3491, %v3449
    %v3493 = vadd.f32 %v3492, %v3453
    %v3494 = vadd.f32 %v3493, %v3457
    %v3495 = vadd.f32 %v3494, %v3461
    %v3496 = vrot.slane %v3495, 4
    %v3497 = vadd.f32 %v3495, %v3496
    %v3498 = vrot.slane %v3497, 2
    %v3499 = vadd.f32 %v3497, %v3498
    %v3500 = vrot.slane %v3499, 1
    %v3501 = vadd.f32 %v3499, %v3500
    %v3502 = vadd.f32 %v3434, %v3438
    %v3503 = vadd.f32 %v3502, %v3442
    %v3504 = vadd.f32 %v3503, %v3446
    %v3505 = vadd.f32 %v3504, %v3450
    %v3506 = vadd.f32 %v3505, %v3454
    %v3507 = vadd.f32 %v3506, %v3458
    %v3508 = vadd.f32 %v3507, %v3462
    %v3509 = vrot.slane %v3508, 4
    %v3510 = vadd.f32 %v3508, %v3509
    %v3511 = vrot.slane %v3510, 2
    %v3512 = vadd.f32 %v3510, %v3511
    %v3513 = vrot.slane %v3512, 1
    %v3514 = vadd.f32 %v3512, %v3513
    %v3515 = vmul.f32 %v3391, 0.015625
    %v3516 = vmul.f32 %v3404, 0.015625
    %v3517 = vmul.f32 %v3417, 0.015625
    %v3518 = vmul.f32 %v3430, 0.015625
    %v3519 = vmul.f32 %v3475, 0.015625
    %v3520 = vmul.f32 %v3488, 0.015625
    %v3521 = vmul.f32 %v3501, 0.015625
    %v3522 = vmul.f32 %v3514, 0.015625
    %v3523 = vmul.f32 %v3515, %v3515
    %v3524 = vmul.f32 %v3516, %v3516
    %v3525 = vmul.f32 %v3517, %v3517
    %v3526 = vmul.f32 %v3518, %v3518
    %v3527 = vsub.f32 %v3519, %v3523
    %v3528 = vsub.f32 %v3520, %v3524
    %v3529 = vsub.f32 %v3521, %v3525
    %v3530 = vsub.f32 %v3522, %v3526
    %v3531 = vmax.f32 %v3527, 0.0
    %v3532 = vmax.f32 %v3528, 0.0
    %v3533 = vmax.f32 %v3529, 0.0
    %v3534 = vmax.f32 %v3530, 0.0
    %v3535 = vadd.f32 %v3531, 1e-05
    %v3536 = vadd.f32 %v3532, 1e-05
    %v3537 = vadd.f32 %v3533, 1e-05
    %v3538 = vadd.f32 %v3534, 1e-05
    %v3539 = vrsqrt.pop %v3535
    %v3540 = vrsqrt.pop %v3536
    %v3541 = vrsqrt.pop %v3537
    %v3542 = vrsqrt.pop %v3538
    %v3547 = vcombine.low %v3539, %v3540
    %v3548 = vcombine.low %v3541, %v3542
    %v3550 = vunpack.c.l.s4 1966171168
    %v3551 = vunpack.c.0.s8 %v3550
    %v3552 = vlaneseq
    %v3553 = vshrl.u32 %v3552, 7
    %v3554 = vsub.s32 %v3551, %v3553
    %v3555 = vrot.slane %v3547, %v3554
    %v3557 = vunpack.c.l.s4 1966171168
    %v3558 = vunpack.c.0.s8 %v3557
    %v3559 = vlaneseq
    %v3560 = vshrl.u32 %v3559, 7
    %v3561 = vsub.s32 %v3558, %v3560
    %v3562 = vrot.slane %v3548, %v3561
    %v3563 = vcombine.low %v3555, %v3562
    %v3565 = vunpack.c.l.s4 1966171168
    %v3566 = vunpack.c.0.s8 %v3565
    %v3567 = vlaneseq
    %v3568 = vshrl.u32 %v3567, 7
    %v3569 = vsub.s32 %v3566, %v3568
    %v3570 = vrot.slane %v3563, %v3569
    %v3572 = vmul.f32 %v3377, %v3570
    %v3574 = vlaneseq
    %v3575 = vshrl.u32 %v3574, 7
    %v3576 = vsub.s32 0, %v3575
    %v3577 = vrot.slane %v3572, %v3576
    %v3578 = vlaneseq
    %v3579 = vshrl.u32 %v3578, 7
    %v3580 = vsub.s32 1, %v3579
    %v3581 = vrot.slane %v3572, %v3580
    %v3582 = vlaneseq
    %v3583 = vshrl.u32 %v3582, 7
    %v3584 = vsub.s32 2, %v3583
    %v3585 = vrot.slane %v3572, %v3584
    %v3586 = vlaneseq
    %v3587 = vshrl.u32 %v3586, 7
    %v3588 = vsub.s32 3, %v3587
    %v3589 = vrot.slane %v3572, %v3588
    %v3594 = vmul.f32 %v3515, %v3577
    %v3595 = vmul.f32 %v3516, %v3581
    %v3596 = vmul.f32 %v3517, %v3585
    %v3597 = vmul.f32 %v3518, %v3589
    %v3602 = vcombine.low %v3594, %v3595
    %v3603 = vcombine.low %v3596, %v3597
    %v3605 = vunpack.c.l.s4 1966171168
    %v3606 = vunpack.c.0.s8 %v3605
    %v3607 = vlaneseq
    %v3608 = vshrl.u32 %v3607, 7
    %v3609 = vsub.s32 %v3606, %v3608
    %v3610 = vrot.slane %v3602, %v3609
    %v3612 = vunpack.c.l.s4 1966171168
    %v3613 = vunpack.c.0.s8 %v3612
    %v3614 = vlaneseq
    %v3615 = vshrl.u32 %v3614, 7
    %v3616 = vsub.s32 %v3613, %v3615
    %v3617 = vrot.slane %v3603, %v3616
    %v3618 = vcombine.low %v3610, %v3617
    %v3620 = vunpack.c.l.s4 1966171168
    %v3621 = vunpack.c.0.s8 %v3620
    %v3622 = vlaneseq
    %v3623 = vshrl.u32 %v3622, 7
    %v3624 = vsub.s32 %v3621, %v3623
    %v3625 = vrot.slane %v3618, %v3624
    %v3627 = vsub.f32 %v3378, %v3625
    %v3628 = vmul.f32 %v3193, %v3577
    %v3629 = vmul.f32 %v3195, %v3581
    %v3630 = vmul.f32 %v3339, %v3585
    %v3631 = vmul.f32 %v3341, %v3589
    %v3632 = vmul.f32 %v3197, %v3577
    %v3633 = vmul.f32 %v3199, %v3581
    %v3634 = vmul.f32 %v3343, %v3585
    %v3635 = vmul.f32 %v3345, %v3589
    %v3636 = vmul.f32 %v3203, %v3577
    %v3637 = vmul.f32 %v3205, %v3581
    %v3638 = vmul.f32 %v3349, %v3585
    %v3639 = vmul.f32 %v3351, %v3589
    %v3640 = vmul.f32 %v3207, %v3577
    %v3641 = vmul.f32 %v3209, %v3581
    %v3642 = vmul.f32 %v3353, %v3585
    %v3643 = vmul.f32 %v3355, %v3589
    %v3644 = vmul.f32 %v3213, %v3577
    %v3645 = vmul.f32 %v3215, %v3581
    %v3646 = vmul.f32 %v3359, %v3585
    %v3647 = vmul.f32 %v3361, %v3589
    %v3648 = vmul.f32 %v3217, %v3577
    %v3649 = vmul.f32 %v3219, %v3581
    %v3650 = vmul.f32 %v3363, %v3585
    %v3651 = vmul.f32 %v3365, %v3589
    %v3652 = vmul.f32 %v3223, %v3577
    %v3653 = vmul.f32 %v3225, %v3581
    %v3654 = vmul.f32 %v3369, %v3585
    %v3655 = vmul.f32 %v3371, %v3589
    %v3656 = vmul.f32 %v3227, %v3577
    %v3657 = vmul.f32 %v3229, %v3581
    %v3658 = vmul.f32 %v3373, %v3585
    %v3659 = vmul.f32 %v3375, %v3589
    %v3661 = vlaneseq
    %v3662 = vshrl.u32 %v3661, 7
    %v3663 = vsub.s32 0, %v3662
    %v3664 = vrot.slane %v3627, %v3663
    %v3665 = vlaneseq
    %v3666 = vshrl.u32 %v3665, 7
    %v3667 = vsub.s32 1, %v3666
    %v3668 = vrot.slane %v3627, %v3667
    %v3669 = vlaneseq
    %v3670 = vshrl.u32 %v3669, 7
    %v3671 = vsub.s32 2, %v3670
    %v3672 = vrot.slane %v3627, %v3671
    %v3673 = vlaneseq
    %v3674 = vshrl.u32 %v3673, 7
    %v3675 = vsub.s32 3, %v3674
    %v3676 = vrot.slane %v3627, %v3675
    %v3681 = vadd.f32 %v3628, %v3664
    %v3682 = vadd.f32 %v3629, %v3668
    %v3683 = vadd.f32 %v3630, %v3672
    %v3684 = vadd.f32 %v3631, %v3676
    %v3685 = vadd.f32 %v3632, %v3664
    %v3686 = vadd.f32 %v3633, %v3668
    %v3687 = vadd.f32 %v3634, %v3672
    %v3688 = vadd.f32 %v3635, %v3676
    %v3689 = vadd.f32 %v3636, %v3664
    %v3690 = vadd.f32 %v3637, %v3668
    %v3691 = vadd.f32 %v3638, %v3672
    %v3692 = vadd.f32 %v3639, %v3676
    %v3693 = vadd.f32 %v3640, %v3664
    %v3694 = vadd.f32 %v3641, %v3668
    %v3695 = vadd.f32 %v3642, %v3672
    %v3696 = vadd.f32 %v3643, %v3676
    %v3697 = vadd.f32 %v3644, %v3664
    %v3698 = vadd.f32 %v3645, %v3668
    %v3699 = vadd.f32 %v3646, %v3672
    %v3700 = vadd.f32 %v3647, %v3676
    %v3701 = vadd.f32 %v3648, %v3664
    %v3702 = vadd.f32 %v3649, %v3668
    %v3703 = vadd.f32 %v3650, %v3672
    %v3704 = vadd.f32 %v3651, %v3676
    %v3705 = vadd.f32 %v3652, %v3664
    %v3706 = vadd.f32 %v3653, %v3668
    %v3707 = vadd.f32 %v3654, %v3672
    %v3708 = vadd.f32 %v3655, %v3676
    %v3709 = vadd.f32 %v3656, %v3664
    %v3710 = vadd.f32 %v3657, %v3668
    %v3711 = vadd.f32 %v3658, %v3672
    %v3712 = vadd.f32 %v3659, %v3676
    %v3713 = vmax.f32 %v3681, 0.0
    %v3714 = vmax.f32 %v3682, 0.0
    %v3715 = vmax.f32 %v3683, 0.0
    %v3716 = vmax.f32 %v3684, 0.0
    %v3717 = vmax.f32 %v3685, 0.0
    %v3718 = vmax.f32 %v3686, 0.0
    %v3719 = vmax.f32 %v3687, 0.0
    %v3720 = vmax.f32 %v3688, 0.0
    %v3721 = vmax.f32 %v3689, 0.0
    %v3722 = vmax.f32 %v3690, 0.0
    %v3723 = vmax.f32 %v3691, 0.0
    %v3724 = vmax.f32 %v3692, 0.0
    %v3725 = vmax.f32 %v3693, 0.0
    %v3726 = vmax.f32 %v3694, 0.0
    %v3727 = vmax.f32 %v3695, 0.0
    %v3728 = vmax.f32 %v3696, 0.0
    %v3729 = vmax.f32 %v3697, 0.0
    %v3730 = vmax.f32 %v3698, 0.0
    %v3731 = vmax.f32 %v3699, 0.0
    %v3732 = vmax.f32 %v3700, 0.0
    %v3733 = vmax.f32 %v3701, 0.0
    %v3734 = vmax.f32 %v3702, 0.0
    %v3735 = vmax.f32 %v3703, 0.0
    %v3736 = vmax.f32 %v3704, 0.0
    %v3737 = vmax.f32 %v3705, 0.0
    %v3738 = vmax.f32 %v3706, 0.0
    %v3739 = vmax.f32 %v3707, 0.0
    %v3740 = vmax.f32 %v3708, 0.0
    %v3741 = vmax.f32 %v3709, 0.0
    %v3742 = vmax.f32 %v3710, 0.0
    %v3743 = vmax.f32 %v3711, 0.0
    %v3744 = vmax.f32 %v3712, 0.0
    %v3745 = vpack.c.bf16 %v3717, %v3713
    %v3746 = vpack.c.bf16 %v3718, %v3714
    %v3747 = vpack.c.bf16 %v3719, %v3715
    %v3748 = vpack.c.bf16 %v3720, %v3716
    %v3749 = vpack.c.bf16 %v3725, %v3721
    %v3750 = vpack.c.bf16 %v3726, %v3722
    %v3751 = vpack.c.bf16 %v3727, %v3723
    %v3752 = vpack.c.bf16 %v3728, %v3724
    %v3753 = vpack.c.bf16 %v3733, %v3729
    %v3754 = vpack.c.bf16 %v3734, %v3730
    %v3755 = vpack.c.bf16 %v3735, %v3731
    %v3756 = vpack.c.bf16 %v3736, %v3732
    %v3757 = vpack.c.bf16 %v3741, %v3737
    %v3758 = vpack.c.bf16 %v3742, %v3738
    %v3759 = vpack.c.bf16 %v3743, %v3739
    %v3760 = vpack.c.bf16 %v3744, %v3740
    %v3761 = vld [vmem:[#allocation7] sm:$0xff]
    %v3762 = vld [vmem:[#allocation7 + $0x8] sm:$0xff]
    %v3763 = vld [vmem:[#allocation7 + $0x10] sm:$0xff]
    %v3764 = vld [vmem:[#allocation7 + $0x18] sm:$0xff]
    %v3765 = vld [vmem:[#allocation7 + $0x20] sm:$0xff]
    %v3766 = vld [vmem:[#allocation7 + $0x28] sm:$0xff]
    %v3767 = vld [vmem:[#allocation7 + $0x30] sm:$0xff]
    %v3768 = vld [vmem:[#allocation7 + $0x38] sm:$0xff]
    %v3769 = vld [vmem:[#allocation7 + $0x40] sm:$0xff]
    %v3770 = vld [vmem:[#allocation7 + $0x48] sm:$0xff]
    %v3771 = vld [vmem:[#allocation7 + $0x50] sm:$0xff]
    %v3772 = vld [vmem:[#allocation7 + $0x58] sm:$0xff]
    %v3773 = vld [vmem:[#allocation7 + $0x60] sm:$0xff]
    %v3774 = vld [vmem:[#allocation7 + $0x68] sm:$0xff]
    %v3775 = vld [vmem:[#allocation7 + $0x70] sm:$0xff]
    %v3776 = vld [vmem:[#allocation7 + $0x78] sm:$0xff]
    %v3777 = vld [vmem:[#allocation7 + $0x80] sm:$0xff]
    %v3778 = vld [vmem:[#allocation7 + $0x88] sm:$0xff]
    %v3779 = vld [vmem:[#allocation7 + $0x90] sm:$0xff]
    %v3780 = vld [vmem:[#allocation7 + $0x98] sm:$0xff]
    %v3781 = vld [vmem:[#allocation7 + $0xa0] sm:$0xff]
    %v3782 = vld [vmem:[#allocation7 + $0xa8] sm:$0xff]
    %v3783 = vld [vmem:[#allocation7 + $0xb0] sm:$0xff]
    %v3784 = vld [vmem:[#allocation7 + $0xb8] sm:$0xff]
    %v3785 = vld [vmem:[#allocation7 + $0xc0] sm:$0xff]
    %v3786 = vld [vmem:[#allocation7 + $0xc8] sm:$0xff]
    %v3787 = vld [vmem:[#allocation7 + $0xd0] sm:$0xff]
    %v3788 = vld [vmem:[#allocation7 + $0xd8] sm:$0xff]
    %v3789 = vld [vmem:[#allocation7 + $0xe0] sm:$0xff]
    %v3790 = vld [vmem:[#allocation7 + $0xe8] sm:$0xff]
    %v3791 = vld [vmem:[#allocation7 + $0xf0] sm:$0xff]
    %v3792 = vld [vmem:[#allocation7 + $0xf8] sm:$0xff]
    %v3793 = vld [vmem:[#allocation7 + $0x100] sm:$0xff]
    %v3794 = vld [vmem:[#allocation7 + $0x108] sm:$0xff]
    %v3795 = vld [vmem:[#allocation7 + $0x110] sm:$0xff]
    %v3796 = vld [vmem:[#allocation7 + $0x118] sm:$0xff]
    %v3797 = vld [vmem:[#allocation7 + $0x120] sm:$0xff]
    %v3798 = vld [vmem:[#allocation7 + $0x128] sm:$0xff]
    %v3799 = vld [vmem:[#allocation7 + $0x130] sm:$0xff]
    %v3800 = vld [vmem:[#allocation7 + $0x138] sm:$0xff]
    %v3801 = vld [vmem:[#allocation7 + $0x140] sm:$0xff]
    %v3802 = vld [vmem:[#allocation7 + $0x148] sm:$0xff]
    %v3803 = vld [vmem:[#allocation7 + $0x150] sm:$0xff]
    %v3804 = vld [vmem:[#allocation7 + $0x158] sm:$0xff]
    %v3805 = vld [vmem:[#allocation7 + $0x160] sm:$0xff]
    %v3806 = vld [vmem:[#allocation7 + $0x168] sm:$0xff]
    %v3807 = vld [vmem:[#allocation7 + $0x170] sm:$0xff]
    %v3808 = vld [vmem:[#allocation7 + $0x178] sm:$0xff]
    %v3809 = vld [vmem:[#allocation7 + $0x180] sm:$0xff]
    %v3810 = vld [vmem:[#allocation7 + $0x188] sm:$0xff]
    %v3811 = vld [vmem:[#allocation7 + $0x190] sm:$0xff]
    %v3812 = vld [vmem:[#allocation7 + $0x198] sm:$0xff]
    %v3813 = vld [vmem:[#allocation7 + $0x1a0] sm:$0xff]
    %v3814 = vld [vmem:[#allocation7 + $0x1a8] sm:$0xff]
    %v3815 = vld [vmem:[#allocation7 + $0x1b0] sm:$0xff]
    %v3816 = vld [vmem:[#allocation7 + $0x1b8] sm:$0xff]
    %v3817 = vld [vmem:[#allocation7 + $0x1c0] sm:$0xff]
    %v3818 = vld [vmem:[#allocation7 + $0x1c8] sm:$0xff]
    %v3819 = vld [vmem:[#allocation7 + $0x1d0] sm:$0xff]
    %v3820 = vld [vmem:[#allocation7 + $0x1d8] sm:$0xff]
    %v3821 = vld [vmem:[#allocation7 + $0x1e0] sm:$0xff]
    %v3822 = vld [vmem:[#allocation7 + $0x1e8] sm:$0xff]
    %v3823 = vld [vmem:[#allocation7 + $0x1f0] sm:$0xff]
    %v3824 = vld [vmem:[#allocation7 + $0x1f8] sm:$0xff]
    %v3825 = vld [vmem:[#allocation7 + $0x200] sm:$0xff]
    %v3826 = vld [vmem:[#allocation7 + $0x208] sm:$0xff]
    %v3827 = vld [vmem:[#allocation7 + $0x210] sm:$0xff]
    %v3828 = vld [vmem:[#allocation7 + $0x218] sm:$0xff]
    %v3829 = vld [vmem:[#allocation7 + $0x220] sm:$0xff]
    %v3830 = vld [vmem:[#allocation7 + $0x228] sm:$0xff]
    %v3831 = vld [vmem:[#allocation7 + $0x230] sm:$0xff]
    %v3832 = vld [vmem:[#allocation7 + $0x238] sm:$0xff]
    %v3833 = vld [vmem:[#allocation7 + $0x240] sm:$0xff]
    %v3834 = vld [vmem:[#allocation7 + $0x248] sm:$0xff]
    %v3835 = vld [vmem:[#allocation7 + $0x250] sm:$0xff]
    %v3836 = vld [vmem:[#allocation7 + $0x258] sm:$0xff]
    %v3837 = vld [vmem:[#allocation7 + $0x260] sm:$0xff]
    %v3838 = vld [vmem:[#allocation7 + $0x268] sm:$0xff]
    %v3839 = vld [vmem:[#allocation7 + $0x270] sm:$0xff]
    %v3840 = vld [vmem:[#allocation7 + $0x278] sm:$0xff]
    %v3841 = vld [vmem:[#allocation7 + $0x280] sm:$0xff]
    %v3842 = vld [vmem:[#allocation7 + $0x288] sm:$0xff]
    %v3843 = vld [vmem:[#allocation7 + $0x290] sm:$0xff]
    %v3844 = vld [vmem:[#allocation7 + $0x298] sm:$0xff]
    %v3845 = vld [vmem:[#allocation7 + $0x2a0] sm:$0xff]
    %v3846 = vld [vmem:[#allocation7 + $0x2a8] sm:$0xff]
    %v3847 = vld [vmem:[#allocation7 + $0x2b0] sm:$0xff]
    %v3848 = vld [vmem:[#allocation7 + $0x2b8] sm:$0xff]
    %v3849 = vld [vmem:[#allocation7 + $0x2c0] sm:$0xff]
    %v3850 = vld [vmem:[#allocation7 + $0x2c8] sm:$0xff]
    %v3851 = vld [vmem:[#allocation7 + $0x2d0] sm:$0xff]
    %v3852 = vld [vmem:[#allocation7 + $0x2d8] sm:$0xff]
    %v3853 = vld [vmem:[#allocation7 + $0x2e0] sm:$0xff]
    %v3854 = vld [vmem:[#allocation7 + $0x2e8] sm:$0xff]
    %v3855 = vld [vmem:[#allocation7 + $0x2f0] sm:$0xff]
    %v3856 = vld [vmem:[#allocation7 + $0x2f8] sm:$0xff]
    %v3857 = vld [vmem:[#allocation7 + $0x300] sm:$0xff]
    %v3858 = vld [vmem:[#allocation7 + $0x308] sm:$0xff]
    %v3859 = vld [vmem:[#allocation7 + $0x310] sm:$0xff]
    %v3860 = vld [vmem:[#allocation7 + $0x318] sm:$0xff]
    %v3861 = vld [vmem:[#allocation7 + $0x320] sm:$0xff]
    %v3862 = vld [vmem:[#allocation7 + $0x328] sm:$0xff]
    %v3863 = vld [vmem:[#allocation7 + $0x330] sm:$0xff]
    %v3864 = vld [vmem:[#allocation7 + $0x338] sm:$0xff]
    %v3865 = vld [vmem:[#allocation7 + $0x340] sm:$0xff]
    %v3866 = vld [vmem:[#allocation7 + $0x348] sm:$0xff]
    %v3867 = vld [vmem:[#allocation7 + $0x350] sm:$0xff]
    %v3868 = vld [vmem:[#allocation7 + $0x358] sm:$0xff]
    %v3869 = vld [vmem:[#allocation7 + $0x360] sm:$0xff]
    %v3870 = vld [vmem:[#allocation7 + $0x368] sm:$0xff]
    %v3871 = vld [vmem:[#allocation7 + $0x370] sm:$0xff]
    %v3872 = vld [vmem:[#allocation7 + $0x378] sm:$0xff]
    %v3873 = vld [vmem:[#allocation7 + $0x380] sm:$0xff]
    %v3874 = vld [vmem:[#allocation7 + $0x388] sm:$0xff]
    %v3875 = vld [vmem:[#allocation7 + $0x390] sm:$0xff]
    %v3876 = vld [vmem:[#allocation7 + $0x398] sm:$0xff]
    %v3877 = vld [vmem:[#allocation7 + $0x3a0] sm:$0xff]
    %v3878 = vld [vmem:[#allocation7 + $0x3a8] sm:$0xff]
    %v3879 = vld [vmem:[#allocation7 + $0x3b0] sm:$0xff]
    %v3880 = vld [vmem:[#allocation7 + $0x3b8] sm:$0xff]
    %v3881 = vld [vmem:[#allocation7 + $0x3c0] sm:$0xff]
    %v3882 = vld [vmem:[#allocation7 + $0x3c8] sm:$0xff]
    %v3883 = vld [vmem:[#allocation7 + $0x3d0] sm:$0xff]
    %v3884 = vld [vmem:[#allocation7 + $0x3d8] sm:$0xff]
    %v3885 = vld [vmem:[#allocation7 + $0x3e0] sm:$0xff]
    %v3886 = vld [vmem:[#allocation7 + $0x3e8] sm:$0xff]
    %v3887 = vld [vmem:[#allocation7 + $0x3f0] sm:$0xff]
    %v3888 = vld [vmem:[#allocation7 + $0x3f8] sm:$0xff]
    %v4017 = vunpack.c.l.b16 %v3761
    %v4018 = vunpack.c.h.b16 %v3761
    %v4019 = vunpack.c.l.b16 %v3762
    %v4020 = vunpack.c.h.b16 %v3762
    %v4021 = vunpack.c.l.b16 %v3763
    %v4022 = vunpack.c.h.b16 %v3763
    %v4023 = vunpack.c.l.b16 %v3764
    %v4024 = vunpack.c.h.b16 %v3764
    %v4025 = vunpack.c.l.b16 %v3765
    %v4026 = vunpack.c.h.b16 %v3765
    %v4027 = vunpack.c.l.b16 %v3766
    %v4028 = vunpack.c.h.b16 %v3766
    %v4029 = vunpack.c.l.b16 %v3767
    %v4030 = vunpack.c.h.b16 %v3767
    %v4031 = vunpack.c.l.b16 %v3768
    %v4032 = vunpack.c.h.b16 %v3768
    %v4033 = vunpack.c.l.b16 %v3769
    %v4034 = vunpack.c.h.b16 %v3769
    %v4035 = vunpack.c.l.b16 %v3770
    %v4036 = vunpack.c.h.b16 %v3770
    %v4037 = vunpack.c.l.b16 %v3771
    %v4038 = vunpack.c.h.b16 %v3771
    %v4039 = vunpack.c.l.b16 %v3772
    %v4040 = vunpack.c.h.b16 %v3772
    %v4041 = vunpack.c.l.b16 %v3773
    %v4042 = vunpack.c.h.b16 %v3773
    %v4043 = vunpack.c.l.b16 %v3774
    %v4044 = vunpack.c.h.b16 %v3774
    %v4045 = vunpack.c.l.b16 %v3775
    %v4046 = vunpack.c.h.b16 %v3775
    %v4047 = vunpack.c.l.b16 %v3776
    %v4048 = vunpack.c.h.b16 %v3776
    %v4049 = vunpack.c.l.b16 %v3777
    %v4050 = vunpack.c.h.b16 %v3777
    %v4051 = vunpack.c.l.b16 %v3778
    %v4052 = vunpack.c.h.b16 %v3778
    %v4053 = vunpack.c.l.b16 %v3779
    %v4054 = vunpack.c.h.b16 %v3779
    %v4055 = vunpack.c.l.b16 %v3780
    %v4056 = vunpack.c.h.b16 %v3780
    %v4057 = vunpack.c.l.b16 %v3781
    %v4058 = vunpack.c.h.b16 %v3781
    %v4059 = vunpack.c.l.b16 %v3782
    %v4060 = vunpack.c.h.b16 %v3782
    %v4061 = vunpack.c.l.b16 %v3783
    %v4062 = vunpack.c.h.b16 %v3783
    %v4063 = vunpack.c.l.b16 %v3784
    %v4064 = vunpack.c.h.b16 %v3784
    %v4065 = vunpack.c.l.b16 %v3785
    %v4066 = vunpack.c.h.b16 %v3785
    %v4067 = vunpack.c.l.b16 %v3786
    %v4068 = vunpack.c.h.b16 %v3786
    %v4069 = vunpack.c.l.b16 %v3787
    %v4070 = vunpack.c.h.b16 %v3787
    %v4071 = vunpack.c.l.b16 %v3788
    %v4072 = vunpack.c.h.b16 %v3788
    %v4073 = vunpack.c.l.b16 %v3789
    %v4074 = vunpack.c.h.b16 %v3789
    %v4075 = vunpack.c.l.b16 %v3790
    %v4076 = vunpack.c.h.b16 %v3790
    %v4077 = vunpack.c.l.b16 %v3791
    %v4078 = vunpack.c.h.b16 %v3791
    %v4079 = vunpack.c.l.b16 %v3792
    %v4080 = vunpack.c.h.b16 %v3792
    %v4081 = vunpack.c.l.b16 %v3793
    %v4082 = vunpack.c.h.b16 %v3793
    %v4083 = vunpack.c.l.b16 %v3794
    %v4084 = vunpack.c.h.b16 %v3794
    %v4085 = vunpack.c.l.b16 %v3795
    %v4086 = vunpack.c.h.b16 %v3795
    %v4087 = vunpack.c.l.b16 %v3796
    %v4088 = vunpack.c.h.b16 %v3796
    %v4089 = vunpack.c.l.b16 %v3797
    %v4090 = vunpack.c.h.b16 %v3797
    %v4091 = vunpack.c.l.b16 %v3798
    %v4092 = vunpack.c.h.b16 %v3798
    %v4093 = vunpack.c.l.b16 %v3799
    %v4094 = vunpack.c.h.b16 %v3799
    %v4095 = vunpack.c.l.b16 %v3800
    %v4096 = vunpack.c.h.b16 %v3800
    %v4097 = vunpack.c.l.b16 %v3801
    %v4098 = vunpack.c.h.b16 %v3801
    %v4099 = vunpack.c.l.b16 %v3802
    %v4100 = vunpack.c.h.b16 %v3802
    %v4101 = vunpack.c.l.b16 %v3803
    %v4102 = vunpack.c.h.b16 %v3803
    %v4103 = vunpack.c.l.b16 %v3804
    %v4104 = vunpack.c.h.b16 %v3804
    %v4105 = vunpack.c.l.b16 %v3805
    %v4106 = vunpack.c.h.b16 %v3805
    %v4107 = vunpack.c.l.b16 %v3806
    %v4108 = vunpack.c.h.b16 %v3806
    %v4109 = vunpack.c.l.b16 %v3807
    %v4110 = vunpack.c.h.b16 %v3807
    %v4111 = vunpack.c.l.b16 %v3808
    %v4112 = vunpack.c.h.b16 %v3808
    %v4113 = vunpack.c.l.b16 %v3809
    %v4114 = vunpack.c.h.b16 %v3809
    %v4115 = vunpack.c.l.b16 %v3810
    %v4116 = vunpack.c.h.b16 %v3810
    %v4117 = vunpack.c.l.b16 %v3811
    %v4118 = vunpack.c.h.b16 %v3811
    %v4119 = vunpack.c.l.b16 %v3812
    %v4120 = vunpack.c.h.b16 %v3812
    %v4121 = vunpack.c.l.b16 %v3813
    %v4122 = vunpack.c.h.b16 %v3813
    %v4123 = vunpack.c.l.b16 %v3814
    %v4124 = vunpack.c.h.b16 %v3814
    %v4125 = vunpack.c.l.b16 %v3815
    %v4126 = vunpack.c.h.b16 %v3815
    %v4127 = vunpack.c.l.b16 %v3816
    %v4128 = vunpack.c.h.b16 %v3816
    %v4129 = vunpack.c.l.b16 %v3817
    %v4130 = vunpack.c.h.b16 %v3817
    %v4131 = vunpack.c.l.b16 %v3818
    %v4132 = vunpack.c.h.b16 %v3818
    %v4133 = vunpack.c.l.b16 %v3819
    %v4134 = vunpack.c.h.b16 %v3819
    %v4135 = vunpack.c.l.b16 %v3820
    %v4136 = vunpack.c.h.b16 %v3820
    %v4137 = vunpack.c.l.b16 %v3821
    %v4138 = vunpack.c.h.b16 %v3821
    %v4139 = vunpack.c.l.b16 %v3822
    %v4140 = vunpack.c.h.b16 %v3822
    %v4141 = vunpack.c.l.b16 %v3823
    %v4142 = vunpack.c.h.b16 %v3823
    %v4143 = vunpack.c.l.b16 %v3824
    %v4144 = vunpack.c.h.b16 %v3824
    %v4145 = vunpack.c.l.b16 %v3825
    %v4146 = vunpack.c.h.b16 %v3825
    %v4147 = vunpack.c.l.b16 %v3826
    %v4148 = vunpack.c.h.b16 %v3826
    %v4149 = vunpack.c.l.b16 %v3827
    %v4150 = vunpack.c.h.b16 %v3827
    %v4151 = vunpack.c.l.b16 %v3828
    %v4152 = vunpack.c.h.b16 %v3828
    %v4153 = vunpack.c.l.b16 %v3829
    %v4154 = vunpack.c.h.b16 %v3829
    %v4155 = vunpack.c.l.b16 %v3830
    %v4156 = vunpack.c.h.b16 %v3830
    %v4157 = vunpack.c.l.b16 %v3831
    %v4158 = vunpack.c.h.b16 %v3831
    %v4159 = vunpack.c.l.b16 %v3832
    %v4160 = vunpack.c.h.b16 %v3832
    %v4161 = vunpack.c.l.b16 %v3833
    %v4162 = vunpack.c.h.b16 %v3833
    %v4163 = vunpack.c.l.b16 %v3834
    %v4164 = vunpack.c.h.b16 %v3834
    %v4165 = vunpack.c.l.b16 %v3835
    %v4166 = vunpack.c.h.b16 %v3835
    %v4167 = vunpack.c.l.b16 %v3836
    %v4168 = vunpack.c.h.b16 %v3836
    %v4169 = vunpack.c.l.b16 %v3837
    %v4170 = vunpack.c.h.b16 %v3837
    %v4171 = vunpack.c.l.b16 %v3838
    %v4172 = vunpack.c.h.b16 %v3838
    %v4173 = vunpack.c.l.b16 %v3839
    %v4174 = vunpack.c.h.b16 %v3839
    %v4175 = vunpack.c.l.b16 %v3840
    %v4176 = vunpack.c.h.b16 %v3840
    %v4177 = vunpack.c.l.b16 %v3841
    %v4178 = vunpack.c.h.b16 %v3841
    %v4179 = vunpack.c.l.b16 %v3842
    %v4180 = vunpack.c.h.b16 %v3842
    %v4181 = vunpack.c.l.b16 %v3843
    %v4182 = vunpack.c.h.b16 %v3843
    %v4183 = vunpack.c.l.b16 %v3844
    %v4184 = vunpack.c.h.b16 %v3844
    %v4185 = vunpack.c.l.b16 %v3845
    %v4186 = vunpack.c.h.b16 %v3845
    %v4187 = vunpack.c.l.b16 %v3846
    %v4188 = vunpack.c.h.b16 %v3846
    %v4189 = vunpack.c.l.b16 %v3847
    %v4190 = vunpack.c.h.b16 %v3847
    %v4191 = vunpack.c.l.b16 %v3848
    %v4192 = vunpack.c.h.b16 %v3848
    %v4193 = vunpack.c.l.b16 %v3849
    %v4194 = vunpack.c.h.b16 %v3849
    %v4195 = vunpack.c.l.b16 %v3850
    %v4196 = vunpack.c.h.b16 %v3850
    %v4197 = vunpack.c.l.b16 %v3851
    %v4198 = vunpack.c.h.b16 %v3851
    %v4199 = vunpack.c.l.b16 %v3852
    %v4200 = vunpack.c.h.b16 %v3852
    %v4201 = vunpack.c.l.b16 %v3853
    %v4202 = vunpack.c.h.b16 %v3853
    %v4203 = vunpack.c.l.b16 %v3854
    %v4204 = vunpack.c.h.b16 %v3854
    %v4205 = vunpack.c.l.b16 %v3855
    %v4206 = vunpack.c.h.b16 %v3855
    %v4207 = vunpack.c.l.b16 %v3856
    %v4208 = vunpack.c.h.b16 %v3856
    %v4209 = vunpack.c.l.b16 %v3857
    %v4210 = vunpack.c.h.b16 %v3857
    %v4211 = vunpack.c.l.b16 %v3858
    %v4212 = vunpack.c.h.b16 %v3858
    %v4213 = vunpack.c.l.b16 %v3859
    %v4214 = vunpack.c.h.b16 %v3859
    %v4215 = vunpack.c.l.b16 %v3860
    %v4216 = vunpack.c.h.b16 %v3860
    %v4217 = vunpack.c.l.b16 %v3861
    %v4218 = vunpack.c.h.b16 %v3861
    %v4219 = vunpack.c.l.b16 %v3862
    %v4220 = vunpack.c.h.b16 %v3862
    %v4221 = vunpack.c.l.b16 %v3863
    %v4222 = vunpack.c.h.b16 %v3863
    %v4223 = vunpack.c.l.b16 %v3864
    %v4224 = vunpack.c.h.b16 %v3864
    %v4225 = vunpack.c.l.b16 %v3865
    %v4226 = vunpack.c.h.b16 %v3865
    %v4227 = vunpack.c.l.b16 %v3866
    %v4228 = vunpack.c.h.b16 %v3866
    %v4229 = vunpack.c.l.b16 %v3867
    %v4230 = vunpack.c.h.b16 %v3867
    %v4231 = vunpack.c.l.b16 %v3868
    %v4232 = vunpack.c.h.b16 %v3868
    %v4233 = vunpack.c.l.b16 %v3869
    %v4234 = vunpack.c.h.b16 %v3869
    %v4235 = vunpack.c.l.b16 %v3870
    %v4236 = vunpack.c.h.b16 %v3870
    %v4237 = vunpack.c.l.b16 %v3871
    %v4238 = vunpack.c.h.b16 %v3871
    %v4239 = vunpack.c.l.b16 %v3872
    %v4240 = vunpack.c.h.b16 %v3872
    %v4241 = vunpack.c.l.b16 %v3873
    %v4242 = vunpack.c.h.b16 %v3873
    %v4243 = vunpack.c.l.b16 %v3874
    %v4244 = vunpack.c.h.b16 %v3874
    %v4245 = vunpack.c.l.b16 %v3875
    %v4246 = vunpack.c.h.b16 %v3875
    %v4247 = vunpack.c.l.b16 %v3876
    %v4248 = vunpack.c.h.b16 %v3876
    %v4249 = vunpack.c.l.b16 %v3877
    %v4250 = vunpack.c.h.b16 %v3877
    %v4251 = vunpack.c.l.b16 %v3878
    %v4252 = vunpack.c.h.b16 %v3878
    %v4253 = vunpack.c.l.b16 %v3879
    %v4254 = vunpack.c.h.b16 %v3879
    %v4255 = vunpack.c.l.b16 %v3880
    %v4256 = vunpack.c.h.b16 %v3880
    %v4257 = vunpack.c.l.b16 %v3881
    %v4258 = vunpack.c.h.b16 %v3881
    %v4259 = vunpack.c.l.b16 %v3882
    %v4260 = vunpack.c.h.b16 %v3882
    %v4261 = vunpack.c.l.b16 %v3883
    %v4262 = vunpack.c.h.b16 %v3883
    %v4263 = vunpack.c.l.b16 %v3884
    %v4264 = vunpack.c.h.b16 %v3884
    %v4265 = vunpack.c.l.b16 %v3885
    %v4266 = vunpack.c.h.b16 %v3885
    %v4267 = vunpack.c.l.b16 %v3886
    %v4268 = vunpack.c.h.b16 %v3886
    %v4269 = vunpack.c.l.b16 %v3887
    %v4270 = vunpack.c.h.b16 %v3887
    %v4271 = vunpack.c.l.b16 %v3888
    %v4272 = vunpack.c.h.b16 %v3888
    %v4273 = vpack.c.b16 %v4021, %v4017
    %v4274 = vpack.c.b16 %v4022, %v4018
    %v4275 = vpack.c.b16 %v4023, %v4019
    %v4276 = vpack.c.b16 %v4024, %v4020
    %v4277 = vpack.c.b16 %v4029, %v4025
    %v4278 = vpack.c.b16 %v4030, %v4026
    %v4279 = vpack.c.b16 %v4031, %v4027
    %v4280 = vpack.c.b16 %v4032, %v4028
    %v4281 = vpack.c.b16 %v4037, %v4033
    %v4282 = vpack.c.b16 %v4038, %v4034
    %v4283 = vpack.c.b16 %v4039, %v4035
    %v4284 = vpack.c.b16 %v4040, %v4036
    %v4285 = vpack.c.b16 %v4045, %v4041
    %v4286 = vpack.c.b16 %v4046, %v4042
    %v4287 = vpack.c.b16 %v4047, %v4043
    %v4288 = vpack.c.b16 %v4048, %v4044
    %v4289 = vpack.c.b16 %v4053, %v4049
    %v4290 = vpack.c.b16 %v4054, %v4050
    %v4291 = vpack.c.b16 %v4055, %v4051
    %v4292 = vpack.c.b16 %v4056, %v4052
    %v4293 = vpack.c.b16 %v4061, %v4057
    %v4294 = vpack.c.b16 %v4062, %v4058
    %v4295 = vpack.c.b16 %v4063, %v4059
    %v4296 = vpack.c.b16 %v4064, %v4060
    %v4297 = vpack.c.b16 %v4069, %v4065
    %v4298 = vpack.c.b16 %v4070, %v4066
    %v4299 = vpack.c.b16 %v4071, %v4067
    %v4300 = vpack.c.b16 %v4072, %v4068
    %v4301 = vpack.c.b16 %v4077, %v4073
    %v4302 = vpack.c.b16 %v4078, %v4074
    %v4303 = vpack.c.b16 %v4079, %v4075
    %v4304 = vpack.c.b16 %v4080, %v4076
    %v4305 = vpack.c.b16 %v4085, %v4081
    %v4306 = vpack.c.b16 %v4086, %v4082
    %v4307 = vpack.c.b16 %v4087, %v4083
    %v4308 = vpack.c.b16 %v4088, %v4084
    %v4309 = vpack.c.b16 %v4093, %v4089
    %v4310 = vpack.c.b16 %v4094, %v4090
    %v4311 = vpack.c.b16 %v4095, %v4091
    %v4312 = vpack.c.b16 %v4096, %v4092
    %v4313 = vpack.c.b16 %v4101, %v4097
    %v4314 = vpack.c.b16 %v4102, %v4098
    %v4315 = vpack.c.b16 %v4103, %v4099
    %v4316 = vpack.c.b16 %v4104, %v4100
    %v4317 = vpack.c.b16 %v4109, %v4105
    %v4318 = vpack.c.b16 %v4110, %v4106
    %v4319 = vpack.c.b16 %v4111, %v4107
    %v4320 = vpack.c.b16 %v4112, %v4108
    %v4321 = vpack.c.b16 %v4117, %v4113
    %v4322 = vpack.c.b16 %v4118, %v4114
    %v4323 = vpack.c.b16 %v4119, %v4115
    %v4324 = vpack.c.b16 %v4120, %v4116
    %v4325 = vpack.c.b16 %v4125, %v4121
    %v4326 = vpack.c.b16 %v4126, %v4122
    %v4327 = vpack.c.b16 %v4127, %v4123
    %v4328 = vpack.c.b16 %v4128, %v4124
    %v4329 = vpack.c.b16 %v4133, %v4129
    %v4330 = vpack.c.b16 %v4134, %v4130
    %v4331 = vpack.c.b16 %v4135, %v4131
    %v4332 = vpack.c.b16 %v4136, %v4132
    %v4333 = vpack.c.b16 %v4141, %v4137
    %v4334 = vpack.c.b16 %v4142, %v4138
    %v4335 = vpack.c.b16 %v4143, %v4139
    %v4336 = vpack.c.b16 %v4144, %v4140
    %v4337 = vpack.c.b16 %v4149, %v4145
    %v4338 = vpack.c.b16 %v4150, %v4146
    %v4339 = vpack.c.b16 %v4151, %v4147
    %v4340 = vpack.c.b16 %v4152, %v4148
    %v4341 = vpack.c.b16 %v4157, %v4153
    %v4342 = vpack.c.b16 %v4158, %v4154
    %v4343 = vpack.c.b16 %v4159, %v4155
    %v4344 = vpack.c.b16 %v4160, %v4156
    %v4345 = vpack.c.b16 %v4165, %v4161
    %v4346 = vpack.c.b16 %v4166, %v4162
    %v4347 = vpack.c.b16 %v4167, %v4163
    %v4348 = vpack.c.b16 %v4168, %v4164
    %v4349 = vpack.c.b16 %v4173, %v4169
    %v4350 = vpack.c.b16 %v4174, %v4170
    %v4351 = vpack.c.b16 %v4175, %v4171
    %v4352 = vpack.c.b16 %v4176, %v4172
    %v4353 = vpack.c.b16 %v4181, %v4177
    %v4354 = vpack.c.b16 %v4182, %v4178
    %v4355 = vpack.c.b16 %v4183, %v4179
    %v4356 = vpack.c.b16 %v4184, %v4180
    %v4357 = vpack.c.b16 %v4189, %v4185
    %v4358 = vpack.c.b16 %v4190, %v4186
    %v4359 = vpack.c.b16 %v4191, %v4187
    %v4360 = vpack.c.b16 %v4192, %v4188
    %v4361 = vpack.c.b16 %v4197, %v4193
    %v4362 = vpack.c.b16 %v4198, %v4194
    %v4363 = vpack.c.b16 %v4199, %v4195
    %v4364 = vpack.c.b16 %v4200, %v4196
    %v4365 = vpack.c.b16 %v4205, %v4201
    %v4366 = vpack.c.b16 %v4206, %v4202
    %v4367 = vpack.c.b16 %v4207, %v4203
    %v4368 = vpack.c.b16 %v4208, %v4204
    %v4369 = vpack.c.b16 %v4213, %v4209
    %v4370 = vpack.c.b16 %v4214, %v4210
    %v4371 = vpack.c.b16 %v4215, %v4211
    %v4372 = vpack.c.b16 %v4216, %v4212
    %v4373 = vpack.c.b16 %v4221, %v4217
    %v4374 = vpack.c.b16 %v4222, %v4218
    %v4375 = vpack.c.b16 %v4223, %v4219
    %v4376 = vpack.c.b16 %v4224, %v4220
    %v4377 = vpack.c.b16 %v4229, %v4225
    %v4378 = vpack.c.b16 %v4230, %v4226
    %v4379 = vpack.c.b16 %v4231, %v4227
    %v4380 = vpack.c.b16 %v4232, %v4228
    %v4381 = vpack.c.b16 %v4237, %v4233
    %v4382 = vpack.c.b16 %v4238, %v4234
    %v4383 = vpack.c.b16 %v4239, %v4235
    %v4384 = vpack.c.b16 %v4240, %v4236
    %v4385 = vpack.c.b16 %v4245, %v4241
    %v4386 = vpack.c.b16 %v4246, %v4242
    %v4387 = vpack.c.b16 %v4247, %v4243
    %v4388 = vpack.c.b16 %v4248, %v4244
    %v4389 = vpack.c.b16 %v4253, %v4249
    %v4390 = vpack.c.b16 %v4254, %v4250
    %v4391 = vpack.c.b16 %v4255, %v4251
    %v4392 = vpack.c.b16 %v4256, %v4252
    %v4393 = vpack.c.b16 %v4261, %v4257
    %v4394 = vpack.c.b16 %v4262, %v4258
    %v4395 = vpack.c.b16 %v4263, %v4259
    %v4396 = vpack.c.b16 %v4264, %v4260
    %v4397 = vpack.c.b16 %v4269, %v4265
    %v4398 = vpack.c.b16 %v4270, %v4266
    %v4399 = vpack.c.b16 %v4271, %v4267
    %v4400 = vpack.c.b16 %v4272, %v4268
    %4529 = vmatprep.subr.bf16.mxu0 %v4274
    %4530 = vmatpush1.bf16.msra.mxu0 %v4273
    %4531 = vmatprep.subr.bf16.mxu0 %v4278
    %4532 = vmatpush1.bf16.msra.mxu0 %v4277
    %4533 = vmatprep.subr.bf16.mxu0 %v4282
    %4534 = vmatpush1.bf16.msra.mxu0 %v4281
    %4535 = vmatprep.subr.bf16.mxu0 %v4286
    %4536 = vmatpush1.bf16.msra.mxu0 %v4285
    %4537 = vmatprep.subr.bf16.mxu0 %v4290
    %4538 = vmatpush1.bf16.msra.mxu0 %v4289
    %4539 = vmatprep.subr.bf16.mxu0 %v4294
    %4540 = vmatpush1.bf16.msra.mxu0 %v4293
    %4541 = vmatprep.subr.bf16.mxu0 %v4298
    %4542 = vmatpush1.bf16.msra.mxu0 %v4297
    %4543 = vmatprep.subr.bf16.mxu0 %v4302
    %4544 = vmatpush1.bf16.msra.mxu0 %v4301
    %4545 = vmatprep.subr.bf16.mxu0 %v4306
    %4546 = vmatpush1.bf16.msra.mxu0 %v4305
    %4547 = vmatprep.subr.bf16.mxu0 %v4310
    %4548 = vmatpush1.bf16.msra.mxu0 %v4309
    %4549 = vmatprep.subr.bf16.mxu0 %v4314
    %4550 = vmatpush1.bf16.msra.mxu0 %v4313
    %4551 = vmatprep.subr.bf16.mxu0 %v4318
    %4552 = vmatpush1.bf16.msra.mxu0 %v4317
    %4553 = vmatprep.subr.bf16.mxu0 %v4322
    %4554 = vmatpush1.bf16.msra.mxu0 %v4321
    %4555 = vmatprep.subr.bf16.mxu0 %v4326
    %4556 = vmatpush1.bf16.msra.mxu0 %v4325
    %4557 = vmatprep.subr.bf16.mxu0 %v4330
    %4558 = vmatpush1.bf16.msra.mxu0 %v4329
    %4559 = vmatprep.subr.bf16.mxu0 %v4334
    %4560 = vmatpush1.bf16.msra.mxu0 %v4333
    %4561 = vmatprep.mubr.bf16.mxu0 %v3746
    %4562 = vmatmul.mubr.bf16.gmra.mrb[0].mxu0 %v3745
    %v4563 = vpop.f32.mrb[0].mxu0
    %v4564 = vadd.f32 0.0, %v4563
    %v4565 = vpop.f32.mrb[0].mxu0
    %v4566 = vadd.f32 0.0, %v4565
    %v4567 = vpop.f32.mrb[0].mxu0
    %v4568 = vadd.f32 0.0, %v4567
    %v4569 = vpop.f32.mrb[0].mxu0
    %v4570 = vadd.f32 0.0, %v4569
    %4571 = vmatprep.mubr.bf16.mxu0 %v3750
    %4572 = vmatmul.mubr.bf16.gmra.mrb[0].mxu0 %v3749
    %v4573 = vpop.f32.mrb[0].mxu0
    %v4574 = vadd.f32 0.0, %v4573
    %v4575 = vpop.f32.mrb[0].mxu0
    %v4576 = vadd.f32 0.0, %v4575
    %v4577 = vpop.f32.mrb[0].mxu0
    %v4578 = vadd.f32 0.0, %v4577
    %v4579 = vpop.f32.mrb[0].mxu0
    %v4580 = vadd.f32 0.0, %v4579
    %4581 = vmatprep.mubr.bf16.mxu0 %v3754
    %4582 = vmatmul.mubr.bf16.gmra.mrb[0].mxu0 %v3753
    %v4583 = vpop.f32.mrb[0].mxu0
    %v4584 = vadd.f32 0.0, %v4583
    %v4585 = vpop.f32.mrb[0].mxu0
    %v4586 = vadd.f32 0.0, %v4585
    %v4587 = vpop.f32.mrb[0].mxu0
    %v4588 = vadd.f32 0.0, %v4587
    %v4589 = vpop.f32.mrb[0].mxu0
    %v4590 = vadd.f32 0.0, %v4589
    %4591 = vmatprep.mubr.bf16.mxu0 %v3758
    %4592 = vmatmul.mubr.bf16.gmra.mrb[0].mxu0 %v3757
    %v4593 = vpop.f32.mrb[0].mxu0
    %v4594 = vadd.f32 0.0, %v4593
    %v4595 = vpop.f32.mrb[0].mxu0
    %v4596 = vadd.f32 0.0, %v4595
    %v4597 = vpop.f32.mrb[0].mxu0
    %v4598 = vadd.f32 0.0, %v4597
    %v4599 = vpop.f32.mrb[0].mxu0
    %v4600 = vadd.f32 0.0, %v4599
    %4601 = vdwg.mxu0
    %4602 = vmatprep.subr.bf16.mxu0 %v4338
    %4603 = vmatpush1.bf16.msra.mxu0 %v4337
    %4604 = vmatprep.subr.bf16.mxu0 %v4342
    %4605 = vmatpush1.bf16.msra.mxu0 %v4341
    %4606 = vmatprep.subr.bf16.mxu0 %v4346
    %4607 = vmatpush1.bf16.msra.mxu0 %v4345
    %4608 = vmatprep.subr.bf16.mxu0 %v4350
    %4609 = vmatpush1.bf16.msra.mxu0 %v4349
    %4610 = vmatprep.subr.bf16.mxu0 %v4354
    %4611 = vmatpush1.bf16.msra.mxu0 %v4353
    %4612 = vmatprep.subr.bf16.mxu0 %v4358
    %4613 = vmatpush1.bf16.msra.mxu0 %v4357
    %4614 = vmatprep.subr.bf16.mxu0 %v4362
    %4615 = vmatpush1.bf16.msra.mxu0 %v4361
    %4616 = vmatprep.subr.bf16.mxu0 %v4366
    %4617 = vmatpush1.bf16.msra.mxu0 %v4365
    %4618 = vmatprep.subr.bf16.mxu0 %v4370
    %4619 = vmatpush1.bf16.msra.mxu0 %v4369
    %4620 = vmatprep.subr.bf16.mxu0 %v4374
    %4621 = vmatpush1.bf16.msra.mxu0 %v4373
    %4622 = vmatprep.subr.bf16.mxu0 %v4378
    %4623 = vmatpush1.bf16.msra.mxu0 %v4377
    %4624 = vmatprep.subr.bf16.mxu0 %v4382
    %4625 = vmatpush1.bf16.msra.mxu0 %v4381
    %4626 = vmatprep.subr.bf16.mxu0 %v4386
    %4627 = vmatpush1.bf16.msra.mxu0 %v4385
    %4628 = vmatprep.subr.bf16.mxu0 %v4390
    %4629 = vmatpush1.bf16.msra.mxu0 %v4389
    %4630 = vmatprep.subr.bf16.mxu0 %v4394
    %4631 = vmatpush1.bf16.msra.mxu0 %v4393
    %4632 = vmatprep.subr.bf16.mxu0 %v4398
    %4633 = vmatpush1.bf16.msra.mxu0 %v4397
    %4634 = vmatprep.mubr.bf16.mxu0 %v3748
    %4635 = vmatmul.mubr.bf16.gmra.mrb[0].mxu0 %v3747
    %v4636 = vpop.f32.mrb[0].mxu0
    %v4637 = vadd.f32 %v4564, %v4636
    %v4638 = vpop.f32.mrb[0].mxu0
    %v4639 = vadd.f32 %v4566, %v4638
    %v4640 = vpop.f32.mrb[0].mxu0
    %v4641 = vadd.f32 %v4568, %v4640
    %v4642 = vpop.f32.mrb[0].mxu0
    %v4643 = vadd.f32 %v4570, %v4642
    %4644 = vmatprep.mubr.bf16.mxu0 %v3752
    %4645 = vmatmul.mubr.bf16.gmra.mrb[0].mxu0 %v3751
    %v4646 = vpop.f32.mrb[0].mxu0
    %v4647 = vadd.f32 %v4574, %v4646
    %v4648 = vpop.f32.mrb[0].mxu0
    %v4649 = vadd.f32 %v4576, %v4648
    %v4650 = vpop.f32.mrb[0].mxu0
    %v4651 = vadd.f32 %v4578, %v4650
    %v4652 = vpop.f32.mrb[0].mxu0
    %v4653 = vadd.f32 %v4580, %v4652
    %4654 = vmatprep.mubr.bf16.mxu0 %v3756
    %4655 = vmatmul.mubr.bf16.gmra.mrb[0].mxu0 %v3755
    %v4656 = vpop.f32.mrb[0].mxu0
    %v4657 = vadd.f32 %v4584, %v4656
    %v4658 = vpop.f32.mrb[0].mxu0
    %v4659 = vadd.f32 %v4586, %v4658
    %v4660 = vpop.f32.mrb[0].mxu0
    %v4661 = vadd.f32 %v4588, %v4660
    %v4662 = vpop.f32.mrb[0].mxu0
    %v4663 = vadd.f32 %v4590, %v4662
    %4664 = vmatprep.mubr.bf16.mxu0 %v3760
    %4665 = vmatmul.mubr.bf16.gmra.mrb[0].mxu0 %v3759
    %v4666 = vpop.f32.mrb[0].mxu0
    %v4667 = vadd.f32 %v4594, %v4666
    %v4668 = vpop.f32.mrb[0].mxu0
    %v4669 = vadd.f32 %v4596, %v4668
    %v4670 = vpop.f32.mrb[0].mxu0
    %v4671 = vadd.f32 %v4598, %v4670
    %v4672 = vpop.f32.mrb[0].mxu0
    %v4673 = vadd.f32 %v4600, %v4672
    %4674 = vdwg.mxu0
    %4675 = vmatprep.subr.bf16.mxu0 %v4276
    %4676 = vmatpush1.bf16.msra.mxu0 %v4275
    %4677 = vmatprep.subr.bf16.mxu0 %v4280
    %4678 = vmatpush1.bf16.msra.mxu0 %v4279
    %4679 = vmatprep.subr.bf16.mxu0 %v4284
    %4680 = vmatpush1.bf16.msra.mxu0 %v4283
    %4681 = vmatprep.subr.bf16.mxu0 %v4288
    %4682 = vmatpush1.bf16.msra.mxu0 %v4287
    %4683 = vmatprep.subr.bf16.mxu0 %v4292
    %4684 = vmatpush1.bf16.msra.mxu0 %v4291
    %4685 = vmatprep.subr.bf16.mxu0 %v4296
    %4686 = vmatpush1.bf16.msra.mxu0 %v4295
    %4687 = vmatprep.subr.bf16.mxu0 %v4300
    %4688 = vmatpush1.bf16.msra.mxu0 %v4299
    %4689 = vmatprep.subr.bf16.mxu0 %v4304
    %4690 = vmatpush1.bf16.msra.mxu0 %v4303
    %4691 = vmatprep.subr.bf16.mxu0 %v4308
    %4692 = vmatpush1.bf16.msra.mxu0 %v4307
    %4693 = vmatprep.subr.bf16.mxu0 %v4312
    %4694 = vmatpush1.bf16.msra.mxu0 %v4311
    %4695 = vmatprep.subr.bf16.mxu0 %v4316
    %4696 = vmatpush1.bf16.msra.mxu0 %v4315
    %4697 = vmatprep.subr.bf16.mxu0 %v4320
    %4698 = vmatpush1.bf16.msra.mxu0 %v4319
    %4699 = vmatprep.subr.bf16.mxu0 %v4324
    %4700 = vmatpush1.bf16.msra.mxu0 %v4323
    %4701 = vmatprep.subr.bf16.mxu0 %v4328
    %4702 = vmatpush1.bf16.msra.mxu0 %v4327
    %4703 = vmatprep.subr.bf16.mxu0 %v4332
    %4704 = vmatpush1.bf16.msra.mxu0 %v4331
    %4705 = vmatprep.subr.bf16.mxu0 %v4336
    %4706 = vmatpush1.bf16.msra.mxu0 %v4335
    %4707 = vmatprep.mubr.bf16.mxu0 %v3746
    %4708 = vmatmul.mubr.bf16.gmra.mrb[0].mxu0 %v3745
    %v4709 = vpop.f32.mrb[0].mxu0
    %v4710 = vadd.f32 0.0, %v4709
    %v4711 = vpop.f32.mrb[0].mxu0
    %v4712 = vadd.f32 0.0, %v4711
    %v4713 = vpop.f32.mrb[0].mxu0
    %v4714 = vadd.f32 0.0, %v4713
    %v4715 = vpop.f32.mrb[0].mxu0
    %v4716 = vadd.f32 0.0, %v4715
    %4717 = vmatprep.mubr.bf16.mxu0 %v3750
    %4718 = vmatmul.mubr.bf16.gmra.mrb[0].mxu0 %v3749
    %v4719 = vpop.f32.mrb[0].mxu0
    %v4720 = vadd.f32 0.0, %v4719
    %v4721 = vpop.f32.mrb[0].mxu0
    %v4722 = vadd.f32 0.0, %v4721
    %v4723 = vpop.f32.mrb[0].mxu0
    %v4724 = vadd.f32 0.0, %v4723
    %v4725 = vpop.f32.mrb[0].mxu0
    %v4726 = vadd.f32 0.0, %v4725
    %4727 = vmatprep.mubr.bf16.mxu0 %v3754
    %4728 = vmatmul.mubr.bf16.gmra.mrb[0].mxu0 %v3753
    %v4729 = vpop.f32.mrb[0].mxu0
    %v4730 = vadd.f32 0.0, %v4729
    %v4731 = vpop.f32.mrb[0].mxu0
    %v4732 = vadd.f32 0.0, %v4731
    %v4733 = vpop.f32.mrb[0].mxu0
    %v4734 = vadd.f32 0.0, %v4733
    %v4735 = vpop.f32.mrb[0].mxu0
    %v4736 = vadd.f32 0.0, %v4735
    %4737 = vmatprep.mubr.bf16.mxu0 %v3758
    %4738 = vmatmul.mubr.bf16.gmra.mrb[0].mxu0 %v3757
    %v4739 = vpop.f32.mrb[0].mxu0
    %v4740 = vadd.f32 0.0, %v4739
    %v4741 = vpop.f32.mrb[0].mxu0
    %v4742 = vadd.f32 0.0, %v4741
    %v4743 = vpop.f32.mrb[0].mxu0
    %v4744 = vadd.f32 0.0, %v4743
    %v4745 = vpop.f32.mrb[0].mxu0
    %v4746 = vadd.f32 0.0, %v4745
    %4747 = vdwg.mxu0
    %4748 = vmatprep.subr.bf16.mxu0 %v4340
    %4749 = vmatpush1.bf16.msra.mxu0 %v4339
    %4750 = vmatprep.subr.bf16.mxu0 %v4344
    %4751 = vmatpush1.bf16.msra.mxu0 %v4343
    %4752 = vmatprep.subr.bf16.mxu0 %v4348
    %4753 = vmatpush1.bf16.msra.mxu0 %v4347
    %4754 = vmatprep.subr.bf16.mxu0 %v4352
    %4755 = vmatpush1.bf16.msra.mxu0 %v4351
    %4756 = vmatprep.subr.bf16.mxu0 %v4356
    %4757 = vmatpush1.bf16.msra.mxu0 %v4355
    %4758 = vmatprep.subr.bf16.mxu0 %v4360
    %4759 = vmatpush1.bf16.msra.mxu0 %v4359
    %4760 = vmatprep.subr.bf16.mxu0 %v4364
    %4761 = vmatpush1.bf16.msra.mxu0 %v4363
    %4762 = vmatprep.subr.bf16.mxu0 %v4368
    %4763 = vmatpush1.bf16.msra.mxu0 %v4367
    %4764 = vmatprep.subr.bf16.mxu0 %v4372
    %4765 = vmatpush1.bf16.msra.mxu0 %v4371
    %4766 = vmatprep.subr.bf16.mxu0 %v4376
    %4767 = vmatpush1.bf16.msra.mxu0 %v4375
    %4768 = vmatprep.subr.bf16.mxu0 %v4380
    %4769 = vmatpush1.bf16.msra.mxu0 %v4379
    %4770 = vmatprep.subr.bf16.mxu0 %v4384
    %4771 = vmatpush1.bf16.msra.mxu0 %v4383
    %4772 = vmatprep.subr.bf16.mxu0 %v4388
    %4773 = vmatpush1.bf16.msra.mxu0 %v4387
    %4774 = vmatprep.subr.bf16.mxu0 %v4392
    %4775 = vmatpush1.bf16.msra.mxu0 %v4391
    %4776 = vmatprep.subr.bf16.mxu0 %v4396
    %4777 = vmatpush1.bf16.msra.mxu0 %v4395
    %4778 = vmatprep.subr.bf16.mxu0 %v4400
    %4779 = vmatpush1.bf16.msra.mxu0 %v4399
    %4780 = vmatprep.mubr.bf16.mxu0 %v3748
    %4781 = vmatmul.mubr.bf16.gmra.mrb[0].mxu0 %v3747
    %v4782 = vpop.f32.mrb[0].mxu0
    %v4783 = vadd.f32 %v4710, %v4782
    %v4784 = vpop.f32.mrb[0].mxu0
    %v4785 = vadd.f32 %v4712, %v4784
    %v4786 = vpop.f32.mrb[0].mxu0
    %v4787 = vadd.f32 %v4714, %v4786
    %v4788 = vpop.f32.mrb[0].mxu0
    %v4789 = vadd.f32 %v4716, %v4788
    %4790 = vmatprep.mubr.bf16.mxu0 %v3752
    %4791 = vmatmul.mubr.bf16.gmra.mrb[0].mxu0 %v3751
    %v4792 = vpop.f32.mrb[0].mxu0
    %v4793 = vadd.f32 %v4720, %v4792
    %v4794 = vpop.f32.mrb[0].mxu0
    %v4795 = vadd.f32 %v4722, %v4794
    %v4796 = vpop.f32.mrb[0].mxu0
    %v4797 = vadd.f32 %v4724, %v4796
    %v4798 = vpop.f32.mrb[0].mxu0
    %v4799 = vadd.f32 %v4726, %v4798
    %4800 = vmatprep.mubr.bf16.mxu0 %v3756
    %4801 = vmatmul.mubr.bf16.gmra.mrb[0].mxu0 %v3755
    %v4802 = vpop.f32.mrb[0].mxu0
    %v4803 = vadd.f32 %v4730, %v4802
    %v4804 = vpop.f32.mrb[0].mxu0
    %v4805 = vadd.f32 %v4732, %v4804
    %v4806 = vpop.f32.mrb[0].mxu0
    %v4807 = vadd.f32 %v4734, %v4806
    %v4808 = vpop.f32.mrb[0].mxu0
    %v4809 = vadd.f32 %v4736, %v4808
    %4810 = vmatprep.mubr.bf16.mxu0 %v3760
    %4811 = vmatmul.mubr.bf16.gmra.mrb[0].mxu0 %v3759
    %v4812 = vpop.f32.mrb[0].mxu0
    %v4813 = vadd.f32 %v4740, %v4812
    %v4814 = vpop.f32.mrb[0].mxu0
    %v4815 = vadd.f32 %v4742, %v4814
    %v4816 = vpop.f32.mrb[0].mxu0
    %v4817 = vadd.f32 %v4744, %v4816
    %v4818 = vpop.f32.mrb[0].mxu0
    %v4819 = vadd.f32 %v4746, %v4818
    %4820 = vdwg.mxu0
    %v4821 = vld [vmem:[%s11] sm:$0xf]
    %v4822 = vld [vmem:[%s12] sm:$0xf]
    %v4823 = vadd.f32 %v4637, %v4641
    %v4824 = vadd.f32 %v4823, %v4647
    %v4825 = vadd.f32 %v4824, %v4651
    %v4826 = vadd.f32 %v4825, %v4657
    %v4827 = vadd.f32 %v4826, %v4661
    %v4828 = vadd.f32 %v4827, %v4667
    %v4829 = vadd.f32 %v4828, %v4671
    %v4830 = vrot.slane %v4829, 4
    %v4831 = vadd.f32 %v4829, %v4830
    %v4832 = vrot.slane %v4831, 2
    %v4833 = vadd.f32 %v4831, %v4832
    %v4834 = vrot.slane %v4833, 1
    %v4835 = vadd.f32 %v4833, %v4834
    %v4836 = vadd.f32 %v4639, %v4643
    %v4837 = vadd.f32 %v4836, %v4649
    %v4838 = vadd.f32 %v4837, %v4653
    %v4839 = vadd.f32 %v4838, %v4659
    %v4840 = vadd.f32 %v4839, %v4663
    %v4841 = vadd.f32 %v4840, %v4669
    %v4842 = vadd.f32 %v4841, %v4673
    %v4843 = vrot.slane %v4842, 4
    %v4844 = vadd.f32 %v4842, %v4843
    %v4845 = vrot.slane %v4844, 2
    %v4846 = vadd.f32 %v4844, %v4845
    %v4847 = vrot.slane %v4846, 1
    %v4848 = vadd.f32 %v4846, %v4847
    %v4849 = vadd.f32 %v4783, %v4787
    %v4850 = vadd.f32 %v4849, %v4793
    %v4851 = vadd.f32 %v4850, %v4797
    %v4852 = vadd.f32 %v4851, %v4803
    %v4853 = vadd.f32 %v4852, %v4807
    %v4854 = vadd.f32 %v4853, %v4813
    %v4855 = vadd.f32 %v4854, %v4817
    %v4856 = vrot.slane %v4855, 4
    %v4857 = vadd.f32 %v4855, %v4856
    %v4858 = vrot.slane %v4857, 2
    %v4859 = vadd.f32 %v4857, %v4858
    %v4860 = vrot.slane %v4859, 1
    %v4861 = vadd.f32 %v4859, %v4860
    %v4862 = vadd.f32 %v4785, %v4789
    %v4863 = vadd.f32 %v4862, %v4795
    %v4864 = vadd.f32 %v4863, %v4799
    %v4865 = vadd.f32 %v4864, %v4805
    %v4866 = vadd.f32 %v4865, %v4809
    %v4867 = vadd.f32 %v4866, %v4815
    %v4868 = vadd.f32 %v4867, %v4819
    %v4869 = vrot.slane %v4868, 4
    %v4870 = vadd.f32 %v4868, %v4869
    %v4871 = vrot.slane %v4870, 2
    %v4872 = vadd.f32 %v4870, %v4871
    %v4873 = vrot.slane %v4872, 1
    %v4874 = vadd.f32 %v4872, %v4873
    %v4875 = vmul.f32 %v4637, %v4637
    %v4876 = vmul.f32 %v4639, %v4639
    %v4877 = vmul.f32 %v4783, %v4783
    %v4878 = vmul.f32 %v4785, %v4785
    %v4879 = vmul.f32 %v4641, %v4641
    %v4880 = vmul.f32 %v4643, %v4643
    %v4881 = vmul.f32 %v4787, %v4787
    %v4882 = vmul.f32 %v4789, %v4789
    %v4883 = vmul.f32 %v4647, %v4647
    %v4884 = vmul.f32 %v4649, %v4649
    %v4885 = vmul.f32 %v4793, %v4793
    %v4886 = vmul.f32 %v4795, %v4795
    %v4887 = vmul.f32 %v4651, %v4651
    %v4888 = vmul.f32 %v4653, %v4653
    %v4889 = vmul.f32 %v4797, %v4797
    %v4890 = vmul.f32 %v4799, %v4799
    %v4891 = vmul.f32 %v4657, %v4657
    %v4892 = vmul.f32 %v4659, %v4659
    %v4893 = vmul.f32 %v4803, %v4803
    %v4894 = vmul.f32 %v4805, %v4805
    %v4895 = vmul.f32 %v4661, %v4661
    %v4896 = vmul.f32 %v4663, %v4663
    %v4897 = vmul.f32 %v4807, %v4807
    %v4898 = vmul.f32 %v4809, %v4809
    %v4899 = vmul.f32 %v4667, %v4667
    %v4900 = vmul.f32 %v4669, %v4669
    %v4901 = vmul.f32 %v4813, %v4813
    %v4902 = vmul.f32 %v4815, %v4815
    %v4903 = vmul.f32 %v4671, %v4671
    %v4904 = vmul.f32 %v4673, %v4673
    %v4905 = vmul.f32 %v4817, %v4817
    %v4906 = vmul.f32 %v4819, %v4819
    %v4907 = vadd.f32 %v4875, %v4879
    %v4908 = vadd.f32 %v4907, %v4883
    %v4909 = vadd.f32 %v4908, %v4887
    %v4910 = vadd.f32 %v4909, %v4891
    %v4911 = vadd.f32 %v4910, %v4895
    %v4912 = vadd.f32 %v4911, %v4899
    %v4913 = vadd.f32 %v4912, %v4903
    %v4914 = vrot.slane %v4913, 4
    %v4915 = vadd.f32 %v4913, %v4914
    %v4916 = vrot.slane %v4915, 2
    %v4917 = vadd.f32 %v4915, %v4916
    %v4918 = vrot.slane %v4917, 1
    %v4919 = vadd.f32 %v4917, %v4918
    %v4920 = vadd.f32 %v4876, %v4880
    %v4921 = vadd.f32 %v4920, %v4884
    %v4922 = vadd.f32 %v4921, %v4888
    %v4923 = vadd.f32 %v4922, %v4892
    %v4924 = vadd.f32 %v4923, %v4896
    %v4925 = vadd.f32 %v4924, %v4900
    %v4926 = vadd.f32 %v4925, %v4904
    %v4927 = vrot.slane %v4926, 4
    %v4928 = vadd.f32 %v4926, %v4927
    %v4929 = vrot.slane %v4928, 2
    %v4930 = vadd.f32 %v4928, %v4929
    %v4931 = vrot.slane %v4930, 1
    %v4932 = vadd.f32 %v4930, %v4931
    %v4933 = vadd.f32 %v4877, %v4881
    %v4934 = vadd.f32 %v4933, %v4885
    %v4935 = vadd.f32 %v4934, %v4889
    %v4936 = vadd.f32 %v4935, %v4893
    %v4937 = vadd.f32 %v4936, %v4897
    %v4938 = vadd.f32 %v4937, %v4901
    %v4939 = vadd.f32 %v4938, %v4905
    %v4940 = vrot.slane %v4939, 4
    %v4941 = vadd.f32 %v4939, %v4940
    %v4942 = vrot.slane %v4941, 2
    %v4943 = vadd.f32 %v4941, %v4942
    %v4944 = vrot.slane %v4943, 1
    %v4945 = vadd.f32 %v4943, %v4944
    %v4946 = vadd.f32 %v4878, %v4882
    %v4947 = vadd.f32 %v4946, %v4886
    %v4948 = vadd.f32 %v4947, %v4890
    %v4949 = vadd.f32 %v4948, %v4894
    %v4950 = vadd.f32 %v4949, %v4898
    %v4951 = vadd.f32 %v4950, %v4902
    %v4952 = vadd.f32 %v4951, %v4906
    %v4953 = vrot.slane %v4952, 4
    %v4954 = vadd.f32 %v4952, %v4953
    %v4955 = vrot.slane %v4954, 2
    %v4956 = vadd.f32 %v4954, %v4955
    %v4957 = vrot.slane %v4956, 1
    %v4958 = vadd.f32 %v4956, %v4957
    %v4959 = vmul.f32 %v4835, 0.015625
    %v4960 = vmul.f32 %v4848, 0.015625
    %v4961 = vmul.f32 %v4861, 0.015625
    %v4962 = vmul.f32 %v4874, 0.015625
    %v4963 = vmul.f32 %v4919, 0.015625
    %v4964 = vmul.f32 %v4932, 0.015625
    %v4965 = vmul.f32 %v4945, 0.015625
    %v4966 = vmul.f32 %v4958, 0.015625
    %v4967 = vmul.f32 %v4959, %v4959
    %v4968 = vmul.f32 %v4960, %v4960
    %v4969 = vmul.f32 %v4961, %v4961
    %v4970 = vmul.f32 %v4962, %v4962
    %v4971 = vsub.f32 %v4963, %v4967
    %v4972 = vsub.f32 %v4964, %v4968
    %v4973 = vsub.f32 %v4965, %v4969
    %v4974 = vsub.f32 %v4966, %v4970
    %v4975 = vmax.f32 %v4971, 0.0
    %v4976 = vmax.f32 %v4972, 0.0
    %v4977 = vmax.f32 %v4973, 0.0
    %v4978 = vmax.f32 %v4974, 0.0
    %v4979 = vadd.f32 %v4975, 1e-05
    %v4980 = vadd.f32 %v4976, 1e-05
    %v4981 = vadd.f32 %v4977, 1e-05
    %v4982 = vadd.f32 %v4978, 1e-05
    %v4983 = vrsqrt.pop %v4979
    %v4984 = vrsqrt.pop %v4980
    %v4985 = vrsqrt.pop %v4981
    %v4986 = vrsqrt.pop %v4982
    %v4991 = vcombine.low %v4983, %v4984
    %v4992 = vcombine.low %v4985, %v4986
    %v4994 = vunpack.c.l.s4 1966171168
    %v4995 = vunpack.c.0.s8 %v4994
    %v4996 = vlaneseq
    %v4997 = vshrl.u32 %v4996, 7
    %v4998 = vsub.s32 %v4995, %v4997
    %v4999 = vrot.slane %v4991, %v4998
    %v5001 = vunpack.c.l.s4 1966171168
    %v5002 = vunpack.c.0.s8 %v5001
    %v5003 = vlaneseq
    %v5004 = vshrl.u32 %v5003, 7
    %v5005 = vsub.s32 %v5002, %v5004
    %v5006 = vrot.slane %v4992, %v5005
    %v5007 = vcombine.low %v4999, %v5006
    %v5009 = vunpack.c.l.s4 1966171168
    %v5010 = vunpack.c.0.s8 %v5009
    %v5011 = vlaneseq
    %v5012 = vshrl.u32 %v5011, 7
    %v5013 = vsub.s32 %v5010, %v5012
    %v5014 = vrot.slane %v5007, %v5013
    %v5016 = vmul.f32 %v4821, %v5014
    %v5018 = vlaneseq
    %v5019 = vshrl.u32 %v5018, 7
    %v5020 = vsub.s32 0, %v5019
    %v5021 = vrot.slane %v5016, %v5020
    %v5022 = vlaneseq
    %v5023 = vshrl.u32 %v5022, 7
    %v5024 = vsub.s32 1, %v5023
    %v5025 = vrot.slane %v5016, %v5024
    %v5026 = vlaneseq
    %v5027 = vshrl.u32 %v5026, 7
    %v5028 = vsub.s32 2, %v5027
    %v5029 = vrot.slane %v5016, %v5028
    %v5030 = vlaneseq
    %v5031 = vshrl.u32 %v5030, 7
    %v5032 = vsub.s32 3, %v5031
    %v5033 = vrot.slane %v5016, %v5032
    %v5038 = vmul.f32 %v4959, %v5021
    %v5039 = vmul.f32 %v4960, %v5025
    %v5040 = vmul.f32 %v4961, %v5029
    %v5041 = vmul.f32 %v4962, %v5033
    %v5046 = vcombine.low %v5038, %v5039
    %v5047 = vcombine.low %v5040, %v5041
    %v5049 = vunpack.c.l.s4 1966171168
    %v5050 = vunpack.c.0.s8 %v5049
    %v5051 = vlaneseq
    %v5052 = vshrl.u32 %v5051, 7
    %v5053 = vsub.s32 %v5050, %v5052
    %v5054 = vrot.slane %v5046, %v5053
    %v5056 = vunpack.c.l.s4 1966171168
    %v5057 = vunpack.c.0.s8 %v5056
    %v5058 = vlaneseq
    %v5059 = vshrl.u32 %v5058, 7
    %v5060 = vsub.s32 %v5057, %v5059
    %v5061 = vrot.slane %v5047, %v5060
    %v5062 = vcombine.low %v5054, %v5061
    %v5064 = vunpack.c.l.s4 1966171168
    %v5065 = vunpack.c.0.s8 %v5064
    %v5066 = vlaneseq
    %v5067 = vshrl.u32 %v5066, 7
    %v5068 = vsub.s32 %v5065, %v5067
    %v5069 = vrot.slane %v5062, %v5068
    %v5071 = vsub.f32 %v4822, %v5069
    %v5072 = vmul.f32 %v4637, %v5021
    %v5073 = vmul.f32 %v4639, %v5025
    %v5074 = vmul.f32 %v4783, %v5029
    %v5075 = vmul.f32 %v4785, %v5033
    %v5076 = vmul.f32 %v4641, %v5021
    %v5077 = vmul.f32 %v4643, %v5025
    %v5078 = vmul.f32 %v4787, %v5029
    %v5079 = vmul.f32 %v4789, %v5033
    %v5080 = vmul.f32 %v4647, %v5021
    %v5081 = vmul.f32 %v4649, %v5025
    %v5082 = vmul.f32 %v4793, %v5029
    %v5083 = vmul.f32 %v4795, %v5033
    %v5084 = vmul.f32 %v4651, %v5021
    %v5085 = vmul.f32 %v4653, %v5025
    %v5086 = vmul.f32 %v4797, %v5029
    %v5087 = vmul.f32 %v4799, %v5033
    %v5088 = vmul.f32 %v4657, %v5021
    %v5089 = vmul.f32 %v4659, %v5025
    %v5090 = vmul.f32 %v4803, %v5029
    %v5091 = vmul.f32 %v4805, %v5033
    %v5092 = vmul.f32 %v4661, %v5021
    %v5093 = vmul.f32 %v4663, %v5025
    %v5094 = vmul.f32 %v4807, %v5029
    %v5095 = vmul.f32 %v4809, %v5033
    %v5096 = vmul.f32 %v4667, %v5021
    %v5097 = vmul.f32 %v4669, %v5025
    %v5098 = vmul.f32 %v4813, %v5029
    %v5099 = vmul.f32 %v4815, %v5033
    %v5100 = vmul.f32 %v4671, %v5021
    %v5101 = vmul.f32 %v4673, %v5025
    %v5102 = vmul.f32 %v4817, %v5029
    %v5103 = vmul.f32 %v4819, %v5033
    %v5105 = vlaneseq
    %v5106 = vshrl.u32 %v5105, 7
    %v5107 = vsub.s32 0, %v5106
    %v5108 = vrot.slane %v5071, %v5107
    %v5109 = vlaneseq
    %v5110 = vshrl.u32 %v5109, 7
    %v5111 = vsub.s32 1, %v5110
    %v5112 = vrot.slane %v5071, %v5111
    %v5113 = vlaneseq
    %v5114 = vshrl.u32 %v5113, 7
    %v5115 = vsub.s32 2, %v5114
    %v5116 = vrot.slane %v5071, %v5115
    %v5117 = vlaneseq
    %v5118 = vshrl.u32 %v5117, 7
    %v5119 = vsub.s32 3, %v5118
    %v5120 = vrot.slane %v5071, %v5119
    %v5125 = vadd.f32 %v5072, %v5108
    %v5126 = vadd.f32 %v5073, %v5112
    %v5127 = vadd.f32 %v5074, %v5116
    %v5128 = vadd.f32 %v5075, %v5120
    %v5129 = vadd.f32 %v5076, %v5108
    %v5130 = vadd.f32 %v5077, %v5112
    %v5131 = vadd.f32 %v5078, %v5116
    %v5132 = vadd.f32 %v5079, %v5120
    %v5133 = vadd.f32 %v5080, %v5108
    %v5134 = vadd.f32 %v5081, %v5112
    %v5135 = vadd.f32 %v5082, %v5116
    %v5136 = vadd.f32 %v5083, %v5120
    %v5137 = vadd.f32 %v5084, %v5108
    %v5138 = vadd.f32 %v5085, %v5112
    %v5139 = vadd.f32 %v5086, %v5116
    %v5140 = vadd.f32 %v5087, %v5120
    %v5141 = vadd.f32 %v5088, %v5108
    %v5142 = vadd.f32 %v5089, %v5112
    %v5143 = vadd.f32 %v5090, %v5116
    %v5144 = vadd.f32 %v5091, %v5120
    %v5145 = vadd.f32 %v5092, %v5108
    %v5146 = vadd.f32 %v5093, %v5112
    %v5147 = vadd.f32 %v5094, %v5116
    %v5148 = vadd.f32 %v5095, %v5120
    %v5149 = vadd.f32 %v5096, %v5108
    %v5150 = vadd.f32 %v5097, %v5112
    %v5151 = vadd.f32 %v5098, %v5116
    %v5152 = vadd.f32 %v5099, %v5120
    %v5153 = vadd.f32 %v5100, %v5108
    %v5154 = vadd.f32 %v5101, %v5112
    %v5155 = vadd.f32 %v5102, %v5116
    %v5156 = vadd.f32 %v5103, %v5120
    %v5157 = vmax.f32 %v5125, 0.0
    %v5158 = vmax.f32 %v5126, 0.0
    %v5159 = vmax.f32 %v5127, 0.0
    %v5160 = vmax.f32 %v5128, 0.0
    %v5161 = vmax.f32 %v5129, 0.0
    %v5162 = vmax.f32 %v5130, 0.0
    %v5163 = vmax.f32 %v5131, 0.0
    %v5164 = vmax.f32 %v5132, 0.0
    %v5165 = vmax.f32 %v5133, 0.0
    %v5166 = vmax.f32 %v5134, 0.0
    %v5167 = vmax.f32 %v5135, 0.0
    %v5168 = vmax.f32 %v5136, 0.0
    %v5169 = vmax.f32 %v5137, 0.0
    %v5170 = vmax.f32 %v5138, 0.0
    %v5171 = vmax.f32 %v5139, 0.0
    %v5172 = vmax.f32 %v5140, 0.0
    %v5173 = vmax.f32 %v5141, 0.0
    %v5174 = vmax.f32 %v5142, 0.0
    %v5175 = vmax.f32 %v5143, 0.0
    %v5176 = vmax.f32 %v5144, 0.0
    %v5177 = vmax.f32 %v5145, 0.0
    %v5178 = vmax.f32 %v5146, 0.0
    %v5179 = vmax.f32 %v5147, 0.0
    %v5180 = vmax.f32 %v5148, 0.0
    %v5181 = vmax.f32 %v5149, 0.0
    %v5182 = vmax.f32 %v5150, 0.0
    %v5183 = vmax.f32 %v5151, 0.0
    %v5184 = vmax.f32 %v5152, 0.0
    %v5185 = vmax.f32 %v5153, 0.0
    %v5186 = vmax.f32 %v5154, 0.0
    %v5187 = vmax.f32 %v5155, 0.0
    %v5188 = vmax.f32 %v5156, 0.0
    %v5189 = vpack.c.bf16 %v5161, %v5157
    %v5190 = vpack.c.bf16 %v5162, %v5158
    %v5191 = vpack.c.bf16 %v5163, %v5159
    %v5192 = vpack.c.bf16 %v5164, %v5160
    %v5193 = vpack.c.bf16 %v5169, %v5165
    %v5194 = vpack.c.bf16 %v5170, %v5166
    %v5195 = vpack.c.bf16 %v5171, %v5167
    %v5196 = vpack.c.bf16 %v5172, %v5168
    %v5197 = vpack.c.bf16 %v5177, %v5173
    %v5198 = vpack.c.bf16 %v5178, %v5174
    %v5199 = vpack.c.bf16 %v5179, %v5175
    %v5200 = vpack.c.bf16 %v5180, %v5176
    %v5201 = vpack.c.bf16 %v5185, %v5181
    %v5202 = vpack.c.bf16 %v5186, %v5182
    %v5203 = vpack.c.bf16 %v5187, %v5183
    %v5204 = vpack.c.bf16 %v5188, %v5184
    %v5205 = vld [vmem:[#allocation9] sm:$0xf]
    %v5206 = vld [vmem:[#allocation9 + $0x4] sm:$0xf]
    %v5207 = vld [vmem:[#allocation9 + $0x8] sm:$0xf]
    %v5208 = vld [vmem:[#allocation9 + $0xc] sm:$0xf]
    %v5209 = vld [vmem:[#allocation9 + $0x10] sm:$0xf]
    %v5210 = vld [vmem:[#allocation9 + $0x14] sm:$0xf]
    %v5211 = vld [vmem:[#allocation9 + $0x18] sm:$0xf]
    %v5212 = vld [vmem:[#allocation9 + $0x1c] sm:$0xf]
    %v5213 = vld [vmem:[#allocation9 + $0x20] sm:$0xf]
    %v5214 = vld [vmem:[#allocation9 + $0x24] sm:$0xf]
    %v5215 = vld [vmem:[#allocation9 + $0x28] sm:$0xf]
    %v5216 = vld [vmem:[#allocation9 + $0x2c] sm:$0xf]
    %v5217 = vld [vmem:[#allocation9 + $0x30] sm:$0xf]
    %v5218 = vld [vmem:[#allocation9 + $0x34] sm:$0xf]
    %v5219 = vld [vmem:[#allocation9 + $0x38] sm:$0xf]
    %v5220 = vld [vmem:[#allocation9 + $0x3c] sm:$0xf]
    %v5221 = vld [vmem:[#allocation9 + $0x40] sm:$0xf]
    %v5222 = vld [vmem:[#allocation9 + $0x44] sm:$0xf]
    %v5223 = vld [vmem:[#allocation9 + $0x48] sm:$0xf]
    %v5224 = vld [vmem:[#allocation9 + $0x4c] sm:$0xf]
    %v5225 = vld [vmem:[#allocation9 + $0x50] sm:$0xf]
    %v5226 = vld [vmem:[#allocation9 + $0x54] sm:$0xf]
    %v5227 = vld [vmem:[#allocation9 + $0x58] sm:$0xf]
    %v5228 = vld [vmem:[#allocation9 + $0x5c] sm:$0xf]
    %v5229 = vld [vmem:[#allocation9 + $0x60] sm:$0xf]
    %v5230 = vld [vmem:[#allocation9 + $0x64] sm:$0xf]
    %v5231 = vld [vmem:[#allocation9 + $0x68] sm:$0xf]
    %v5232 = vld [vmem:[#allocation9 + $0x6c] sm:$0xf]
    %v5233 = vld [vmem:[#allocation9 + $0x70] sm:$0xf]
    %v5234 = vld [vmem:[#allocation9 + $0x74] sm:$0xf]
    %v5235 = vld [vmem:[#allocation9 + $0x78] sm:$0xf]
    %v5236 = vld [vmem:[#allocation9 + $0x7c] sm:$0xf]
    %v5237 = vld [vmem:[#allocation9 + $0x80] sm:$0xf]
    %v5238 = vld [vmem:[#allocation9 + $0x84] sm:$0xf]
    %v5239 = vld [vmem:[#allocation9 + $0x88] sm:$0xf]
    %v5240 = vld [vmem:[#allocation9 + $0x8c] sm:$0xf]
    %v5241 = vld [vmem:[#allocation9 + $0x90] sm:$0xf]
    %v5242 = vld [vmem:[#allocation9 + $0x94] sm:$0xf]
    %v5243 = vld [vmem:[#allocation9 + $0x98] sm:$0xf]
    %v5244 = vld [vmem:[#allocation9 + $0x9c] sm:$0xf]
    %v5245 = vld [vmem:[#allocation9 + $0xa0] sm:$0xf]
    %v5246 = vld [vmem:[#allocation9 + $0xa4] sm:$0xf]
    %v5247 = vld [vmem:[#allocation9 + $0xa8] sm:$0xf]
    %v5248 = vld [vmem:[#allocation9 + $0xac] sm:$0xf]
    %v5249 = vld [vmem:[#allocation9 + $0xb0] sm:$0xf]
    %v5250 = vld [vmem:[#allocation9 + $0xb4] sm:$0xf]
    %v5251 = vld [vmem:[#allocation9 + $0xb8] sm:$0xf]
    %v5252 = vld [vmem:[#allocation9 + $0xbc] sm:$0xf]
    %v5253 = vld [vmem:[#allocation9 + $0xc0] sm:$0xf]
    %v5254 = vld [vmem:[#allocation9 + $0xc4] sm:$0xf]
    %v5255 = vld [vmem:[#allocation9 + $0xc8] sm:$0xf]
    %v5256 = vld [vmem:[#allocation9 + $0xcc] sm:$0xf]
    %v5257 = vld [vmem:[#allocation9 + $0xd0] sm:$0xf]
    %v5258 = vld [vmem:[#allocation9 + $0xd4] sm:$0xf]
    %v5259 = vld [vmem:[#allocation9 + $0xd8] sm:$0xf]
    %v5260 = vld [vmem:[#allocation9 + $0xdc] sm:$0xf]
    %v5261 = vld [vmem:[#allocation9 + $0xe0] sm:$0xf]
    %v5262 = vld [vmem:[#allocation9 + $0xe4] sm:$0xf]
    %v5263 = vld [vmem:[#allocation9 + $0xe8] sm:$0xf]
    %v5264 = vld [vmem:[#allocation9 + $0xec] sm:$0xf]
    %v5265 = vld [vmem:[#allocation9 + $0xf0] sm:$0xf]
    %v5266 = vld [vmem:[#allocation9 + $0xf4] sm:$0xf]
    %v5267 = vld [vmem:[#allocation9 + $0xf8] sm:$0xf]
    %v5268 = vld [vmem:[#allocation9 + $0xfc] sm:$0xf]
    %v5269 = vld [vmem:[%s14] sm:$0x1]
    %v5271 = vlaneseq
    %v5272 = vshrl.u32 %v5271, 7
    %v5273 = vsub.s32 0, %v5272
    %v5274 = vrot.slane %v5269, %v5273
    %v5340 = vunpack.c.l.b16 %v5205
    %v5341 = vunpack.c.l.b16 %v5206
    %v5342 = vunpack.c.l.b16 %v5207
    %v5343 = vunpack.c.l.b16 %v5208
    %v5344 = vunpack.c.l.b16 %v5209
    %v5345 = vunpack.c.l.b16 %v5210
    %v5346 = vunpack.c.l.b16 %v5211
    %v5347 = vunpack.c.l.b16 %v5212
    %v5348 = vunpack.c.l.b16 %v5213
    %v5349 = vunpack.c.l.b16 %v5214
    %v5350 = vunpack.c.l.b16 %v5215
    %v5351 = vunpack.c.l.b16 %v5216
    %v5352 = vunpack.c.l.b16 %v5217
    %v5353 = vunpack.c.l.b16 %v5218
    %v5354 = vunpack.c.l.b16 %v5219
    %v5355 = vunpack.c.l.b16 %v5220
    %v5356 = vunpack.c.l.b16 %v5221
    %v5357 = vunpack.c.l.b16 %v5222
    %v5358 = vunpack.c.l.b16 %v5223
    %v5359 = vunpack.c.l.b16 %v5224
    %v5360 = vunpack.c.l.b16 %v5225
    %v5361 = vunpack.c.l.b16 %v5226
    %v5362 = vunpack.c.l.b16 %v5227
    %v5363 = vunpack.c.l.b16 %v5228
    %v5364 = vunpack.c.l.b16 %v5229
    %v5365 = vunpack.c.l.b16 %v5230
    %v5366 = vunpack.c.l.b16 %v5231
    %v5367 = vunpack.c.l.b16 %v5232
    %v5368 = vunpack.c.l.b16 %v5233
    %v5369 = vunpack.c.l.b16 %v5234
    %v5370 = vunpack.c.l.b16 %v5235
    %v5371 = vunpack.c.l.b16 %v5236
    %v5372 = vunpack.c.l.b16 %v5237
    %v5373 = vunpack.c.l.b16 %v5238
    %v5374 = vunpack.c.l.b16 %v5239
    %v5375 = vunpack.c.l.b16 %v5240
    %v5376 = vunpack.c.l.b16 %v5241
    %v5377 = vunpack.c.l.b16 %v5242
    %v5378 = vunpack.c.l.b16 %v5243
    %v5379 = vunpack.c.l.b16 %v5244
    %v5380 = vunpack.c.l.b16 %v5245
    %v5381 = vunpack.c.l.b16 %v5246
    %v5382 = vunpack.c.l.b16 %v5247
    %v5383 = vunpack.c.l.b16 %v5248
    %v5384 = vunpack.c.l.b16 %v5249
    %v5385 = vunpack.c.l.b16 %v5250
    %v5386 = vunpack.c.l.b16 %v5251
    %v5387 = vunpack.c.l.b16 %v5252
    %v5388 = vunpack.c.l.b16 %v5253
    %v5389 = vunpack.c.l.b16 %v5254
    %v5390 = vunpack.c.l.b16 %v5255
    %v5391 = vunpack.c.l.b16 %v5256
    %v5392 = vunpack.c.l.b16 %v5257
    %v5393 = vunpack.c.l.b16 %v5258
    %v5394 = vunpack.c.l.b16 %v5259
    %v5395 = vunpack.c.l.b16 %v5260
    %v5396 = vunpack.c.l.b16 %v5261
    %v5397 = vunpack.c.l.b16 %v5262
    %v5398 = vunpack.c.l.b16 %v5263
    %v5399 = vunpack.c.l.b16 %v5264
    %v5400 = vunpack.c.l.b16 %v5265
    %v5401 = vunpack.c.l.b16 %v5266
    %v5402 = vunpack.c.l.b16 %v5267
    %v5403 = vunpack.c.l.b16 %v5268
    %v5404 = vpack.c.b16 %v5341, %v5340
    %v5405 = vpack.c.b16 %v5343, %v5342
    %v5406 = vpack.c.b16 %v5345, %v5344
    %v5407 = vpack.c.b16 %v5347, %v5346
    %v5408 = vpack.c.b16 %v5349, %v5348
    %v5409 = vpack.c.b16 %v5351, %v5350
    %v5410 = vpack.c.b16 %v5353, %v5352
    %v5411 = vpack.c.b16 %v5355, %v5354
    %v5412 = vpack.c.b16 %v5357, %v5356
    %v5413 = vpack.c.b16 %v5359, %v5358
    %v5414 = vpack.c.b16 %v5361, %v5360
    %v5415 = vpack.c.b16 %v5363, %v5362
    %v5416 = vpack.c.b16 %v5365, %v5364
    %v5417 = vpack.c.b16 %v5367, %v5366
    %v5418 = vpack.c.b16 %v5369, %v5368
    %v5419 = vpack.c.b16 %v5371, %v5370
    %v5420 = vpack.c.b16 %v5373, %v5372
    %v5421 = vpack.c.b16 %v5375, %v5374
    %v5422 = vpack.c.b16 %v5377, %v5376
    %v5423 = vpack.c.b16 %v5379, %v5378
    %v5424 = vpack.c.b16 %v5381, %v5380
    %v5425 = vpack.c.b16 %v5383, %v5382
    %v5426 = vpack.c.b16 %v5385, %v5384
    %v5427 = vpack.c.b16 %v5387, %v5386
    %v5428 = vpack.c.b16 %v5389, %v5388
    %v5429 = vpack.c.b16 %v5391, %v5390
    %v5430 = vpack.c.b16 %v5393, %v5392
    %v5431 = vpack.c.b16 %v5395, %v5394
    %v5432 = vpack.c.b16 %v5397, %v5396
    %v5433 = vpack.c.b16 %v5399, %v5398
    %v5434 = vpack.c.b16 %v5401, %v5400
    %v5435 = vpack.c.b16 %v5403, %v5402
    %5468 = vmatprep.subr.bf16.mxu0 0
    %5469 = vmatpush1.bf16.msra.mxu0 %v5404
    %5470 = vmatprep.subr.bf16.mxu0 0
    %5471 = vmatpush1.bf16.msra.mxu0 %v5405
    %5472 = vmatprep.subr.bf16.mxu0 0
    %5473 = vmatpush1.bf16.msra.mxu0 %v5406
    %5474 = vmatprep.subr.bf16.mxu0 0
    %5475 = vmatpush1.bf16.msra.mxu0 %v5407
    %5476 = vmatprep.subr.bf16.mxu0 0
    %5477 = vmatpush1.bf16.msra.mxu0 %v5408
    %5478 = vmatprep.subr.bf16.mxu0 0
    %5479 = vmatpush1.bf16.msra.mxu0 %v5409
    %5480 = vmatprep.subr.bf16.mxu0 0
    %5481 = vmatpush1.bf16.msra.mxu0 %v5410
    %5482 = vmatprep.subr.bf16.mxu0 0
    %5483 = vmatpush1.bf16.msra.mxu0 %v5411
    %5484 = vmatprep.subr.bf16.mxu0 0
    %5485 = vmatpush1.bf16.msra.mxu0 %v5412
    %5486 = vmatprep.subr.bf16.mxu0 0
    %5487 = vmatpush1.bf16.msra.mxu0 %v5413
    %5488 = vmatprep.subr.bf16.mxu0 0
    %5489 = vmatpush1.bf16.msra.mxu0 %v5414
    %5490 = vmatprep.subr.bf16.mxu0 0
    %5491 = vmatpush1.bf16.msra.mxu0 %v5415
    %5492 = vmatprep.subr.bf16.mxu0 0
    %5493 = vmatpush1.bf16.msra.mxu0 %v5416
    %5494 = vmatprep.subr.bf16.mxu0 0
    %5495 = vmatpush1.bf16.msra.mxu0 %v5417
    %5496 = vmatprep.subr.bf16.mxu0 0
    %5497 = vmatpush1.bf16.msra.mxu0 %v5418
    %5498 = vmatprep.subr.bf16.mxu0 0
    %5499 = vmatpush1.bf16.msra.mxu0 %v5419
    %5500 = vmatprep.mubr.bf16.mxu0 %v5190
    %5501 = vmatmul.mubr.bf16.gmra.mrb[0].mxu0 %v5189
    %v5502 = vpop.f32.mrb[0].mxu0
    %v5503 = vadd.f32 %v5274, %v5502
    %v5504 = vpop.f32.mrb[0].mxu0
    %v5505 = vpop.f32.mrb[0].mxu0
    %v5506 = vadd.f32 %v5274, %v5505
    %v5507 = vpop.f32.mrb[0].mxu0
    %5508 = vmatprep.mubr.bf16.mxu0 %v5194
    %5509 = vmatmul.mubr.bf16.gmra.mrb[0].mxu0 %v5193
    %v5510 = vpop.f32.mrb[0].mxu0
    %v5511 = vadd.f32 %v5274, %v5510
    %v5512 = vpop.f32.mrb[0].mxu0
    %v5513 = vpop.f32.mrb[0].mxu0
    %v5514 = vadd.f32 %v5274, %v5513
    %v5515 = vpop.f32.mrb[0].mxu0
    %5516 = vmatprep.mubr.bf16.mxu0 %v5198
    %5517 = vmatmul.mubr.bf16.gmra.mrb[0].mxu0 %v5197
    %v5518 = vpop.f32.mrb[0].mxu0
    %v5519 = vadd.f32 %v5274, %v5518
    %v5520 = vpop.f32.mrb[0].mxu0
    %v5521 = vpop.f32.mrb[0].mxu0
    %v5522 = vadd.f32 %v5274, %v5521
    %v5523 = vpop.f32.mrb[0].mxu0
    %5524 = vmatprep.mubr.bf16.mxu0 %v5202
    %5525 = vmatmul.mubr.bf16.gmra.mrb[0].mxu0 %v5201
    %v5526 = vpop.f32.mrb[0].mxu0
    %v5527 = vadd.f32 %v5274, %v5526
    %v5528 = vpop.f32.mrb[0].mxu0
    %v5529 = vpop.f32.mrb[0].mxu0
    %v5530 = vadd.f32 %v5274, %v5529
    %v5531 = vpop.f32.mrb[0].mxu0
    %5532 = vdwg.mxu0
    %5533 = vmatprep.subr.bf16.mxu0 0
    %5534 = vmatpush1.bf16.msra.mxu0 %v5420
    %5535 = vmatprep.subr.bf16.mxu0 0
    %5536 = vmatpush1.bf16.msra.mxu0 %v5421
    %5537 = vmatprep.subr.bf16.mxu0 0
    %5538 = vmatpush1.bf16.msra.mxu0 %v5422
    %5539 = vmatprep.subr.bf16.mxu0 0
    %5540 = vmatpush1.bf16.msra.mxu0 %v5423
    %5541 = vmatprep.subr.bf16.mxu0 0
    %5542 = vmatpush1.bf16.msra.mxu0 %v5424
    %5543 = vmatprep.subr.bf16.mxu0 0
    %5544 = vmatpush1.bf16.msra.mxu0 %v5425
    %5545 = vmatprep.subr.bf16.mxu0 0
    %5546 = vmatpush1.bf16.msra.mxu0 %v5426
    %5547 = vmatprep.subr.bf16.mxu0 0
    %5548 = vmatpush1.bf16.msra.mxu0 %v5427
    %5549 = vmatprep.subr.bf16.mxu0 0
    %5550 = vmatpush1.bf16.msra.mxu0 %v5428
    %5551 = vmatprep.subr.bf16.mxu0 0
    %5552 = vmatpush1.bf16.msra.mxu0 %v5429
    %5553 = vmatprep.subr.bf16.mxu0 0
    %5554 = vmatpush1.bf16.msra.mxu0 %v5430
    %5555 = vmatprep.subr.bf16.mxu0 0
    %5556 = vmatpush1.bf16.msra.mxu0 %v5431
    %5557 = vmatprep.subr.bf16.mxu0 0
    %5558 = vmatpush1.bf16.msra.mxu0 %v5432
    %5559 = vmatprep.subr.bf16.mxu0 0
    %5560 = vmatpush1.bf16.msra.mxu0 %v5433
    %5561 = vmatprep.subr.bf16.mxu0 0
    %5562 = vmatpush1.bf16.msra.mxu0 %v5434
    %5563 = vmatprep.subr.bf16.mxu0 0
    %5564 = vmatpush1.bf16.msra.mxu0 %v5435
    %5565 = vmatprep.mubr.bf16.mxu0 %v5192
    %5566 = vmatmul.mubr.bf16.gmra.mrb[0].mxu0 %v5191
    %v5567 = vpop.f32.mrb[0].mxu0
    %v5568 = vadd.f32 %v5503, %v5567
    %v5569 = vpop.f32.mrb[0].mxu0
    %v5570 = vpop.f32.mrb[0].mxu0
    %v5571 = vadd.f32 %v5506, %v5570
    %v5572 = vpop.f32.mrb[0].mxu0
    %5573 = vmatprep.mubr.bf16.mxu0 %v5196
    %5574 = vmatmul.mubr.bf16.gmra.mrb[0].mxu0 %v5195
    %v5575 = vpop.f32.mrb[0].mxu0
    %v5576 = vadd.f32 %v5511, %v5575
    %v5577 = vpop.f32.mrb[0].mxu0
    %v5578 = vpop.f32.mrb[0].mxu0
    %v5579 = vadd.f32 %v5514, %v5578
    %v5580 = vpop.f32.mrb[0].mxu0
    %5581 = vmatprep.mubr.bf16.mxu0 %v5200
    %5582 = vmatmul.mubr.bf16.gmra.mrb[0].mxu0 %v5199
    %v5583 = vpop.f32.mrb[0].mxu0
    %v5584 = vadd.f32 %v5519, %v5583
    %v5585 = vpop.f32.mrb[0].mxu0
    %v5586 = vpop.f32.mrb[0].mxu0
    %v5587 = vadd.f32 %v5522, %v5586
    %v5588 = vpop.f32.mrb[0].mxu0
    %5589 = vmatprep.mubr.bf16.mxu0 %v5204
    %5590 = vmatmul.mubr.bf16.gmra.mrb[0].mxu0 %v5203
    %v5591 = vpop.f32.mrb[0].mxu0
    %v5592 = vadd.f32 %v5527, %v5591
    %v5593 = vpop.f32.mrb[0].mxu0
    %v5594 = vpop.f32.mrb[0].mxu0
    %v5595 = vadd.f32 %v5530, %v5594
    %v5596 = vpop.f32.mrb[0].mxu0
    %5597 = vdwg.mxu0
    %5598 = vst [vmem:[%s15] sm:$0xff] %v5568
    %5599 = vst [vmem:[%s15 + $0x8] sm:$0xff] %v5571
    %5600 = vst [vmem:[%s15 + $0x10] sm:$0xff] %v5576
    %5601 = vst [vmem:[%s15 + $0x18] sm:$0xff] %v5579
    %5602 = vst [vmem:[%s15 + $0x20] sm:$0xff] %v5584
    %5603 = vst [vmem:[%s15 + $0x28] sm:$0xff] %v5587
    %5604 = vst [vmem:[%s15 + $0x30] sm:$0xff] %v5592
    %5605 = vst [vmem:[%s15 + $0x38] sm:$0xff] %v5595
    // Predicated region
    $region82: #{_forward_padded.1} parent=1 // pred_check
      _
    $region83: #{_forward_padded.1} parent=1 // pred_check_branch
      %5607 = sbr.rel (0) target = $region85
    $region84: #{_forward_padded.1} parent=1 // pred_region
      _
    $region85: #{_forward_padded.1} parent=1 // pred_fallthru
      _
    // Predicated region
    $region86: #{_forward_padded.1} parent=1 // pred_check
      _
    $region87: #{_forward_padded.1} parent=1 // pred_check_branch
      %5609 = sbr.rel (0) target = $region89
    $region88: #{_forward_padded.1} parent=1 // pred_region
      _
    $region89: #{_forward_padded.1} parent=1 // pred_fallthru
      _
    %5610 = vsyncpa [#allocation3], 1
    %5611 = vsyncpa [#allocation5], 1
    %5612 = vsyncpa [#allocation8], 1

</llo_original>
